<compile_context>
chip_gen: v5e
topology: v5e:2x2
jax: 0.10.0
libtpu: 0.0.40
codegen_flags: <defaults>
</compile_context>

<pallas_src>
import jax
import jax.numpy as jnp
from jax import lax
from jax.experimental import pallas as pl
from jax.experimental.pallas import tpu as pltpu


_EPS = 1e-5


def _full_spec(shape):
    nd = len(shape)
    return pl.BlockSpec(shape, lambda i, _nd=nd: (0,) * _nd)


# ------------------------------ kernel pieces ------------------------------

def _batchnorm_cn(y, gamma, beta):
    """Train-mode BatchNorm2d on a (C, N) tensor: batch stats over the lane
    (N) axis, biased variance, eps=1e-5 (nn.BatchNorm2d forward semantics)."""
    mu = jnp.mean(y, axis=1, keepdims=True)
    var = jnp.mean(jnp.square(y - mu), axis=1, keepdims=True)   # biased var
    scale = gamma * lax.rsqrt(var + _EPS)
    return (y - mu) * scale + beta


def _pad_into(pad_ref, interior, B, H, W, c):
    """Write `interior` (B,H,W,c) into pad_ref (B,H+2,W+2,c) with a zero halo.

    Each scratch element is written exactly once (no full zero-fill followed
    by an interior overwrite)."""
    dt = pad_ref.dtype
    zrow = jnp.zeros((B, 1, W + 2, c), dt)
    pad_ref[:, 0:1, :, :] = zrow                    # top halo row
    pad_ref[:, H + 1:H + 2, :, :] = zrow            # bottom halo row
    zcol = jnp.zeros((B, H, 1, c), dt)
    pad_ref[:, 1:H + 1, 0:1, :] = zcol              # left halo column
    pad_ref[:, 1:H + 1, W + 1:W + 2, :] = zcol      # right halo column
    pad_ref[:, 1:H + 1, 1:W + 1, :] = interior      # interior, written once


def _conv3x3_cn(pad_ref, w_ref, B, H, W, cin, cout):
    """3x3 conv (pad=1, stride=1) from a zero-padded bf16 scratch.

    pad_ref: (B, H+2, W+2, cin) bf16
    w_ref:   (3, cout, 3*cin) bf16 with [dy, co, dx*cin + ci]
    returns: (cout, B*H*W) float32 accumulator (N on the lane axis).

    The dx (width) shift is hoisted out of the loop: the three dx-shifted
    views are concatenated once along the channel axis, so the conv becomes
    3 MXU matmuls with K = 3*cin (dy slices are major-dim slices -> free).
    """
    n = B * H * W
    dxcat = jnp.concatenate(
        [pad_ref[:, :, 0:W, :],
         pad_ref[:, :, 1:W + 1, :],
         pad_ref[:, :, 2:W + 2, :]], axis=-1)            # (B, H+2, W, 3*cin)
    acc = jnp.zeros((cout, n), jnp.float32)
    for dy in range(3):                                   # static unroll
        lhs = dxcat[:, dy:dy + H].reshape(n, 3 * cin)     # (n, 3*cin) bf16
        acc = acc + lax.dot_general(
            w_ref[dy], lhs,
            dimension_numbers=(((1,), (1,)), ((), ())),   # contract K of both
            preferred_element_type=jnp.float32)           # -> (cout, n) f32
    return acc


def _make_block_kernel(B, H, W, cin, cout, conv_shortcut):
    n = B * H * W

    def body(x_ref, w1_ref, g1_ref, b1_ref, w2_ref, g2_ref, b2_ref,
             sc_refs, o_ref, xpad_ref, hpad_ref):
        # ---- pad input into bf16 scratch (single cast, single write)
        x_bf = x_ref[...].astype(jnp.bfloat16)
        _pad_into(xpad_ref, x_bf, B, H, W, cin)

        # ---- conv1 -> bn1 -> relu    (all in (cout, n) orientation)
        y1 = _conv3x3_cn(xpad_ref, w1_ref, B, H, W, cin, cout)
        h1 = jnp.maximum(_batchnorm_cn(y1, g1_ref[...], b1_ref[...]), 0.0)

        # ---- re-pad hidden activation (stays in VMEM) -> conv2 -> bn2
        h_nhwc = jnp.transpose(h1).reshape(B, H, W, cout).astype(jnp.bfloat16)
        _pad_into(hpad_ref, h_nhwc, B, H, W, cout)
        y2 = _conv3x3_cn(hpad_ref, w2_ref, B, H, W, cout, cout)
        out = _batchnorm_cn(y2, g2_ref[...], b2_ref[...])

        # ---- shortcut + residual add
        if conv_shortcut:
            ws_ref, gs_ref, bs_ref = sc_refs
            xs = x_ref[...].reshape(n, cin).astype(jnp.bfloat16)
            ys = lax.dot_general(                          # 1x1 conv, (cout,n)
                ws_ref[...], xs,
                dimension_numbers=(((1,), (1,)), ((), ())),
                preferred_element_type=jnp.float32)
            out = out + _batchnorm_cn(ys, gs_ref[...], bs_ref[...])
        else:
            # identity shortcut: exact f32 add (cin == cout checked in wrapper)
            out = out + jnp.transpose(x_ref[...].reshape(n, cin))

        # Lane-dense store: (cout, B*H*W) puts N (multiple of 128) on the lane
        # axis -> unmasked full-width stores, no final transpose needed.
        o_ref[...] = jnp.maximum(out, 0.0)

    if conv_shortcut:
        def kernel(x_ref, w1_ref, g1_ref, b1_ref, w2_ref, g2_ref, b2_ref,
                   ws_ref, gs_ref, bs_ref, o_ref, xpad_ref, hpad_ref):
            body(x_ref, w1_ref, g1_ref, b1_ref, w2_ref, g2_ref, b2_ref,
                 (ws_ref, gs_ref, bs_ref), o_ref, xpad_ref, hpad_ref)
    else:
        def kernel(x_ref, w1_ref, g1_ref, b1_ref, w2_ref, g2_ref, b2_ref,
                   o_ref, xpad_ref, hpad_ref):
            body(x_ref, w1_ref, g1_ref, b1_ref, w2_ref, g2_ref, b2_ref,
                 None, o_ref, xpad_ref, hpad_ref)
    return kernel


# --------------------------------- wrapper ---------------------------------

def _vmem_budget(est_bytes):
    try:
        cap = pltpu.get_tpu_info().vmem_capacity_bytes
    except Exception:
        cap = 64 << 20                      # conservative (v7x per-core VMEM)
    return int(min(cap, max(32 << 20, 8 * est_bytes)))


def basic_block_forward(params, x_nchw):
    """BasicBlock forward. x_nchw: (B, Cin, H, W) float32, stride=1 only."""
    B, cin, H, W = x_nchw.shape
    cout = params["g1"].shape[0]
    conv_shortcut = "ws" in params          # in_planes != planes -> 1x1 conv + BN
    if not conv_shortcut and cin != cout:
        raise ValueError("identity shortcut requires Cin == Cout "
                         "(provide 'ws'/'gs'/'bs' projection params)")
    if W % 8 != 0 or (B * H * W) % 128 != 0:
        raise NotImplementedError("need W % 8 == 0 and (B*H*W) % 128 == 0 "
                                  "for aligned reshapes / lane-dense output")
    n = B * H * W

    # NCHW -> NHWC feed for the in-kernel im2col (tiny one-off layout op;
    # everything downstream is fused inside one pallas_call).
    x = jnp.transpose(x_nchw, (0, 2, 3, 1)).astype(jnp.float32)

    kernel = _make_block_kernel(B, H, W, cin, cout, conv_shortcut)

    in_arrays = [x, params["w1"], params["g1"], params["b1"],
                 params["w2"], params["g2"], params["b2"]]
    if conv_shortcut:
        in_arrays += [params["ws"], params["gs"], params["bs"]]

    param_bytes = sum(int(a.size) * a.dtype.itemsize for a in in_arrays[1:])
    # Rough resident-VMEM estimate: input + output + bf16 scratches + a few
    # live (cout, n) f32 temporaries + weights.
    est_bytes = (x.size * 4 + cout * n * 4
                 + 2 * B * (H + 2) * (W + 2) * max(cin, cout) * 2
                 + 6 * cout * n * 4 + param_bytes)

    flops = 2 * 9 * n * cin * cout + 2 * 9 * n * cout * cout
    if conv_shortcut:
        flops += 2 * n * cin * cout
    bytes_accessed = int(x.size * 4 + cout * n * 4 + param_bytes)

    out = pl.pallas_call(
        kernel,
        out_shape=jax.ShapeDtypeStruct((cout, n), jnp.float32),
        grid=(1,),
        in_specs=[_full_spec(a.shape) for a in in_arrays],
        out_specs=_full_spec((cout, n)),
        scratch_shapes=[
            pltpu.VMEM((B, H + 2, W + 2, cin), jnp.bfloat16),   # padded input
            pltpu.VMEM((B, H + 2, W + 2, cout), jnp.bfloat16),  # padded hidden
        ],
        compiler_params=pltpu.CompilerParams(
            dimension_semantics=("arbitrary",),
            vmem_limit_bytes=_vmem_budget(est_bytes)),
        cost_estimate=pl.CostEstimate(flops=flops, transcendentals=0,
                                      bytes_accessed=bytes_accessed),
    )(*in_arrays)

    # (Cout, B*H*W) -> (B, Cout, H, W): relabel + transpose of a tiny slab.
    return jnp.transpose(out.reshape(cout, B, H, W), (1, 0, 2, 3))


# --------------------------------- params ----------------------------------

def _repack_conv3x3(w_ochw):
    """PyTorch (cout, cin, 3, 3) -> kernel (3, cout, 3*cin) layout, with
    kernel[dy, co, dx*cin + ci] == torch[co, ci, dy, dx]."""
    cout, cin = w_ochw.shape[0], w_ochw.shape[1]
    return jnp.transpose(w_ochw, (2, 0, 3, 1)).reshape(3, cout, 3 * cin)


def init_params(key, in_planes, planes):
    """Random BasicBlock params. Conv weights are generated in the PyTorch
    layout and repacked once (outside the kernel) into the MXU-friendly
    kernel layout; matmul operands are bf16 (MXU native), BN affine params
    are fresh nn.BatchNorm2d defaults (gamma=1, beta=0) stored as (C, 1)."""
    k1, k2, k3 = jax.random.split(key, 3)
    w1 = jax.random.normal(k1, (planes, in_planes, 3, 3), jnp.float32)
    w1 = w1 * (2.0 / (9 * in_planes)) ** 0.5
    w2 = jax.random.normal(k2, (planes, planes, 3, 3), jnp.float32)
    w2 = w2 * (2.0 / (9 * planes)) ** 0.5
    params = {
        "w1": _repack_conv3x3(w1).astype(jnp.bfloat16),
        "g1": jnp.ones((planes, 1), jnp.float32),
        "b1": jnp.zeros((planes, 1), jnp.float32),
        "w2": _repack_conv3x3(w2).astype(jnp.bfloat16),
        "g2": jnp.ones((planes, 1), jnp.float32),
        "b2": jnp.zeros((planes, 1), jnp.float32),
    }
    if in_planes != planes:   # projection shortcut (1x1 conv + BN), stride=1
        ws = jax.random.normal(k3, (planes, in_planes, 1, 1), jnp.float32)
        ws = ws * (2.0 / in_planes) ** 0.5
        params["ws"] = ws.reshape(planes, in_planes).astype(jnp.bfloat16)
        params["gs"] = jnp.ones((planes, 1), jnp.float32)
        params["bs"] = jnp.zeros((planes, 1), jnp.float32)
    return params


# ----------------------------------- main -----------------------------------

if __name__ == "__main__":
    key = jax.random.PRNGKey(0)
    kx, kp1, kp2 = jax.random.split(key, 3)

    # 1) Projection-shortcut configuration: in_planes=4 != planes=8, stride=1.
    x = jax.random.normal(kx, (2, 4, 16, 16), jnp.float32)
    p_proj = init_params(kp1, 4, 8)
    out1 = jax.block_until_ready(jax.jit(basic_block_forward)(p_proj, x))
    assert out1.shape == (2, 8, 16, 16) and out1.dtype == jnp.float32
    assert bool(jnp.all(jnp.isfinite(out1)))
    assert bool(jnp.all(out1 >= 0.0))          # final ReLU

    # 2) Identity-shortcut configuration: in_planes == planes == 8, stride=1.
    x2 = jax.random.normal(kx, (2, 8, 16, 16), jnp.float32)
    p_id = init_params(kp2, 8, 8)
    out2 = jax.block_until_ready(jax.jit(basic_block_forward)(p_id, x2))
    assert out2.shape == (2, 8, 16, 16) and out2.dtype == jnp.float32
    assert bool(jnp.all(jnp.isfinite(out2)))
    assert bool(jnp.all(out2 >= 0.0))

    print("KERNEL_OK")
</pallas_src>

<mosaic_0001>
module attributes {stable_mosaic.version = 11 : i64} {
  func.func @kernel(%arg0: i32, %arg1: memref<2x16x16x4xf32, #tpu.memory_space<vmem>>, %arg2: memref<3x8x12xbf16, #tpu.memory_space<vmem>>, %arg3: memref<8x1xf32, #tpu.memory_space<vmem>>, %arg4: memref<8x1xf32, #tpu.memory_space<vmem>>, %arg5: memref<3x8x24xbf16, #tpu.memory_space<vmem>>, %arg6: memref<8x1xf32, #tpu.memory_space<vmem>>, %arg7: memref<8x1xf32, #tpu.memory_space<vmem>>, %arg8: memref<8x4xbf16, #tpu.memory_space<vmem>>, %arg9: memref<8x1xf32, #tpu.memory_space<vmem>>, %arg10: memref<8x1xf32, #tpu.memory_space<vmem>>, %arg11: memref<8x512xf32, #tpu.memory_space<vmem>>, %arg12: memref<2x18x18x4xbf16, #tpu.memory_space<vmem>>, %arg13: memref<2x18x18x8xbf16, #tpu.memory_space<vmem>>) attributes {dimension_semantics = [#tpu.dimension_semantics<arbitrary>], iteration_bounds = array<i64: 1>, scalar_prefetch = 0 : i64, scratch_operands = 2 : i64, tpu.core_type = #tpu.core_type<tc>, window_params = [{pipeline_mode = #tpu.pipeline_mode<synchronous>, transform_indices = @transform_0, window_bounds = array<i64: 2, 16, 16, 4>}, {pipeline_mode = #tpu.pipeline_mode<synchronous>, transform_indices = @transform_1, window_bounds = array<i64: 3, 8, 12>}, {pipeline_mode = #tpu.pipeline_mode<synchronous>, transform_indices = @transform_2, window_bounds = array<i64: 8, 1>}, {pipeline_mode = #tpu.pipeline_mode<synchronous>, transform_indices = @transform_3, window_bounds = array<i64: 8, 1>}, {pipeline_mode = #tpu.pipeline_mode<synchronous>, transform_indices = @transform_4, window_bounds = array<i64: 3, 8, 24>}, {pipeline_mode = #tpu.pipeline_mode<synchronous>, transform_indices = @transform_5, window_bounds = array<i64: 8, 1>}, {pipeline_mode = #tpu.pipeline_mode<synchronous>, transform_indices = @transform_6, window_bounds = array<i64: 8, 1>}, {pipeline_mode = #tpu.pipeline_mode<synchronous>, transform_indices = @transform_7, window_bounds = array<i64: 8, 4>}, {pipeline_mode = #tpu.pipeline_mode<synchronous>, transform_indices = @transform_8, window_bounds = array<i64: 8, 1>}, {pipeline_mode = #tpu.pipeline_mode<synchronous>, transform_indices = @transform_9, window_bounds = array<i64: 8, 1>}, {pipeline_mode = #tpu.pipeline_mode<synchronous>, transform_indices = @transform_10, window_bounds = array<i64: 8, 512>}]} {
    %c0 = arith.constant 0 : index
    %c0_0 = arith.constant 0 : index
    %c0_1 = arith.constant 0 : index
    %c0_2 = arith.constant 0 : index
    %0 = vector.load %arg1[%c0, %c0_0, %c0_1, %c0_2] : memref<2x16x16x4xf32, #tpu.memory_space<vmem>>, vector<2x16x16x4xf32>
    %1 = arith.truncf %0 : vector<2x16x16x4xf32> to vector<2x16x16x4xbf16>
    %cst = arith.constant 0.000000e+00 : bf16
    %2 = vector.broadcast %cst : bf16 to vector<2x1x18x4xbf16>
    %c0_3 = arith.constant 0 : index
    %c0_4 = arith.constant 0 : index
    %c0_5 = arith.constant 0 : index
    %c0_6 = arith.constant 0 : index
    %3 = vector.load %arg12[%c0_3, %c0_4, %c0_5, %c0_6] : memref<2x18x18x4xbf16, #tpu.memory_space<vmem>>, vector<2x1x18x4xbf16>
    tpu.vector_store %arg12[%c0_3, %c0_4, %c0_5, %c0_6], %2 {strides = array<i32>} : memref<2x18x18x4xbf16, #tpu.memory_space<vmem>>, vector<2x1x18x4xbf16>,
    %c0_7 = arith.constant 0 : index
    %c17 = arith.constant 17 : index
    %c0_8 = arith.constant 0 : index
    %c0_9 = arith.constant 0 : index
    %4 = vector.load %arg12[%c0_7, %c17, %c0_8, %c0_9] : memref<2x18x18x4xbf16, #tpu.memory_space<vmem>>, vector<2x1x18x4xbf16>
    tpu.vector_store %arg12[%c0_7, %c17, %c0_8, %c0_9], %2 {strides = array<i32>} : memref<2x18x18x4xbf16, #tpu.memory_space<vmem>>, vector<2x1x18x4xbf16>,
    %cst_10 = arith.constant 0.000000e+00 : bf16
    %5 = vector.broadcast %cst_10 : bf16 to vector<2x16x1x4xbf16>
    %c0_11 = arith.constant 0 : index
    %c1 = arith.constant 1 : index
    %c0_12 = arith.constant 0 : index
    %c0_13 = arith.constant 0 : index
    %6 = vector.load %arg12[%c0_11, %c1, %c0_12, %c0_13] : memref<2x18x18x4xbf16, #tpu.memory_space<vmem>>, vector<2x16x1x4xbf16>
    tpu.vector_store %arg12[%c0_11, %c1, %c0_12, %c0_13], %5 {strides = array<i32>} : memref<2x18x18x4xbf16, #tpu.memory_space<vmem>>, vector<2x16x1x4xbf16>,
    %c0_14 = arith.constant 0 : index
    %c1_15 = arith.constant 1 : index
    %c17_16 = arith.constant 17 : index
    %c0_17 = arith.constant 0 : index
    %7 = vector.load %arg12[%c0_14, %c1_15, %c17_16, %c0_17] : memref<2x18x18x4xbf16, #tpu.memory_space<vmem>>, vector<2x16x1x4xbf16>
    tpu.vector_store %arg12[%c0_14, %c1_15, %c17_16, %c0_17], %5 {strides = array<i32>} : memref<2x18x18x4xbf16, #tpu.memory_space<vmem>>, vector<2x16x1x4xbf16>,
    %c0_18 = arith.constant 0 : index
    %c1_19 = arith.constant 1 : index
    %c1_20 = arith.constant 1 : index
    %c0_21 = arith.constant 0 : index
    %8 = vector.load %arg12[%c0_18, %c1_19, %c1_20, %c0_21] : memref<2x18x18x4xbf16, #tpu.memory_space<vmem>>, vector<2x16x16x4xbf16>
    tpu.vector_store %arg12[%c0_18, %c1_19, %c1_20, %c0_21], %1 {strides = array<i32>} : memref<2x18x18x4xbf16, #tpu.memory_space<vmem>>, vector<2x16x16x4xbf16>,
    %c0_22 = arith.constant 0 : index
    %c0_23 = arith.constant 0 : index
    %c0_24 = arith.constant 0 : index
    %c0_25 = arith.constant 0 : index
    %9 = vector.load %arg12[%c0_22, %c0_23, %c0_24, %c0_25] : memref<2x18x18x4xbf16, #tpu.memory_space<vmem>>, vector<2x18x16x4xbf16>
    %c0_26 = arith.constant 0 : index
    %c0_27 = arith.constant 0 : index
    %c1_28 = arith.constant 1 : index
    %c0_29 = arith.constant 0 : index
    %10 = vector.load %arg12[%c0_26, %c0_27, %c1_28, %c0_29] : memref<2x18x18x4xbf16, #tpu.memory_space<vmem>>, vector<2x18x16x4xbf16>
    %c0_30 = arith.constant 0 : index
    %c0_31 = arith.constant 0 : index
    %c2 = arith.constant 2 : index
    %c0_32 = arith.constant 0 : index
    %11 = vector.load %arg12[%c0_30, %c0_31, %c2, %c0_32] : memref<2x18x18x4xbf16, #tpu.memory_space<vmem>>, vector<2x18x16x4xbf16>
    %12 = tpu.concatenate %9, %10, %11 in 3 : vector<2x18x16x4xbf16>, vector<2x18x16x4xbf16>, vector<2x18x16x4xbf16> -> vector<2x18x16x12xbf16>
    %cst_33 = arith.constant 0.000000e+00 : f32
    %13 = vector.broadcast %cst_33 : f32 to vector<8x512xf32>
    %14 = vector.extract_strided_slice %12 {offsets = [0, 0, 0, 0], sizes = [2, 16, 16, 12], strides = [1, 1, 1, 1]} : vector<2x18x16x12xbf16> to vector<2x16x16x12xbf16>
    %15 = vector.shape_cast %14 : vector<2x16x16x12xbf16> to vector<512x12xbf16>
    %c0_34 = arith.constant 0 : index
    %c0_35 = arith.constant 0 : index
    %c0_36 = arith.constant 0 : index
    %16 = vector.load %arg2[%c0_34, %c0_35, %c0_36] : memref<3x8x12xbf16, #tpu.memory_space<vmem>>, vector<1x8x12xbf16>
    %17 = vector.shape_cast %16 : vector<1x8x12xbf16> to vector<8x12xbf16>
    %cst_37 = arith.constant dense<0.000000e+00> : vector<8x512xf32>
    %18 = tpu.matmul %17, %15, %cst_37 {dimension_numbers = #tpu.dot_dimension_numbers<[1], [1], [0], [0], [0, 0, 1, 0], [], []>} : vector<8x12xbf16>, vector<512x12xbf16>, vector<8x512xf32> -> vector<8x512xf32>
    %19 = arith.addf %13, %18 : vector<8x512xf32>
    %20 = vector.extract_strided_slice %12 {offsets = [0, 1, 0, 0], sizes = [2, 16, 16, 12], strides = [1, 1, 1, 1]} : vector<2x18x16x12xbf16> to vector<2x16x16x12xbf16>
    %21 = vector.shape_cast %20 : vector<2x16x16x12xbf16> to vector<512x12xbf16>
    %c1_38 = arith.constant 1 : index
    %c0_39 = arith.constant 0 : index
    %c0_40 = arith.constant 0 : index
    %22 = vector.load %arg2[%c1_38, %c0_39, %c0_40] : memref<3x8x12xbf16, #tpu.memory_space<vmem>>, vector<1x8x12xbf16>
    %23 = vector.shape_cast %22 : vector<1x8x12xbf16> to vector<8x12xbf16>
    %cst_41 = arith.constant dense<0.000000e+00> : vector<8x512xf32>
    %24 = tpu.matmul %23, %21, %cst_41 {dimension_numbers = #tpu.dot_dimension_numbers<[1], [1], [0], [0], [0, 0, 1, 0], [], []>} : vector<8x12xbf16>, vector<512x12xbf16>, vector<8x512xf32> -> vector<8x512xf32>
    %25 = arith.addf %19, %24 : vector<8x512xf32>
    %26 = vector.extract_strided_slice %12 {offsets = [0, 2, 0, 0], sizes = [2, 16, 16, 12], strides = [1, 1, 1, 1]} : vector<2x18x16x12xbf16> to vector<2x16x16x12xbf16>
    %27 = vector.shape_cast %26 : vector<2x16x16x12xbf16> to vector<512x12xbf16>
    %c2_42 = arith.constant 2 : index
    %c0_43 = arith.constant 0 : index
    %c0_44 = arith.constant 0 : index
    %28 = vector.load %arg2[%c2_42, %c0_43, %c0_44] : memref<3x8x12xbf16, #tpu.memory_space<vmem>>, vector<1x8x12xbf16>
    %29 = vector.shape_cast %28 : vector<1x8x12xbf16> to vector<8x12xbf16>
    %cst_45 = arith.constant dense<0.000000e+00> : vector<8x512xf32>
    %30 = tpu.matmul %29, %27, %cst_45 {dimension_numbers = #tpu.dot_dimension_numbers<[1], [1], [0], [0], [0, 0, 1, 0], [], []>} : vector<8x12xbf16>, vector<512x12xbf16>, vector<8x512xf32> -> vector<8x512xf32>
    %31 = arith.addf %25, %30 : vector<8x512xf32>
    %c0_46 = arith.constant 0 : index
    %c0_47 = arith.constant 0 : index
    %32 = vector.load %arg3[%c0_46, %c0_47] : memref<8x1xf32, #tpu.memory_space<vmem>>, vector<8x1xf32>
    %c0_48 = arith.constant 0 : index
    %c0_49 = arith.constant 0 : index
    %33 = vector.load %arg4[%c0_48, %c0_49] : memref<8x1xf32, #tpu.memory_space<vmem>>, vector<8x1xf32>
    %cst_50 = arith.constant dense<0.000000e+00> : vector<8xf32>
    %34 = vector.multi_reduction <add>, %31, %cst_50 [1] : vector<8x512xf32> to vector<8xf32>
    %35 = vector.shape_cast %34 : vector<8xf32> to vector<8x1xf32>
    %cst_51 = arith.constant 5.120000e+02 : f32
    %36 = vector.broadcast %cst_51 : f32 to vector<8x1xf32>
    %37 = arith.divf %35, %36 : vector<8x1xf32>
    %38 = vector.broadcast %37 : vector<8x1xf32> to vector<8x512xf32>
    %39 = arith.subf %31, %38 : vector<8x512xf32>
    %40 = arith.mulf %39, %39 : vector<8x512xf32>
    %cst_52 = arith.constant dense<0.000000e+00> : vector<8xf32>
    %41 = vector.multi_reduction <add>, %40, %cst_52 [1] : vector<8x512xf32> to vector<8xf32>
    %42 = vector.shape_cast %41 : vector<8xf32> to vector<8x1xf32>
    %cst_53 = arith.constant 5.120000e+02 : f32
    %43 = vector.broadcast %cst_53 : f32 to vector<8x1xf32>
    %44 = arith.divf %42, %43 : vector<8x1xf32>
    %cst_54 = arith.constant 9.99999974E-6 : f32
    %45 = vector.broadcast %cst_54 : f32 to vector<8x1xf32>
    %46 = arith.addf %44, %45 : vector<8x1xf32>
    %47 = math.rsqrt %46 : vector<8x1xf32>
    %48 = arith.mulf %32, %47 : vector<8x1xf32>
    %49 = vector.broadcast %37 : vector<8x1xf32> to vector<8x512xf32>
    %50 = arith.subf %31, %49 : vector<8x512xf32>
    %51 = vector.broadcast %48 : vector<8x1xf32> to vector<8x512xf32>
    %52 = arith.mulf %50, %51 : vector<8x512xf32>
    %53 = vector.broadcast %33 : vector<8x1xf32> to vector<8x512xf32>
    %54 = arith.addf %52, %53 : vector<8x512xf32>
    %cst_55 = arith.constant 0.000000e+00 : f32
    %55 = vector.broadcast %cst_55 : f32 to vector<8x512xf32>
    %56 = arith.maximumf %54, %55 : vector<8x512xf32>
    %57 = tpu.transpose %56, [1, 0] : vector<8x512xf32> -> vector<512x8xf32>
    %58 = vector.shape_cast %57 : vector<512x8xf32> to vector<2x16x16x8xf32>
    %59 = arith.truncf %58 : vector<2x16x16x8xf32> to vector<2x16x16x8xbf16>
    %cst_56 = arith.constant 0.000000e+00 : bf16
    %60 = vector.broadcast %cst_56 : bf16 to vector<2x1x18x8xbf16>
    %c0_57 = arith.constant 0 : index
    %c0_58 = arith.constant 0 : index
    %c0_59 = arith.constant 0 : index
    %c0_60 = arith.constant 0 : index
    %61 = vector.load %arg13[%c0_57, %c0_58, %c0_59, %c0_60] : memref<2x18x18x8xbf16, #tpu.memory_space<vmem>>, vector<2x1x18x8xbf16>
    tpu.vector_store %arg13[%c0_57, %c0_58, %c0_59, %c0_60], %60 {strides = array<i32>} : memref<2x18x18x8xbf16, #tpu.memory_space<vmem>>, vector<2x1x18x8xbf16>,
    %c0_61 = arith.constant 0 : index
    %c17_62 = arith.constant 17 : index
    %c0_63 = arith.constant 0 : index
    %c0_64 = arith.constant 0 : index
    %62 = vector.load %arg13[%c0_61, %c17_62, %c0_63, %c0_64] : memref<2x18x18x8xbf16, #tpu.memory_space<vmem>>, vector<2x1x18x8xbf16>
    tpu.vector_store %arg13[%c0_61, %c17_62, %c0_63, %c0_64], %60 {strides = array<i32>} : memref<2x18x18x8xbf16, #tpu.memory_space<vmem>>, vector<2x1x18x8xbf16>,
    %cst_65 = arith.constant 0.000000e+00 : bf16
    %63 = vector.broadcast %cst_65 : bf16 to vector<2x16x1x8xbf16>
    %c0_66 = arith.constant 0 : index
    %c1_67 = arith.constant 1 : index
    %c0_68 = arith.constant 0 : index
    %c0_69 = arith.constant 0 : index
    %64 = vector.load %arg13[%c0_66, %c1_67, %c0_68, %c0_69] : memref<2x18x18x8xbf16, #tpu.memory_space<vmem>>, vector<2x16x1x8xbf16>
    tpu.vector_store %arg13[%c0_66, %c1_67, %c0_68, %c0_69], %63 {strides = array<i32>} : memref<2x18x18x8xbf16, #tpu.memory_space<vmem>>, vector<2x16x1x8xbf16>,
    %c0_70 = arith.constant 0 : index
    %c1_71 = arith.constant 1 : index
    %c17_72 = arith.constant 17 : index
    %c0_73 = arith.constant 0 : index
    %65 = vector.load %arg13[%c0_70, %c1_71, %c17_72, %c0_73] : memref<2x18x18x8xbf16, #tpu.memory_space<vmem>>, vector<2x16x1x8xbf16>
    tpu.vector_store %arg13[%c0_70, %c1_71, %c17_72, %c0_73], %63 {strides = array<i32>} : memref<2x18x18x8xbf16, #tpu.memory_space<vmem>>, vector<2x16x1x8xbf16>,
    %c0_74 = arith.constant 0 : index
    %c1_75 = arith.constant 1 : index
    %c1_76 = arith.constant 1 : index
    %c0_77 = arith.constant 0 : index
    %66 = vector.load %arg13[%c0_74, %c1_75, %c1_76, %c0_77] : memref<2x18x18x8xbf16, #tpu.memory_space<vmem>>, vector<2x16x16x8xbf16>
    tpu.vector_store %arg13[%c0_74, %c1_75, %c1_76, %c0_77], %59 {strides = array<i32>} : memref<2x18x18x8xbf16, #tpu.memory_space<vmem>>, vector<2x16x16x8xbf16>,
    %c0_78 = arith.constant 0 : index
    %c0_79 = arith.constant 0 : index
    %c0_80 = arith.constant 0 : index
    %c0_81 = arith.constant 0 : index
    %67 = vector.load %arg13[%c0_78, %c0_79, %c0_80, %c0_81] : memref<2x18x18x8xbf16, #tpu.memory_space<vmem>>, vector<2x18x16x8xbf16>
    %c0_82 = arith.constant 0 : index
    %c0_83 = arith.constant 0 : index
    %c1_84 = arith.constant 1 : index
    %c0_85 = arith.constant 0 : index
    %68 = vector.load %arg13[%c0_82, %c0_83, %c1_84, %c0_85] : memref<2x18x18x8xbf16, #tpu.memory_space<vmem>>, vector<2x18x16x8xbf16>
    %c0_86 = arith.constant 0 : index
    %c0_87 = arith.constant 0 : index
    %c2_88 = arith.constant 2 : index
    %c0_89 = arith.constant 0 : index
    %69 = vector.load %arg13[%c0_86, %c0_87, %c2_88, %c0_89] : memref<2x18x18x8xbf16, #tpu.memory_space<vmem>>, vector<2x18x16x8xbf16>
    %70 = tpu.concatenate %67, %68, %69 in 3 : vector<2x18x16x8xbf16>, vector<2x18x16x8xbf16>, vector<2x18x16x8xbf16> -> vector<2x18x16x24xbf16>
    %cst_90 = arith.constant 0.000000e+00 : f32
    %71 = vector.broadcast %cst_90 : f32 to vector<8x512xf32>
    %72 = vector.extract_strided_slice %70 {offsets = [0, 0, 0, 0], sizes = [2, 16, 16, 24], strides = [1, 1, 1, 1]} : vector<2x18x16x24xbf16> to vector<2x16x16x24xbf16>
    %73 = vector.shape_cast %72 : vector<2x16x16x24xbf16> to vector<512x24xbf16>
    %c0_91 = arith.constant 0 : index
    %c0_92 = arith.constant 0 : index
    %c0_93 = arith.constant 0 : index
    %74 = vector.load %arg5[%c0_91, %c0_92, %c0_93] : memref<3x8x24xbf16, #tpu.memory_space<vmem>>, vector<1x8x24xbf16>
    %75 = vector.shape_cast %74 : vector<1x8x24xbf16> to vector<8x24xbf16>
    %cst_94 = arith.constant dense<0.000000e+00> : vector<8x512xf32>
    %76 = tpu.matmul %75, %73, %cst_94 {dimension_numbers = #tpu.dot_dimension_numbers<[1], [1], [0], [0], [0, 0, 1, 0], [], []>} : vector<8x24xbf16>, vector<512x24xbf16>, vector<8x512xf32> -> vector<8x512xf32>
    %77 = arith.addf %71, %76 : vector<8x512xf32>
    %78 = vector.extract_strided_slice %70 {offsets = [0, 1, 0, 0], sizes = [2, 16, 16, 24], strides = [1, 1, 1, 1]} : vector<2x18x16x24xbf16> to vector<2x16x16x24xbf16>
    %79 = vector.shape_cast %78 : vector<2x16x16x24xbf16> to vector<512x24xbf16>
    %c1_95 = arith.constant 1 : index
    %c0_96 = arith.constant 0 : index
    %c0_97 = arith.constant 0 : index
    %80 = vector.load %arg5[%c1_95, %c0_96, %c0_97] : memref<3x8x24xbf16, #tpu.memory_space<vmem>>, vector<1x8x24xbf16>
    %81 = vector.shape_cast %80 : vector<1x8x24xbf16> to vector<8x24xbf16>
    %cst_98 = arith.constant dense<0.000000e+00> : vector<8x512xf32>
    %82 = tpu.matmul %81, %79, %cst_98 {dimension_numbers = #tpu.dot_dimension_numbers<[1], [1], [0], [0], [0, 0, 1, 0], [], []>} : vector<8x24xbf16>, vector<512x24xbf16>, vector<8x512xf32> -> vector<8x512xf32>
    %83 = arith.addf %77, %82 : vector<8x512xf32>
    %84 = vector.extract_strided_slice %70 {offsets = [0, 2, 0, 0], sizes = [2, 16, 16, 24], strides = [1, 1, 1, 1]} : vector<2x18x16x24xbf16> to vector<2x16x16x24xbf16>
    %85 = vector.shape_cast %84 : vector<2x16x16x24xbf16> to vector<512x24xbf16>
    %c2_99 = arith.constant 2 : index
    %c0_100 = arith.constant 0 : index
    %c0_101 = arith.constant 0 : index
    %86 = vector.load %arg5[%c2_99, %c0_100, %c0_101] : memref<3x8x24xbf16, #tpu.memory_space<vmem>>, vector<1x8x24xbf16>
    %87 = vector.shape_cast %86 : vector<1x8x24xbf16> to vector<8x24xbf16>
    %cst_102 = arith.constant dense<0.000000e+00> : vector<8x512xf32>
    %88 = tpu.matmul %87, %85, %cst_102 {dimension_numbers = #tpu.dot_dimension_numbers<[1], [1], [0], [0], [0, 0, 1, 0], [], []>} : vector<8x24xbf16>, vector<512x24xbf16>, vector<8x512xf32> -> vector<8x512xf32>
    %89 = arith.addf %83, %88 : vector<8x512xf32>
    %c0_103 = arith.constant 0 : index
    %c0_104 = arith.constant 0 : index
    %90 = vector.load %arg6[%c0_103, %c0_104] : memref<8x1xf32, #tpu.memory_space<vmem>>, vector<8x1xf32>
    %c0_105 = arith.constant 0 : index
    %c0_106 = arith.constant 0 : index
    %91 = vector.load %arg7[%c0_105, %c0_106] : memref<8x1xf32, #tpu.memory_space<vmem>>, vector<8x1xf32>
    %cst_107 = arith.constant dense<0.000000e+00> : vector<8xf32>
    %92 = vector.multi_reduction <add>, %89, %cst_107 [1] : vector<8x512xf32> to vector<8xf32>
    %93 = vector.shape_cast %92 : vector<8xf32> to vector<8x1xf32>
    %cst_108 = arith.constant 5.120000e+02 : f32
    %94 = vector.broadcast %cst_108 : f32 to vector<8x1xf32>
    %95 = arith.divf %93, %94 : vector<8x1xf32>
    %96 = vector.broadcast %95 : vector<8x1xf32> to vector<8x512xf32>
    %97 = arith.subf %89, %96 : vector<8x512xf32>
    %98 = arith.mulf %97, %97 : vector<8x512xf32>
    %cst_109 = arith.constant dense<0.000000e+00> : vector<8xf32>
    %99 = vector.multi_reduction <add>, %98, %cst_109 [1] : vector<8x512xf32> to vector<8xf32>
    %100 = vector.shape_cast %99 : vector<8xf32> to vector<8x1xf32>
    %cst_110 = arith.constant 5.120000e+02 : f32
    %101 = vector.broadcast %cst_110 : f32 to vector<8x1xf32>
    %102 = arith.divf %100, %101 : vector<8x1xf32>
    %cst_111 = arith.constant 9.99999974E-6 : f32
    %103 = vector.broadcast %cst_111 : f32 to vector<8x1xf32>
    %104 = arith.addf %102, %103 : vector<8x1xf32>
    %105 = math.rsqrt %104 : vector<8x1xf32>
    %106 = arith.mulf %90, %105 : vector<8x1xf32>
    %107 = vector.broadcast %95 : vector<8x1xf32> to vector<8x512xf32>
    %108 = arith.subf %89, %107 : vector<8x512xf32>
    %109 = vector.broadcast %106 : vector<8x1xf32> to vector<8x512xf32>
    %110 = arith.mulf %108, %109 : vector<8x512xf32>
    %111 = vector.broadcast %91 : vector<8x1xf32> to vector<8x512xf32>
    %112 = arith.addf %110, %111 : vector<8x512xf32>
    %c0_112 = arith.constant 0 : index
    %c0_113 = arith.constant 0 : index
    %c0_114 = arith.constant 0 : index
    %c0_115 = arith.constant 0 : index
    %113 = vector.load %arg1[%c0_112, %c0_113, %c0_114, %c0_115] : memref<2x16x16x4xf32, #tpu.memory_space<vmem>>, vector<2x16x16x4xf32>
    %114 = vector.shape_cast %113 : vector<2x16x16x4xf32> to vector<512x4xf32>
    %115 = arith.truncf %114 : vector<512x4xf32> to vector<512x4xbf16>
    %c0_116 = arith.constant 0 : index
    %c0_117 = arith.constant 0 : index
    %116 = vector.load %arg8[%c0_116, %c0_117] : memref<8x4xbf16, #tpu.memory_space<vmem>>, vector<8x4xbf16>
    %cst_118 = arith.constant dense<0.000000e+00> : vector<8x512xf32>
    %117 = tpu.matmul %116, %115, %cst_118 {dimension_numbers = #tpu.dot_dimension_numbers<[1], [1], [0], [0], [0, 0, 1, 0], [], []>} : vector<8x4xbf16>, vector<512x4xbf16>, vector<8x512xf32> -> vector<8x512xf32>
    %c0_119 = arith.constant 0 : index
    %c0_120 = arith.constant 0 : index
    %118 = vector.load %arg9[%c0_119, %c0_120] : memref<8x1xf32, #tpu.memory_space<vmem>>, vector<8x1xf32>
    %c0_121 = arith.constant 0 : index
    %c0_122 = arith.constant 0 : index
    %119 = vector.load %arg10[%c0_121, %c0_122] : memref<8x1xf32, #tpu.memory_space<vmem>>, vector<8x1xf32>
    %cst_123 = arith.constant dense<0.000000e+00> : vector<8xf32>
    %120 = vector.multi_reduction <add>, %117, %cst_123 [1] : vector<8x512xf32> to vector<8xf32>
    %121 = vector.shape_cast %120 : vector<8xf32> to vector<8x1xf32>
    %cst_124 = arith.constant 5.120000e+02 : f32
    %122 = vector.broadcast %cst_124 : f32 to vector<8x1xf32>
    %123 = arith.divf %121, %122 : vector<8x1xf32>
    %124 = vector.broadcast %123 : vector<8x1xf32> to vector<8x512xf32>
    %125 = arith.subf %117, %124 : vector<8x512xf32>
    %126 = arith.mulf %125, %125 : vector<8x512xf32>
    %cst_125 = arith.constant dense<0.000000e+00> : vector<8xf32>
    %127 = vector.multi_reduction <add>, %126, %cst_125 [1] : vector<8x512xf32> to vector<8xf32>
    %128 = vector.shape_cast %127 : vector<8xf32> to vector<8x1xf32>
    %cst_126 = arith.constant 5.120000e+02 : f32
    %129 = vector.broadcast %cst_126 : f32 to vector<8x1xf32>
    %130 = arith.divf %128, %129 : vector<8x1xf32>
    %cst_127 = arith.constant 9.99999974E-6 : f32
    %131 = vector.broadcast %cst_127 : f32 to vector<8x1xf32>
    %132 = arith.addf %130, %131 : vector<8x1xf32>
    %133 = math.rsqrt %132 : vector<8x1xf32>
    %134 = arith.mulf %118, %133 : vector<8x1xf32>
    %135 = vector.broadcast %123 : vector<8x1xf32> to vector<8x512xf32>
    %136 = arith.subf %117, %135 : vector<8x512xf32>
    %137 = vector.broadcast %134 : vector<8x1xf32> to vector<8x512xf32>
    %138 = arith.mulf %136, %137 : vector<8x512xf32>
    %139 = vector.broadcast %119 : vector<8x1xf32> to vector<8x512xf32>
    %140 = arith.addf %138, %139 : vector<8x512xf32>
    %141 = arith.addf %112, %140 : vector<8x512xf32>
    %cst_128 = arith.constant 0.000000e+00 : f32
    %142 = vector.broadcast %cst_128 : f32 to vector<8x512xf32>
    %143 = arith.maximumf %141, %142 : vector<8x512xf32>
    %c0_129 = arith.constant 0 : index
    %c0_130 = arith.constant 0 : index
    %144 = vector.load %arg11[%c0_129, %c0_130] : memref<8x512xf32, #tpu.memory_space<vmem>>, vector<8x512xf32>
    tpu.vector_store %arg11[%c0_129, %c0_130], %143 {strides = array<i32>} : memref<8x512xf32, #tpu.memory_space<vmem>>, vector<8x512xf32>,
    return
  }
  func.func @transform_0(%arg0: i32) -> (i32, i32, i32, i32) {
    %c0_i32 = arith.constant 0 : i32
    %c0_i32_0 = arith.constant 0 : i32
    %c0_i32_1 = arith.constant 0 : i32
    %c0_i32_2 = arith.constant 0 : i32
    %c0_i32_3 = arith.constant 0 : i32
    return %c0_i32, %c0_i32_0, %c0_i32_1, %c0_i32_2 : i32, i32, i32, i32
  }
  func.func @transform_1(%arg0: i32) -> (i32, i32, i32) {
    %c0_i32 = arith.constant 0 : i32
    %c0_i32_0 = arith.constant 0 : i32
    %c0_i32_1 = arith.constant 0 : i32
    %c0_i32_2 = arith.constant 0 : i32
    return %c0_i32, %c0_i32_0, %c0_i32_1 : i32, i32, i32
  }
  func.func @transform_2(%arg0: i32) -> (i32, i32) {
    %c0_i32 = arith.constant 0 : i32
    %c0_i32_0 = arith.constant 0 : i32
    %c0_i32_1 = arith.constant 0 : i32
    return %c0_i32, %c0_i32_0 : i32, i32
  }
  func.func @transform_3(%arg0: i32) -> (i32, i32) {
    %c0_i32 = arith.constant 0 : i32
    %c0_i32_0 = arith.constant 0 : i32
    %c0_i32_1 = arith.constant 0 : i32
    return %c0_i32, %c0_i32_0 : i32, i32
  }
  func.func @transform_4(%arg0: i32) -> (i32, i32, i32) {
    %c0_i32 = arith.constant 0 : i32
    %c0_i32_0 = arith.constant 0 : i32
    %c0_i32_1 = arith.constant 0 : i32
    %c0_i32_2 = arith.constant 0 : i32
    return %c0_i32, %c0_i32_0, %c0_i32_1 : i32, i32, i32
  }
  func.func @transform_5(%arg0: i32) -> (i32, i32) {
    %c0_i32 = arith.constant 0 : i32
    %c0_i32_0 = arith.constant 0 : i32
    %c0_i32_1 = arith.constant 0 : i32
    return %c0_i32, %c0_i32_0 : i32, i32
  }
  func.func @transform_6(%arg0: i32) -> (i32, i32) {
    %c0_i32 = arith.constant 0 : i32
    %c0_i32_0 = arith.constant 0 : i32
    %c0_i32_1 = arith.constant 0 : i32
    return %c0_i32, %c0_i32_0 : i32, i32
  }
  func.func @transform_7(%arg0: i32) -> (i32, i32) {
    %c0_i32 = arith.constant 0 : i32
    %c0_i32_0 = arith.constant 0 : i32
    %c0_i32_1 = arith.constant 0 : i32
    return %c0_i32, %c0_i32_0 : i32, i32
  }
  func.func @transform_8(%arg0: i32) -> (i32, i32) {
    %c0_i32 = arith.constant 0 : i32
    %c0_i32_0 = arith.constant 0 : i32
    %c0_i32_1 = arith.constant 0 : i32
    return %c0_i32, %c0_i32_0 : i32, i32
  }
  func.func @transform_9(%arg0: i32) -> (i32, i32) {
    %c0_i32 = arith.constant 0 : i32
    %c0_i32_0 = arith.constant 0 : i32
    %c0_i32_1 = arith.constant 0 : i32
    return %c0_i32, %c0_i32_0 : i32, i32
  }
  func.func @transform_10(%arg0: i32) -> (i32, i32) {
    %c0_i32 = arith.constant 0 : i32
    %c0_i32_0 = arith.constant 0 : i32
    %c0_i32_1 = arith.constant 0 : i32
    return %c0_i32, %c0_i32_0 : i32, i32
  }
}

</mosaic_0001>

<llo_original>
// kernel: basic_block_forward.1
$region0: #{basic_block_forward.1}
  #allocation0 [shape = 'u32[]', space=smem, size = 0x4, offset = 0x4, fixed_abs, tag = 'smem constant byte address 0x4 - core index']
  #allocation1 [shape = 'u32[72,128]{1,0:T(1,128)}', space=vmem, size = 0x9000, scoped, tag = 'internal scratch']
  #allocation2 [shape = 'bf16[2,18,18,4]{3,2,1,0:T(8,128)(2,1)}', space=vmem, size = 0x36000, scoped, tag = 'scratch operand']
  #allocation3 [shape = 'bf16[2,18,18,8]{3,2,1,0:T(8,128)(2,1)}', space=vmem, size = 0x36000, scoped, tag = 'scratch operand']
  %s0 = inlined_call_operand.vmem [shape: f32[2,16,16,4], index: 0, kind: input, shape index: {}]
  %s1 = inlined_call_operand.vmem [shape: bf16[3,8,12], index: 1, kind: input, shape index: {}]
  %s2 = inlined_call_operand.vmem [shape: f32[8,1], index: 2, kind: input, shape index: {}]
  %s3 = inlined_call_operand.vmem [shape: f32[8,1], index: 3, kind: input, shape index: {}]
  %s4 = inlined_call_operand.vmem [shape: bf16[3,8,24], index: 4, kind: input, shape index: {}]
  %s5 = inlined_call_operand.vmem [shape: f32[8,1], index: 5, kind: input, shape index: {}]
  %s6 = inlined_call_operand.vmem [shape: f32[8,1], index: 6, kind: input, shape index: {}]
  %s7 = inlined_call_operand.vmem [shape: bf16[8,4], index: 7, kind: input, shape index: {}]
  %s8 = inlined_call_operand.vmem [shape: f32[8,1], index: 8, kind: input, shape index: {}]
  %s9 = inlined_call_operand.vmem [shape: f32[8,1], index: 9, kind: input, shape index: {}]
  %s10 = inlined_call_operand.vmem [shape: f32[8,512], index: 10, kind: output, shape index: {}]
  %s11 = sld [smem:[#allocation0]]
  $region50: #{basic_block_forward.1} parent=0
    _
  %s13 = ssub.s32 1, %s11
  %s14 = scalar_select 0, %s13, %s11
  // Predicated region
  $region2: #{basic_block_forward.1} parent=0 // pred_check
    _
  $region3: #{basic_block_forward.1} parent=0 // pred_check_branch
    %16 = sbr.rel (0) target = $region5
  $region4: #{basic_block_forward.1} parent=0 // pred_region
    _
  $region5: #{basic_block_forward.1} parent=0 // pred_fallthru
    _
  // Predicated region
  $region6: #{basic_block_forward.1} parent=0 // pred_check
    _
  $region7: #{basic_block_forward.1} parent=0 // pred_check_branch
    %18 = sbr.rel (0) target = $region9
  $region8: #{basic_block_forward.1} parent=0 // pred_region
    _
  $region9: #{basic_block_forward.1} parent=0 // pred_fallthru
    _
  // Predicated region
  $region10: #{basic_block_forward.1} parent=0 // pred_check
    _
  $region11: #{basic_block_forward.1} parent=0 // pred_check_branch
    %20 = sbr.rel (0) target = $region13
  $region12: #{basic_block_forward.1} parent=0 // pred_region
    _
  $region13: #{basic_block_forward.1} parent=0 // pred_fallthru
    _
  // Predicated region
  $region14: #{basic_block_forward.1} parent=0 // pred_check
    _
  $region15: #{basic_block_forward.1} parent=0 // pred_check_branch
    %22 = sbr.rel (0) target = $region17
  $region16: #{basic_block_forward.1} parent=0 // pred_region
    _
  $region17: #{basic_block_forward.1} parent=0 // pred_fallthru
    _
  // Predicated region
  $region18: #{basic_block_forward.1} parent=0 // pred_check
    _
  $region19: #{basic_block_forward.1} parent=0 // pred_check_branch
    %24 = sbr.rel (0) target = $region21
  $region20: #{basic_block_forward.1} parent=0 // pred_region
    _
  $region21: #{basic_block_forward.1} parent=0 // pred_fallthru
    _
  // Predicated region
  $region22: #{basic_block_forward.1} parent=0 // pred_check
    _
  $region23: #{basic_block_forward.1} parent=0 // pred_check_branch
    %26 = sbr.rel (0) target = $region25
  $region24: #{basic_block_forward.1} parent=0 // pred_region
    _
  $region25: #{basic_block_forward.1} parent=0 // pred_fallthru
    _
  // Predicated region
  $region26: #{basic_block_forward.1} parent=0 // pred_check
    _
  $region27: #{basic_block_forward.1} parent=0 // pred_check_branch
    %28 = sbr.rel (0) target = $region29
  $region28: #{basic_block_forward.1} parent=0 // pred_region
    _
  $region29: #{basic_block_forward.1} parent=0 // pred_fallthru
    _
  // Predicated region
  $region30: #{basic_block_forward.1} parent=0 // pred_check
    _
  $region31: #{basic_block_forward.1} parent=0 // pred_check_branch
    %30 = sbr.rel (0) target = $region33
  $region32: #{basic_block_forward.1} parent=0 // pred_region
    _
  $region33: #{basic_block_forward.1} parent=0 // pred_fallthru
    _
  // Predicated region
  $region34: #{basic_block_forward.1} parent=0 // pred_check
    _
  $region35: #{basic_block_forward.1} parent=0 // pred_check_branch
    %32 = sbr.rel (0) target = $region37
  $region36: #{basic_block_forward.1} parent=0 // pred_region
    _
  $region37: #{basic_block_forward.1} parent=0 // pred_fallthru
    _
  // Predicated region
  $region38: #{basic_block_forward.1} parent=0 // pred_check
    _
  $region39: #{basic_block_forward.1} parent=0 // pred_check_branch
    %34 = sbr.rel (0) target = $region41
  $region40: #{basic_block_forward.1} parent=0 // pred_region
    _
  $region41: #{basic_block_forward.1} parent=0 // pred_fallthru
    _
  %v36 = vld [vmem:[%s0] sm:$0xff]
  %v37 = vld [vmem:[%s0 + $0x8] sm:$0xff]
  %v38 = vld [vmem:[%s0 + $0x10] sm:$0xff]
  %v39 = vld [vmem:[%s0 + $0x18] sm:$0xff]
  %v40 = vld [vmem:[%s0 + $0x20] sm:$0xff]
  %v41 = vld [vmem:[%s0 + $0x28] sm:$0xff]
  %v42 = vld [vmem:[%s0 + $0x30] sm:$0xff]
  %v43 = vld [vmem:[%s0 + $0x38] sm:$0xff]
  %v44 = vld [vmem:[%s0 + $0x40] sm:$0xff]
  %v45 = vld [vmem:[%s0 + $0x48] sm:$0xff]
  %v46 = vld [vmem:[%s0 + $0x50] sm:$0xff]
  %v47 = vld [vmem:[%s0 + $0x58] sm:$0xff]
  %v48 = vld [vmem:[%s0 + $0x60] sm:$0xff]
  %v49 = vld [vmem:[%s0 + $0x68] sm:$0xff]
  %v50 = vld [vmem:[%s0 + $0x70] sm:$0xff]
  %v51 = vld [vmem:[%s0 + $0x78] sm:$0xff]
  %v52 = vld [vmem:[%s0 + $0x80] sm:$0xff]
  %v53 = vld [vmem:[%s0 + $0x88] sm:$0xff]
  %v54 = vld [vmem:[%s0 + $0x90] sm:$0xff]
  %v55 = vld [vmem:[%s0 + $0x98] sm:$0xff]
  %v56 = vld [vmem:[%s0 + $0xa0] sm:$0xff]
  %v57 = vld [vmem:[%s0 + $0xa8] sm:$0xff]
  %v58 = vld [vmem:[%s0 + $0xb0] sm:$0xff]
  %v59 = vld [vmem:[%s0 + $0xb8] sm:$0xff]
  %v60 = vld [vmem:[%s0 + $0xc0] sm:$0xff]
  %v61 = vld [vmem:[%s0 + $0xc8] sm:$0xff]
  %v62 = vld [vmem:[%s0 + $0xd0] sm:$0xff]
  %v63 = vld [vmem:[%s0 + $0xd8] sm:$0xff]
  %v64 = vld [vmem:[%s0 + $0xe0] sm:$0xff]
  %v65 = vld [vmem:[%s0 + $0xe8] sm:$0xff]
  %v66 = vld [vmem:[%s0 + $0xf0] sm:$0xff]
  %v67 = vld [vmem:[%s0 + $0xf8] sm:$0xff]
  %v68 = vld [vmem:[%s0 + $0x100] sm:$0xff]
  %v69 = vld [vmem:[%s0 + $0x108] sm:$0xff]
  %v70 = vld [vmem:[%s0 + $0x110] sm:$0xff]
  %v71 = vld [vmem:[%s0 + $0x118] sm:$0xff]
  %v72 = vld [vmem:[%s0 + $0x120] sm:$0xff]
  %v73 = vld [vmem:[%s0 + $0x128] sm:$0xff]
  %v74 = vld [vmem:[%s0 + $0x130] sm:$0xff]
  %v75 = vld [vmem:[%s0 + $0x138] sm:$0xff]
  %v76 = vld [vmem:[%s0 + $0x140] sm:$0xff]
  %v77 = vld [vmem:[%s0 + $0x148] sm:$0xff]
  %v78 = vld [vmem:[%s0 + $0x150] sm:$0xff]
  %v79 = vld [vmem:[%s0 + $0x158] sm:$0xff]
  %v80 = vld [vmem:[%s0 + $0x160] sm:$0xff]
  %v81 = vld [vmem:[%s0 + $0x168] sm:$0xff]
  %v82 = vld [vmem:[%s0 + $0x170] sm:$0xff]
  %v83 = vld [vmem:[%s0 + $0x178] sm:$0xff]
  %v84 = vld [vmem:[%s0 + $0x180] sm:$0xff]
  %v85 = vld [vmem:[%s0 + $0x188] sm:$0xff]
  %v86 = vld [vmem:[%s0 + $0x190] sm:$0xff]
  %v87 = vld [vmem:[%s0 + $0x198] sm:$0xff]
  %v88 = vld [vmem:[%s0 + $0x1a0] sm:$0xff]
  %v89 = vld [vmem:[%s0 + $0x1a8] sm:$0xff]
  %v90 = vld [vmem:[%s0 + $0x1b0] sm:$0xff]
  %v91 = vld [vmem:[%s0 + $0x1b8] sm:$0xff]
  %v92 = vld [vmem:[%s0 + $0x1c0] sm:$0xff]
  %v93 = vld [vmem:[%s0 + $0x1c8] sm:$0xff]
  %v94 = vld [vmem:[%s0 + $0x1d0] sm:$0xff]
  %v95 = vld [vmem:[%s0 + $0x1d8] sm:$0xff]
  %v96 = vld [vmem:[%s0 + $0x1e0] sm:$0xff]
  %v97 = vld [vmem:[%s0 + $0x1e8] sm:$0xff]
  %v98 = vld [vmem:[%s0 + $0x1f0] sm:$0xff]
  %v99 = vld [vmem:[%s0 + $0x1f8] sm:$0xff]
  %v100 = vpack.c.bf16 %v36, %v36
  %v101 = vpack.c.bf16 %v37, %v37
  %v102 = vpack.c.bf16 %v38, %v38
  %v103 = vpack.c.bf16 %v39, %v39
  %v104 = vpack.c.bf16 %v40, %v40
  %v105 = vpack.c.bf16 %v41, %v41
  %v106 = vpack.c.bf16 %v42, %v42
  %v107 = vpack.c.bf16 %v43, %v43
  %v108 = vpack.c.bf16 %v44, %v44
  %v109 = vpack.c.bf16 %v45, %v45
  %v110 = vpack.c.bf16 %v46, %v46
  %v111 = vpack.c.bf16 %v47, %v47
  %v112 = vpack.c.bf16 %v48, %v48
  %v113 = vpack.c.bf16 %v49, %v49
  %v114 = vpack.c.bf16 %v50, %v50
  %v115 = vpack.c.bf16 %v51, %v51
  %v116 = vpack.c.bf16 %v52, %v52
  %v117 = vpack.c.bf16 %v53, %v53
  %v118 = vpack.c.bf16 %v54, %v54
  %v119 = vpack.c.bf16 %v55, %v55
  %v120 = vpack.c.bf16 %v56, %v56
  %v121 = vpack.c.bf16 %v57, %v57
  %v122 = vpack.c.bf16 %v58, %v58
  %v123 = vpack.c.bf16 %v59, %v59
  %v124 = vpack.c.bf16 %v60, %v60
  %v125 = vpack.c.bf16 %v61, %v61
  %v126 = vpack.c.bf16 %v62, %v62
  %v127 = vpack.c.bf16 %v63, %v63
  %v128 = vpack.c.bf16 %v64, %v64
  %v129 = vpack.c.bf16 %v65, %v65
  %v130 = vpack.c.bf16 %v66, %v66
  %v131 = vpack.c.bf16 %v67, %v67
  %v132 = vpack.c.bf16 %v68, %v68
  %v133 = vpack.c.bf16 %v69, %v69
  %v134 = vpack.c.bf16 %v70, %v70
  %v135 = vpack.c.bf16 %v71, %v71
  %v136 = vpack.c.bf16 %v72, %v72
  %v137 = vpack.c.bf16 %v73, %v73
  %v138 = vpack.c.bf16 %v74, %v74
  %v139 = vpack.c.bf16 %v75, %v75
  %v140 = vpack.c.bf16 %v76, %v76
  %v141 = vpack.c.bf16 %v77, %v77
  %v142 = vpack.c.bf16 %v78, %v78
  %v143 = vpack.c.bf16 %v79, %v79
  %v144 = vpack.c.bf16 %v80, %v80
  %v145 = vpack.c.bf16 %v81, %v81
  %v146 = vpack.c.bf16 %v82, %v82
  %v147 = vpack.c.bf16 %v83, %v83
  %v148 = vpack.c.bf16 %v84, %v84
  %v149 = vpack.c.bf16 %v85, %v85
  %v150 = vpack.c.bf16 %v86, %v86
  %v151 = vpack.c.bf16 %v87, %v87
  %v152 = vpack.c.bf16 %v88, %v88
  %v153 = vpack.c.bf16 %v89, %v89
  %v154 = vpack.c.bf16 %v90, %v90
  %v155 = vpack.c.bf16 %v91, %v91
  %v156 = vpack.c.bf16 %v92, %v92
  %v157 = vpack.c.bf16 %v93, %v93
  %v158 = vpack.c.bf16 %v94, %v94
  %v159 = vpack.c.bf16 %v95, %v95
  %v160 = vpack.c.bf16 %v96, %v96
  %v161 = vpack.c.bf16 %v97, %v97
  %v162 = vpack.c.bf16 %v98, %v98
  %v163 = vpack.c.bf16 %v99, %v99
  %vm164 = vcmask 27648
  %165 = vst.msk [vmem:[#allocation2] sm:$0xf] %vm164, 0
  %166 = vst.msk [vmem:[#allocation2 + $0x4] sm:$0xf] %vm164, 0
  %vm167 = vcmask 24576
  %168 = vst.msk [vmem:[#allocation2 + $0x8] sm:$0x1] %vm167, 0
  %169 = vst.msk [vmem:[#allocation2 + $0xd8] sm:$0xf] %vm164, 0
  %170 = vst.msk [vmem:[#allocation2 + $0xdc] sm:$0xf] %vm164, 0
  %171 = vst.msk [vmem:[#allocation2 + $0xe0] sm:$0x1] %vm167, 0
  %s172 = scalar_lea.vmem [#allocation2], 204
  %173 = vst.msk [vmem:[%s172] sm:$0xf] %vm164, 0
  %174 = vst.msk [vmem:[%s172 + $0x4] sm:$0xf] %vm164, 0
  %175 = vst.msk [vmem:[%s172 + $0x8] sm:$0x1] %vm167, 0
  %176 = vst.msk [vmem:[%s172 + $0xd8] sm:$0xf] %vm164, 0
  %177 = vst.msk [vmem:[%s172 + $0xdc] sm:$0xf] %vm164, 0
  %178 = vst.msk [vmem:[%s172 + $0xe0] sm:$0x1] %vm167, 0
  %s179 = scalar_lea.vmem [#allocation2], 12
  %vm180 = vcmask 24576
  %vm181 = vsmask.f32 256
  %vm182 = vmand %vm180, %vm181
  %v183 = vld [vmem:[%s179] sm:$0x1]
  %v184 = vsel %vm182, 0, %v183
  %185 = vst [vmem:[%s179] sm:$0x1] %v184
  %v186 = vld [vmem:[%s179 + $0xc] sm:$0x1]
  %v187 = vsel %vm182, 0, %v186
  %188 = vst [vmem:[%s179 + $0xc] sm:$0x1] %v187
  %v189 = vld [vmem:[%s179 + $0x18] sm:$0x1]
  %v190 = vsel %vm182, 0, %v189
  %191 = vst [vmem:[%s179 + $0x18] sm:$0x1] %v190
  %v192 = vld [vmem:[%s179 + $0x24] sm:$0x1]
  %v193 = vsel %vm182, 0, %v192
  %194 = vst [vmem:[%s179 + $0x24] sm:$0x1] %v193
  %v195 = vld [vmem:[%s179 + $0x30] sm:$0x1]
  %v196 = vsel %vm182, 0, %v195
  %197 = vst [vmem:[%s179 + $0x30] sm:$0x1] %v196
  %v198 = vld [vmem:[%s179 + $0x3c] sm:$0x1]
  %v199 = vsel %vm182, 0, %v198
  %200 = vst [vmem:[%s179 + $0x3c] sm:$0x1] %v199
  %v201 = vld [vmem:[%s179 + $0x48] sm:$0x1]
  %v202 = vsel %vm182, 0, %v201
  %203 = vst [vmem:[%s179 + $0x48] sm:$0x1] %v202
  %v204 = vld [vmem:[%s179 + $0x54] sm:$0x1]
  %v205 = vsel %vm182, 0, %v204
  %206 = vst [vmem:[%s179 + $0x54] sm:$0x1] %v205
  %v207 = vld [vmem:[%s179 + $0x60] sm:$0x1]
  %v208 = vsel %vm182, 0, %v207
  %209 = vst [vmem:[%s179 + $0x60] sm:$0x1] %v208
  %v210 = vld [vmem:[%s179 + $0x6c] sm:$0x1]
  %v211 = vsel %vm182, 0, %v210
  %212 = vst [vmem:[%s179 + $0x6c] sm:$0x1] %v211
  %v213 = vld [vmem:[%s179 + $0x78] sm:$0x1]
  %v214 = vsel %vm182, 0, %v213
  %215 = vst [vmem:[%s179 + $0x78] sm:$0x1] %v214
  %v216 = vld [vmem:[%s179 + $0x84] sm:$0x1]
  %v217 = vsel %vm182, 0, %v216
  %218 = vst [vmem:[%s179 + $0x84] sm:$0x1] %v217
  %v219 = vld [vmem:[%s179 + $0x90] sm:$0x1]
  %v220 = vsel %vm182, 0, %v219
  %221 = vst [vmem:[%s179 + $0x90] sm:$0x1] %v220
  %v222 = vld [vmem:[%s179 + $0x9c] sm:$0x1]
  %v223 = vsel %vm182, 0, %v222
  %224 = vst [vmem:[%s179 + $0x9c] sm:$0x1] %v223
  %v225 = vld [vmem:[%s179 + $0xa8] sm:$0x1]
  %v226 = vsel %vm182, 0, %v225
  %227 = vst [vmem:[%s179 + $0xa8] sm:$0x1] %v226
  %v228 = vld [vmem:[%s179 + $0xb4] sm:$0x1]
  %v229 = vsel %vm182, 0, %v228
  %230 = vst [vmem:[%s179 + $0xb4] sm:$0x1] %v229
  %v231 = vld [vmem:[%s179 + $0xd8] sm:$0x1]
  %v232 = vsel %vm182, 0, %v231
  %233 = vst [vmem:[%s179 + $0xd8] sm:$0x1] %v232
  %v234 = vld [vmem:[%s179 + $0xe4] sm:$0x1]
  %v235 = vsel %vm182, 0, %v234
  %236 = vst [vmem:[%s179 + $0xe4] sm:$0x1] %v235
  %v237 = vld [vmem:[%s179 + $0xf0] sm:$0x1]
  %v238 = vsel %vm182, 0, %v237
  %239 = vst [vmem:[%s179 + $0xf0] sm:$0x1] %v238
  %v240 = vld [vmem:[%s179 + $0xfc] sm:$0x1]
  %v241 = vsel %vm182, 0, %v240
  %242 = vst [vmem:[%s179 + $0xfc] sm:$0x1] %v241
  %v243 = vld [vmem:[%s179 + $0x108] sm:$0x1]
  %v244 = vsel %vm182, 0, %v243
  %245 = vst [vmem:[%s179 + $0x108] sm:$0x1] %v244
  %v246 = vld [vmem:[%s179 + $0x114] sm:$0x1]
  %v247 = vsel %vm182, 0, %v246
  %248 = vst [vmem:[%s179 + $0x114] sm:$0x1] %v247
  %v249 = vld [vmem:[%s179 + $0x120] sm:$0x1]
  %v250 = vsel %vm182, 0, %v249
  %251 = vst [vmem:[%s179 + $0x120] sm:$0x1] %v250
  %v252 = vld [vmem:[%s179 + $0x12c] sm:$0x1]
  %v253 = vsel %vm182, 0, %v252
  %254 = vst [vmem:[%s179 + $0x12c] sm:$0x1] %v253
  %v255 = vld [vmem:[%s179 + $0x138] sm:$0x1]
  %v256 = vsel %vm182, 0, %v255
  %257 = vst [vmem:[%s179 + $0x138] sm:$0x1] %v256
  %v258 = vld [vmem:[%s179 + $0x144] sm:$0x1]
  %v259 = vsel %vm182, 0, %v258
  %260 = vst [vmem:[%s179 + $0x144] sm:$0x1] %v259
  %v261 = vld [vmem:[%s179 + $0x150] sm:$0x1]
  %v262 = vsel %vm182, 0, %v261
  %263 = vst [vmem:[%s179 + $0x150] sm:$0x1] %v262
  %v264 = vld [vmem:[%s179 + $0x15c] sm:$0x1]
  %v265 = vsel %vm182, 0, %v264
  %266 = vst [vmem:[%s179 + $0x15c] sm:$0x1] %v265
  %v267 = vld [vmem:[%s179 + $0x168] sm:$0x1]
  %v268 = vsel %vm182, 0, %v267
  %269 = vst [vmem:[%s179 + $0x168] sm:$0x1] %v268
  %v270 = vld [vmem:[%s179 + $0x174] sm:$0x1]
  %v271 = vsel %vm182, 0, %v270
  %272 = vst [vmem:[%s179 + $0x174] sm:$0x1] %v271
  %v273 = vld [vmem:[%s179 + $0x180] sm:$0x1]
  %v274 = vsel %vm182, 0, %v273
  %275 = vst [vmem:[%s179 + $0x180] sm:$0x1] %v274
  %v276 = vld [vmem:[%s179 + $0x18c] sm:$0x1]
  %v277 = vsel %vm182, 0, %v276
  %278 = vst [vmem:[%s179 + $0x18c] sm:$0x1] %v277
  %vm279 = vsmask.f32 7938
  %vm280 = vmand %vm180, %vm279
  %v281 = vld [vmem:[%s179 + $0x8] sm:$0x1]
  %v282 = vsel %vm280, 0, %v281
  %283 = vst [vmem:[%s179 + $0x8] sm:$0x1] %v282
  %v284 = vld [vmem:[%s179 + $0x14] sm:$0x1]
  %v285 = vsel %vm280, 0, %v284
  %286 = vst [vmem:[%s179 + $0x14] sm:$0x1] %v285
  %v287 = vld [vmem:[%s179 + $0x20] sm:$0x1]
  %v288 = vsel %vm280, 0, %v287
  %289 = vst [vmem:[%s179 + $0x20] sm:$0x1] %v288
  %v290 = vld [vmem:[%s179 + $0x2c] sm:$0x1]
  %v291 = vsel %vm280, 0, %v290
  %292 = vst [vmem:[%s179 + $0x2c] sm:$0x1] %v291
  %v293 = vld [vmem:[%s179 + $0x38] sm:$0x1]
  %v294 = vsel %vm280, 0, %v293
  %295 = vst [vmem:[%s179 + $0x38] sm:$0x1] %v294
  %v296 = vld [vmem:[%s179 + $0x44] sm:$0x1]
  %v297 = vsel %vm280, 0, %v296
  %298 = vst [vmem:[%s179 + $0x44] sm:$0x1] %v297
  %v299 = vld [vmem:[%s179 + $0x50] sm:$0x1]
  %v300 = vsel %vm280, 0, %v299
  %301 = vst [vmem:[%s179 + $0x50] sm:$0x1] %v300
  %v302 = vld [vmem:[%s179 + $0x5c] sm:$0x1]
  %v303 = vsel %vm280, 0, %v302
  %304 = vst [vmem:[%s179 + $0x5c] sm:$0x1] %v303
  %v305 = vld [vmem:[%s179 + $0x68] sm:$0x1]
  %v306 = vsel %vm280, 0, %v305
  %307 = vst [vmem:[%s179 + $0x68] sm:$0x1] %v306
  %v308 = vld [vmem:[%s179 + $0x74] sm:$0x1]
  %v309 = vsel %vm280, 0, %v308
  %310 = vst [vmem:[%s179 + $0x74] sm:$0x1] %v309
  %v311 = vld [vmem:[%s179 + $0x80] sm:$0x1]
  %v312 = vsel %vm280, 0, %v311
  %313 = vst [vmem:[%s179 + $0x80] sm:$0x1] %v312
  %v314 = vld [vmem:[%s179 + $0x8c] sm:$0x1]
  %v315 = vsel %vm280, 0, %v314
  %316 = vst [vmem:[%s179 + $0x8c] sm:$0x1] %v315
  %v317 = vld [vmem:[%s179 + $0x98] sm:$0x1]
  %v318 = vsel %vm280, 0, %v317
  %319 = vst [vmem:[%s179 + $0x98] sm:$0x1] %v318
  %v320 = vld [vmem:[%s179 + $0xa4] sm:$0x1]
  %v321 = vsel %vm280, 0, %v320
  %322 = vst [vmem:[%s179 + $0xa4] sm:$0x1] %v321
  %v323 = vld [vmem:[%s179 + $0xb0] sm:$0x1]
  %v324 = vsel %vm280, 0, %v323
  %325 = vst [vmem:[%s179 + $0xb0] sm:$0x1] %v324
  %v326 = vld [vmem:[%s179 + $0xbc] sm:$0x1]
  %v327 = vsel %vm280, 0, %v326
  %328 = vst [vmem:[%s179 + $0xbc] sm:$0x1] %v327
  %v329 = vld [vmem:[%s179 + $0xe0] sm:$0x1]
  %v330 = vsel %vm280, 0, %v329
  %331 = vst [vmem:[%s179 + $0xe0] sm:$0x1] %v330
  %v332 = vld [vmem:[%s179 + $0xec] sm:$0x1]
  %v333 = vsel %vm280, 0, %v332
  %334 = vst [vmem:[%s179 + $0xec] sm:$0x1] %v333
  %v335 = vld [vmem:[%s179 + $0xf8] sm:$0x1]
  %v336 = vsel %vm280, 0, %v335
  %337 = vst [vmem:[%s179 + $0xf8] sm:$0x1] %v336
  %v338 = vld [vmem:[%s179 + $0x104] sm:$0x1]
  %v339 = vsel %vm280, 0, %v338
  %340 = vst [vmem:[%s179 + $0x104] sm:$0x1] %v339
  %v341 = vld [vmem:[%s179 + $0x110] sm:$0x1]
  %v342 = vsel %vm280, 0, %v341
  %343 = vst [vmem:[%s179 + $0x110] sm:$0x1] %v342
  %v344 = vld [vmem:[%s179 + $0x11c] sm:$0x1]
  %v345 = vsel %vm280, 0, %v344
  %346 = vst [vmem:[%s179 + $0x11c] sm:$0x1] %v345
  %v347 = vld [vmem:[%s179 + $0x128] sm:$0x1]
  %v348 = vsel %vm280, 0, %v347
  %349 = vst [vmem:[%s179 + $0x128] sm:$0x1] %v348
  %v350 = vld [vmem:[%s179 + $0x134] sm:$0x1]
  %v351 = vsel %vm280, 0, %v350
  %352 = vst [vmem:[%s179 + $0x134] sm:$0x1] %v351
  %v353 = vld [vmem:[%s179 + $0x140] sm:$0x1]
  %v354 = vsel %vm280, 0, %v353
  %355 = vst [vmem:[%s179 + $0x140] sm:$0x1] %v354
  %v356 = vld [vmem:[%s179 + $0x14c] sm:$0x1]
  %v357 = vsel %vm280, 0, %v356
  %358 = vst [vmem:[%s179 + $0x14c] sm:$0x1] %v357
  %v359 = vld [vmem:[%s179 + $0x158] sm:$0x1]
  %v360 = vsel %vm280, 0, %v359
  %361 = vst [vmem:[%s179 + $0x158] sm:$0x1] %v360
  %v362 = vld [vmem:[%s179 + $0x164] sm:$0x1]
  %v363 = vsel %vm280, 0, %v362
  %364 = vst [vmem:[%s179 + $0x164] sm:$0x1] %v363
  %v365 = vld [vmem:[%s179 + $0x170] sm:$0x1]
  %v366 = vsel %vm280, 0, %v365
  %367 = vst [vmem:[%s179 + $0x170] sm:$0x1] %v366
  %v368 = vld [vmem:[%s179 + $0x17c] sm:$0x1]
  %v369 = vsel %vm280, 0, %v368
  %370 = vst [vmem:[%s179 + $0x17c] sm:$0x1] %v369
  %v371 = vld [vmem:[%s179 + $0x188] sm:$0x1]
  %v372 = vsel %vm280, 0, %v371
  %373 = vst [vmem:[%s179 + $0x188] sm:$0x1] %v372
  %v374 = vld [vmem:[%s179 + $0x194] sm:$0x1]
  %v375 = vsel %vm280, 0, %v374
  %376 = vst [vmem:[%s179 + $0x194] sm:$0x1] %v375
  %vm377 = vsmask.f32 4368
  %vm378 = vmor %vm181, %vm377
  %v380 = vshrl.u32 %v100, 16
  %v382 = vrot.slane %v380, 7
  %v383 = vshll.u32 %v100, 16
  %v385 = vor.u32 %v382, %v383
  %v386 = vrot.slane %v382, 4
  %v388 = vshrl.u32 %v101, 16
  %v390 = vrot.slane %v388, 7
  %v391 = vshll.u32 %v101, 16
  %v393 = vor.u32 %v390, %v391
  %v394 = vsel %vm378, %v386, %v393
  %v395 = vrot.slane %v390, 4
  %v397 = vshrl.u32 %v102, 16
  %v399 = vrot.slane %v397, 7
  %v400 = vshll.u32 %v102, 16
  %v402 = vor.u32 %v399, %v400
  %v403 = vrot.slane %v399, 4
  %v405 = vshrl.u32 %v103, 16
  %v407 = vrot.slane %v405, 7
  %v408 = vshll.u32 %v103, 16
  %v410 = vor.u32 %v407, %v408
  %v411 = vsel %vm378, %v403, %v410
  %v412 = vrot.slane %v407, 4
  %v414 = vshrl.u32 %v104, 16
  %v416 = vrot.slane %v414, 7
  %v417 = vshll.u32 %v104, 16
  %v419 = vor.u32 %v416, %v417
  %v420 = vrot.slane %v416, 4
  %v422 = vshrl.u32 %v105, 16
  %v424 = vrot.slane %v422, 7
  %v425 = vshll.u32 %v105, 16
  %v427 = vor.u32 %v424, %v425
  %v428 = vsel %vm378, %v420, %v427
  %v429 = vrot.slane %v424, 4
  %v431 = vshrl.u32 %v106, 16
  %v433 = vrot.slane %v431, 7
  %v434 = vshll.u32 %v106, 16
  %v436 = vor.u32 %v433, %v434
  %v437 = vrot.slane %v433, 4
  %v439 = vshrl.u32 %v107, 16
  %v441 = vrot.slane %v439, 7
  %v442 = vshll.u32 %v107, 16
  %v444 = vor.u32 %v441, %v442
  %v445 = vsel %vm378, %v437, %v444
  %v446 = vrot.slane %v441, 4
  %v448 = vshrl.u32 %v108, 16
  %v450 = vrot.slane %v448, 7
  %v451 = vshll.u32 %v108, 16
  %v453 = vor.u32 %v450, %v451
  %v454 = vrot.slane %v450, 4
  %v456 = vshrl.u32 %v109, 16
  %v458 = vrot.slane %v456, 7
  %v459 = vshll.u32 %v109, 16
  %v461 = vor.u32 %v458, %v459
  %v462 = vsel %vm378, %v454, %v461
  %v463 = vrot.slane %v458, 4
  %v465 = vshrl.u32 %v110, 16
  %v467 = vrot.slane %v465, 7
  %v468 = vshll.u32 %v110, 16
  %v470 = vor.u32 %v467, %v468
  %v471 = vrot.slane %v467, 4
  %v473 = vshrl.u32 %v111, 16
  %v475 = vrot.slane %v473, 7
  %v476 = vshll.u32 %v111, 16
  %v478 = vor.u32 %v475, %v476
  %v479 = vsel %vm378, %v471, %v478
  %v480 = vrot.slane %v475, 4
  %v482 = vshrl.u32 %v112, 16
  %v484 = vrot.slane %v482, 7
  %v485 = vshll.u32 %v112, 16
  %v487 = vor.u32 %v484, %v485
  %v488 = vrot.slane %v484, 4
  %v490 = vshrl.u32 %v113, 16
  %v492 = vrot.slane %v490, 7
  %v493 = vshll.u32 %v113, 16
  %v495 = vor.u32 %v492, %v493
  %v496 = vsel %vm378, %v488, %v495
  %v497 = vrot.slane %v492, 4
  %v499 = vshrl.u32 %v114, 16
  %v501 = vrot.slane %v499, 7
  %v502 = vshll.u32 %v114, 16
  %v504 = vor.u32 %v501, %v502
  %v505 = vrot.slane %v501, 4
  %v507 = vshrl.u32 %v115, 16
  %v509 = vrot.slane %v507, 7
  %v510 = vshll.u32 %v115, 16
  %v512 = vor.u32 %v509, %v510
  %v513 = vsel %vm378, %v505, %v512
  %v514 = vrot.slane %v509, 4
  %v516 = vshrl.u32 %v116, 16
  %v518 = vrot.slane %v516, 7
  %v519 = vshll.u32 %v116, 16
  %v521 = vor.u32 %v518, %v519
  %v522 = vrot.slane %v518, 4
  %v524 = vshrl.u32 %v117, 16
  %v526 = vrot.slane %v524, 7
  %v527 = vshll.u32 %v117, 16
  %v529 = vor.u32 %v526, %v527
  %v530 = vsel %vm378, %v522, %v529
  %v531 = vrot.slane %v526, 4
  %v533 = vshrl.u32 %v118, 16
  %v535 = vrot.slane %v533, 7
  %v536 = vshll.u32 %v118, 16
  %v538 = vor.u32 %v535, %v536
  %v539 = vrot.slane %v535, 4
  %v541 = vshrl.u32 %v119, 16
  %v543 = vrot.slane %v541, 7
  %v544 = vshll.u32 %v119, 16
  %v546 = vor.u32 %v543, %v544
  %v547 = vsel %vm378, %v539, %v546
  %v548 = vrot.slane %v543, 4
  %v550 = vshrl.u32 %v120, 16
  %v552 = vrot.slane %v550, 7
  %v553 = vshll.u32 %v120, 16
  %v555 = vor.u32 %v552, %v553
  %v556 = vrot.slane %v552, 4
  %v558 = vshrl.u32 %v121, 16
  %v560 = vrot.slane %v558, 7
  %v561 = vshll.u32 %v121, 16
  %v563 = vor.u32 %v560, %v561
  %v564 = vsel %vm378, %v556, %v563
  %v565 = vrot.slane %v560, 4
  %v567 = vshrl.u32 %v122, 16
  %v569 = vrot.slane %v567, 7
  %v570 = vshll.u32 %v122, 16
  %v572 = vor.u32 %v569, %v570
  %v573 = vrot.slane %v569, 4
  %v575 = vshrl.u32 %v123, 16
  %v577 = vrot.slane %v575, 7
  %v578 = vshll.u32 %v123, 16
  %v580 = vor.u32 %v577, %v578
  %v581 = vsel %vm378, %v573, %v580
  %v582 = vrot.slane %v577, 4
  %v584 = vshrl.u32 %v124, 16
  %v586 = vrot.slane %v584, 7
  %v587 = vshll.u32 %v124, 16
  %v589 = vor.u32 %v586, %v587
  %v590 = vrot.slane %v586, 4
  %v592 = vshrl.u32 %v125, 16
  %v594 = vrot.slane %v592, 7
  %v595 = vshll.u32 %v125, 16
  %v597 = vor.u32 %v594, %v595
  %v598 = vsel %vm378, %v590, %v597
  %v599 = vrot.slane %v594, 4
  %v601 = vshrl.u32 %v126, 16
  %v603 = vrot.slane %v601, 7
  %v604 = vshll.u32 %v126, 16
  %v606 = vor.u32 %v603, %v604
  %v607 = vrot.slane %v603, 4
  %v609 = vshrl.u32 %v127, 16
  %v611 = vrot.slane %v609, 7
  %v612 = vshll.u32 %v127, 16
  %v614 = vor.u32 %v611, %v612
  %v615 = vsel %vm378, %v607, %v614
  %v616 = vrot.slane %v611, 4
  %v618 = vshrl.u32 %v128, 16
  %v620 = vrot.slane %v618, 7
  %v621 = vshll.u32 %v128, 16
  %v623 = vor.u32 %v620, %v621
  %v624 = vrot.slane %v620, 4
  %v626 = vshrl.u32 %v129, 16
  %v628 = vrot.slane %v626, 7
  %v629 = vshll.u32 %v129, 16
  %v631 = vor.u32 %v628, %v629
  %v632 = vsel %vm378, %v624, %v631
  %v633 = vrot.slane %v628, 4
  %v635 = vshrl.u32 %v130, 16
  %v637 = vrot.slane %v635, 7
  %v638 = vshll.u32 %v130, 16
  %v640 = vor.u32 %v637, %v638
  %v641 = vrot.slane %v637, 4
  %v643 = vshrl.u32 %v131, 16
  %v645 = vrot.slane %v643, 7
  %v646 = vshll.u32 %v131, 16
  %v648 = vor.u32 %v645, %v646
  %v649 = vsel %vm378, %v641, %v648
  %v650 = vrot.slane %v645, 4
  %v652 = vshrl.u32 %v132, 16
  %v654 = vrot.slane %v652, 7
  %v655 = vshll.u32 %v132, 16
  %v657 = vor.u32 %v654, %v655
  %v658 = vrot.slane %v654, 4
  %v660 = vshrl.u32 %v133, 16
  %v662 = vrot.slane %v660, 7
  %v663 = vshll.u32 %v133, 16
  %v665 = vor.u32 %v662, %v663
  %v666 = vsel %vm378, %v658, %v665
  %v667 = vrot.slane %v662, 4
  %v669 = vshrl.u32 %v134, 16
  %v671 = vrot.slane %v669, 7
  %v672 = vshll.u32 %v134, 16
  %v674 = vor.u32 %v671, %v672
  %v675 = vrot.slane %v671, 4
  %v677 = vshrl.u32 %v135, 16
  %v679 = vrot.slane %v677, 7
  %v680 = vshll.u32 %v135, 16
  %v682 = vor.u32 %v679, %v680
  %v683 = vsel %vm378, %v675, %v682
  %v684 = vrot.slane %v679, 4
  %v686 = vshrl.u32 %v136, 16
  %v688 = vrot.slane %v686, 7
  %v689 = vshll.u32 %v136, 16
  %v691 = vor.u32 %v688, %v689
  %v692 = vrot.slane %v688, 4
  %v694 = vshrl.u32 %v137, 16
  %v696 = vrot.slane %v694, 7
  %v697 = vshll.u32 %v137, 16
  %v699 = vor.u32 %v696, %v697
  %v700 = vsel %vm378, %v692, %v699
  %v701 = vrot.slane %v696, 4
  %v703 = vshrl.u32 %v138, 16
  %v705 = vrot.slane %v703, 7
  %v706 = vshll.u32 %v138, 16
  %v708 = vor.u32 %v705, %v706
  %v709 = vrot.slane %v705, 4
  %v711 = vshrl.u32 %v139, 16
  %v713 = vrot.slane %v711, 7
  %v714 = vshll.u32 %v139, 16
  %v716 = vor.u32 %v713, %v714
  %v717 = vsel %vm378, %v709, %v716
  %v718 = vrot.slane %v713, 4
  %v720 = vshrl.u32 %v140, 16
  %v722 = vrot.slane %v720, 7
  %v723 = vshll.u32 %v140, 16
  %v725 = vor.u32 %v722, %v723
  %v726 = vrot.slane %v722, 4
  %v728 = vshrl.u32 %v141, 16
  %v730 = vrot.slane %v728, 7
  %v731 = vshll.u32 %v141, 16
  %v733 = vor.u32 %v730, %v731
  %v734 = vsel %vm378, %v726, %v733
  %v735 = vrot.slane %v730, 4
  %v737 = vshrl.u32 %v142, 16
  %v739 = vrot.slane %v737, 7
  %v740 = vshll.u32 %v142, 16
  %v742 = vor.u32 %v739, %v740
  %v743 = vrot.slane %v739, 4
  %v745 = vshrl.u32 %v143, 16
  %v747 = vrot.slane %v745, 7
  %v748 = vshll.u32 %v143, 16
  %v750 = vor.u32 %v747, %v748
  %v751 = vsel %vm378, %v743, %v750
  %v752 = vrot.slane %v747, 4
  %v754 = vshrl.u32 %v144, 16
  %v756 = vrot.slane %v754, 7
  %v757 = vshll.u32 %v144, 16
  %v759 = vor.u32 %v756, %v757
  %v760 = vrot.slane %v756, 4
  %v762 = vshrl.u32 %v145, 16
  %v764 = vrot.slane %v762, 7
  %v765 = vshll.u32 %v145, 16
  %v767 = vor.u32 %v764, %v765
  %v768 = vsel %vm378, %v760, %v767
  %v769 = vrot.slane %v764, 4
  %v771 = vshrl.u32 %v146, 16
  %v773 = vrot.slane %v771, 7
  %v774 = vshll.u32 %v146, 16
  %v776 = vor.u32 %v773, %v774
  %v777 = vrot.slane %v773, 4
  %v779 = vshrl.u32 %v147, 16
  %v781 = vrot.slane %v779, 7
  %v782 = vshll.u32 %v147, 16
  %v784 = vor.u32 %v781, %v782
  %v785 = vsel %vm378, %v777, %v784
  %v786 = vrot.slane %v781, 4
  %v788 = vshrl.u32 %v148, 16
  %v790 = vrot.slane %v788, 7
  %v791 = vshll.u32 %v148, 16
  %v793 = vor.u32 %v790, %v791
  %v794 = vrot.slane %v790, 4
  %v796 = vshrl.u32 %v149, 16
  %v798 = vrot.slane %v796, 7
  %v799 = vshll.u32 %v149, 16
  %v801 = vor.u32 %v798, %v799
  %v802 = vsel %vm378, %v794, %v801
  %v803 = vrot.slane %v798, 4
  %v805 = vshrl.u32 %v150, 16
  %v807 = vrot.slane %v805, 7
  %v808 = vshll.u32 %v150, 16
  %v810 = vor.u32 %v807, %v808
  %v811 = vrot.slane %v807, 4
  %v813 = vshrl.u32 %v151, 16
  %v815 = vrot.slane %v813, 7
  %v816 = vshll.u32 %v151, 16
  %v818 = vor.u32 %v815, %v816
  %v819 = vsel %vm378, %v811, %v818
  %v820 = vrot.slane %v815, 4
  %v822 = vshrl.u32 %v152, 16
  %v824 = vrot.slane %v822, 7
  %v825 = vshll.u32 %v152, 16
  %v827 = vor.u32 %v824, %v825
  %v828 = vrot.slane %v824, 4
  %v830 = vshrl.u32 %v153, 16
  %v832 = vrot.slane %v830, 7
  %v833 = vshll.u32 %v153, 16
  %v835 = vor.u32 %v832, %v833
  %v836 = vsel %vm378, %v828, %v835
  %v837 = vrot.slane %v832, 4
  %v839 = vshrl.u32 %v154, 16
  %v841 = vrot.slane %v839, 7
  %v842 = vshll.u32 %v154, 16
  %v844 = vor.u32 %v841, %v842
  %v845 = vrot.slane %v841, 4
  %v847 = vshrl.u32 %v155, 16
  %v849 = vrot.slane %v847, 7
  %v850 = vshll.u32 %v155, 16
  %v852 = vor.u32 %v849, %v850
  %v853 = vsel %vm378, %v845, %v852
  %v854 = vrot.slane %v849, 4
  %v856 = vshrl.u32 %v156, 16
  %v858 = vrot.slane %v856, 7
  %v859 = vshll.u32 %v156, 16
  %v861 = vor.u32 %v858, %v859
  %v862 = vrot.slane %v858, 4
  %v864 = vshrl.u32 %v157, 16
  %v866 = vrot.slane %v864, 7
  %v867 = vshll.u32 %v157, 16
  %v869 = vor.u32 %v866, %v867
  %v870 = vsel %vm378, %v862, %v869
  %v871 = vrot.slane %v866, 4
  %v873 = vshrl.u32 %v158, 16
  %v875 = vrot.slane %v873, 7
  %v876 = vshll.u32 %v158, 16
  %v878 = vor.u32 %v875, %v876
  %v879 = vrot.slane %v875, 4
  %v881 = vshrl.u32 %v159, 16
  %v883 = vrot.slane %v881, 7
  %v884 = vshll.u32 %v159, 16
  %v886 = vor.u32 %v883, %v884
  %v887 = vsel %vm378, %v879, %v886
  %v888 = vrot.slane %v883, 4
  %v890 = vshrl.u32 %v160, 16
  %v892 = vrot.slane %v890, 7
  %v893 = vshll.u32 %v160, 16
  %v895 = vor.u32 %v892, %v893
  %v896 = vrot.slane %v892, 4
  %v898 = vshrl.u32 %v161, 16
  %v900 = vrot.slane %v898, 7
  %v901 = vshll.u32 %v161, 16
  %v903 = vor.u32 %v900, %v901
  %v904 = vsel %vm378, %v896, %v903
  %v905 = vrot.slane %v900, 4
  %v907 = vshrl.u32 %v162, 16
  %v909 = vrot.slane %v907, 7
  %v910 = vshll.u32 %v162, 16
  %v912 = vor.u32 %v909, %v910
  %v913 = vrot.slane %v909, 4
  %v915 = vshrl.u32 %v163, 16
  %v917 = vrot.slane %v915, 7
  %v918 = vshll.u32 %v163, 16
  %v920 = vor.u32 %v917, %v918
  %v921 = vsel %vm378, %v913, %v920
  %v922 = vrot.slane %v917, 4
  %vm1019 = vcmask 27648
  %vm1020 = vmand %vm1019, %vm279
  %v1021 = vld [vmem:[%s179] sm:$0xf]
  %v1022 = vsel %vm1020, %v385, %v1021
  %1023 = vst [vmem:[%s179] sm:$0xf] %v1022
  %1024 = vst.msk [vmem:[%s179 + $0x4] sm:$0xf] %vm164, %v394
  %v1025 = vld [vmem:[%s179 + $0x8] sm:$0x1]
  %v1026 = vsel %vm182, %v395, %v1025
  %1027 = vst [vmem:[%s179 + $0x8] sm:$0x1] %v1026
  %v1028 = vld [vmem:[%s179 + $0xc] sm:$0xf]
  %v1029 = vsel %vm1020, %v402, %v1028
  %1030 = vst [vmem:[%s179 + $0xc] sm:$0xf] %v1029
  %1031 = vst.msk [vmem:[%s179 + $0x10] sm:$0xf] %vm164, %v411
  %v1032 = vld [vmem:[%s179 + $0x14] sm:$0x1]
  %v1033 = vsel %vm182, %v412, %v1032
  %1034 = vst [vmem:[%s179 + $0x14] sm:$0x1] %v1033
  %v1035 = vld [vmem:[%s179 + $0x18] sm:$0xf]
  %v1036 = vsel %vm1020, %v419, %v1035
  %1037 = vst [vmem:[%s179 + $0x18] sm:$0xf] %v1036
  %1038 = vst.msk [vmem:[%s179 + $0x1c] sm:$0xf] %vm164, %v428
  %v1039 = vld [vmem:[%s179 + $0x20] sm:$0x1]
  %v1040 = vsel %vm182, %v429, %v1039
  %1041 = vst [vmem:[%s179 + $0x20] sm:$0x1] %v1040
  %v1042 = vld [vmem:[%s179 + $0x24] sm:$0xf]
  %v1043 = vsel %vm1020, %v436, %v1042
  %1044 = vst [vmem:[%s179 + $0x24] sm:$0xf] %v1043
  %1045 = vst.msk [vmem:[%s179 + $0x28] sm:$0xf] %vm164, %v445
  %v1046 = vld [vmem:[%s179 + $0x2c] sm:$0x1]
  %v1047 = vsel %vm182, %v446, %v1046
  %1048 = vst [vmem:[%s179 + $0x2c] sm:$0x1] %v1047
  %v1049 = vld [vmem:[%s179 + $0x30] sm:$0xf]
  %v1050 = vsel %vm1020, %v453, %v1049
  %1051 = vst [vmem:[%s179 + $0x30] sm:$0xf] %v1050
  %1052 = vst.msk [vmem:[%s179 + $0x34] sm:$0xf] %vm164, %v462
  %v1053 = vld [vmem:[%s179 + $0x38] sm:$0x1]
  %v1054 = vsel %vm182, %v463, %v1053
  %1055 = vst [vmem:[%s179 + $0x38] sm:$0x1] %v1054
  %v1056 = vld [vmem:[%s179 + $0x3c] sm:$0xf]
  %v1057 = vsel %vm1020, %v470, %v1056
  %1058 = vst [vmem:[%s179 + $0x3c] sm:$0xf] %v1057
  %1059 = vst.msk [vmem:[%s179 + $0x40] sm:$0xf] %vm164, %v479
  %v1060 = vld [vmem:[%s179 + $0x44] sm:$0x1]
  %v1061 = vsel %vm182, %v480, %v1060
  %1062 = vst [vmem:[%s179 + $0x44] sm:$0x1] %v1061
  %v1063 = vld [vmem:[%s179 + $0x48] sm:$0xf]
  %v1064 = vsel %vm1020, %v487, %v1063
  %1065 = vst [vmem:[%s179 + $0x48] sm:$0xf] %v1064
  %1066 = vst.msk [vmem:[%s179 + $0x4c] sm:$0xf] %vm164, %v496
  %v1067 = vld [vmem:[%s179 + $0x50] sm:$0x1]
  %v1068 = vsel %vm182, %v497, %v1067
  %1069 = vst [vmem:[%s179 + $0x50] sm:$0x1] %v1068
  %v1070 = vld [vmem:[%s179 + $0x54] sm:$0xf]
  %v1071 = vsel %vm1020, %v504, %v1070
  %1072 = vst [vmem:[%s179 + $0x54] sm:$0xf] %v1071
  %1073 = vst.msk [vmem:[%s179 + $0x58] sm:$0xf] %vm164, %v513
  %v1074 = vld [vmem:[%s179 + $0x5c] sm:$0x1]
  %v1075 = vsel %vm182, %v514, %v1074
  %1076 = vst [vmem:[%s179 + $0x5c] sm:$0x1] %v1075
  %v1077 = vld [vmem:[%s179 + $0x60] sm:$0xf]
  %v1078 = vsel %vm1020, %v521, %v1077
  %1079 = vst [vmem:[%s179 + $0x60] sm:$0xf] %v1078
  %1080 = vst.msk [vmem:[%s179 + $0x64] sm:$0xf] %vm164, %v530
  %v1081 = vld [vmem:[%s179 + $0x68] sm:$0x1]
  %v1082 = vsel %vm182, %v531, %v1081
  %1083 = vst [vmem:[%s179 + $0x68] sm:$0x1] %v1082
  %v1084 = vld [vmem:[%s179 + $0x6c] sm:$0xf]
  %v1085 = vsel %vm1020, %v538, %v1084
  %1086 = vst [vmem:[%s179 + $0x6c] sm:$0xf] %v1085
  %1087 = vst.msk [vmem:[%s179 + $0x70] sm:$0xf] %vm164, %v547
  %v1088 = vld [vmem:[%s179 + $0x74] sm:$0x1]
  %v1089 = vsel %vm182, %v548, %v1088
  %1090 = vst [vmem:[%s179 + $0x74] sm:$0x1] %v1089
  %v1091 = vld [vmem:[%s179 + $0x78] sm:$0xf]
  %v1092 = vsel %vm1020, %v555, %v1091
  %1093 = vst [vmem:[%s179 + $0x78] sm:$0xf] %v1092
  %1094 = vst.msk [vmem:[%s179 + $0x7c] sm:$0xf] %vm164, %v564
  %v1095 = vld [vmem:[%s179 + $0x80] sm:$0x1]
  %v1096 = vsel %vm182, %v565, %v1095
  %1097 = vst [vmem:[%s179 + $0x80] sm:$0x1] %v1096
  %v1098 = vld [vmem:[%s179 + $0x84] sm:$0xf]
  %v1099 = vsel %vm1020, %v572, %v1098
  %1100 = vst [vmem:[%s179 + $0x84] sm:$0xf] %v1099
  %1101 = vst.msk [vmem:[%s179 + $0x88] sm:$0xf] %vm164, %v581
  %v1102 = vld [vmem:[%s179 + $0x8c] sm:$0x1]
  %v1103 = vsel %vm182, %v582, %v1102
  %1104 = vst [vmem:[%s179 + $0x8c] sm:$0x1] %v1103
  %v1105 = vld [vmem:[%s179 + $0x90] sm:$0xf]
  %v1106 = vsel %vm1020, %v589, %v1105
  %1107 = vst [vmem:[%s179 + $0x90] sm:$0xf] %v1106
  %1108 = vst.msk [vmem:[%s179 + $0x94] sm:$0xf] %vm164, %v598
  %v1109 = vld [vmem:[%s179 + $0x98] sm:$0x1]
  %v1110 = vsel %vm182, %v599, %v1109
  %1111 = vst [vmem:[%s179 + $0x98] sm:$0x1] %v1110
  %v1112 = vld [vmem:[%s179 + $0x9c] sm:$0xf]
  %v1113 = vsel %vm1020, %v606, %v1112
  %1114 = vst [vmem:[%s179 + $0x9c] sm:$0xf] %v1113
  %1115 = vst.msk [vmem:[%s179 + $0xa0] sm:$0xf] %vm164, %v615
  %v1116 = vld [vmem:[%s179 + $0xa4] sm:$0x1]
  %v1117 = vsel %vm182, %v616, %v1116
  %1118 = vst [vmem:[%s179 + $0xa4] sm:$0x1] %v1117
  %v1119 = vld [vmem:[%s179 + $0xa8] sm:$0xf]
  %v1120 = vsel %vm1020, %v623, %v1119
  %1121 = vst [vmem:[%s179 + $0xa8] sm:$0xf] %v1120
  %1122 = vst.msk [vmem:[%s179 + $0xac] sm:$0xf] %vm164, %v632
  %v1123 = vld [vmem:[%s179 + $0xb0] sm:$0x1]
  %v1124 = vsel %vm182, %v633, %v1123
  %1125 = vst [vmem:[%s179 + $0xb0] sm:$0x1] %v1124
  %v1126 = vld [vmem:[%s179 + $0xb4] sm:$0xf]
  %v1127 = vsel %vm1020, %v640, %v1126
  %1128 = vst [vmem:[%s179 + $0xb4] sm:$0xf] %v1127
  %1129 = vst.msk [vmem:[%s179 + $0xb8] sm:$0xf] %vm164, %v649
  %v1130 = vld [vmem:[%s179 + $0xbc] sm:$0x1]
  %v1131 = vsel %vm182, %v650, %v1130
  %1132 = vst [vmem:[%s179 + $0xbc] sm:$0x1] %v1131
  %v1133 = vld [vmem:[%s179 + $0xd8] sm:$0xf]
  %v1134 = vsel %vm1020, %v657, %v1133
  %1135 = vst [vmem:[%s179 + $0xd8] sm:$0xf] %v1134
  %1136 = vst.msk [vmem:[%s179 + $0xdc] sm:$0xf] %vm164, %v666
  %v1137 = vld [vmem:[%s179 + $0xe0] sm:$0x1]
  %v1138 = vsel %vm182, %v667, %v1137
  %1139 = vst [vmem:[%s179 + $0xe0] sm:$0x1] %v1138
  %v1140 = vld [vmem:[%s179 + $0xe4] sm:$0xf]
  %v1141 = vsel %vm1020, %v674, %v1140
  %1142 = vst [vmem:[%s179 + $0xe4] sm:$0xf] %v1141
  %1143 = vst.msk [vmem:[%s179 + $0xe8] sm:$0xf] %vm164, %v683
  %v1144 = vld [vmem:[%s179 + $0xec] sm:$0x1]
  %v1145 = vsel %vm182, %v684, %v1144
  %1146 = vst [vmem:[%s179 + $0xec] sm:$0x1] %v1145
  %v1147 = vld [vmem:[%s179 + $0xf0] sm:$0xf]
  %v1148 = vsel %vm1020, %v691, %v1147
  %1149 = vst [vmem:[%s179 + $0xf0] sm:$0xf] %v1148
  %1150 = vst.msk [vmem:[%s179 + $0xf4] sm:$0xf] %vm164, %v700
  %v1151 = vld [vmem:[%s179 + $0xf8] sm:$0x1]
  %v1152 = vsel %vm182, %v701, %v1151
  %1153 = vst [vmem:[%s179 + $0xf8] sm:$0x1] %v1152
  %v1154 = vld [vmem:[%s179 + $0xfc] sm:$0xf]
  %v1155 = vsel %vm1020, %v708, %v1154
  %1156 = vst [vmem:[%s179 + $0xfc] sm:$0xf] %v1155
  %1157 = vst.msk [vmem:[%s179 + $0x100] sm:$0xf] %vm164, %v717
  %v1158 = vld [vmem:[%s179 + $0x104] sm:$0x1]
  %v1159 = vsel %vm182, %v718, %v1158
  %1160 = vst [vmem:[%s179 + $0x104] sm:$0x1] %v1159
  %v1161 = vld [vmem:[%s179 + $0x108] sm:$0xf]
  %v1162 = vsel %vm1020, %v725, %v1161
  %1163 = vst [vmem:[%s179 + $0x108] sm:$0xf] %v1162
  %1164 = vst.msk [vmem:[%s179 + $0x10c] sm:$0xf] %vm164, %v734
  %v1165 = vld [vmem:[%s179 + $0x110] sm:$0x1]
  %v1166 = vsel %vm182, %v735, %v1165
  %1167 = vst [vmem:[%s179 + $0x110] sm:$0x1] %v1166
  %v1168 = vld [vmem:[%s179 + $0x114] sm:$0xf]
  %v1169 = vsel %vm1020, %v742, %v1168
  %1170 = vst [vmem:[%s179 + $0x114] sm:$0xf] %v1169
  %1171 = vst.msk [vmem:[%s179 + $0x118] sm:$0xf] %vm164, %v751
  %v1172 = vld [vmem:[%s179 + $0x11c] sm:$0x1]
  %v1173 = vsel %vm182, %v752, %v1172
  %1174 = vst [vmem:[%s179 + $0x11c] sm:$0x1] %v1173
  %v1175 = vld [vmem:[%s179 + $0x120] sm:$0xf]
  %v1176 = vsel %vm1020, %v759, %v1175
  %1177 = vst [vmem:[%s179 + $0x120] sm:$0xf] %v1176
  %1178 = vst.msk [vmem:[%s179 + $0x124] sm:$0xf] %vm164, %v768
  %v1179 = vld [vmem:[%s179 + $0x128] sm:$0x1]
  %v1180 = vsel %vm182, %v769, %v1179
  %1181 = vst [vmem:[%s179 + $0x128] sm:$0x1] %v1180
  %v1182 = vld [vmem:[%s179 + $0x12c] sm:$0xf]
  %v1183 = vsel %vm1020, %v776, %v1182
  %1184 = vst [vmem:[%s179 + $0x12c] sm:$0xf] %v1183
  %1185 = vst.msk [vmem:[%s179 + $0x130] sm:$0xf] %vm164, %v785
  %v1186 = vld [vmem:[%s179 + $0x134] sm:$0x1]
  %v1187 = vsel %vm182, %v786, %v1186
  %1188 = vst [vmem:[%s179 + $0x134] sm:$0x1] %v1187
  %v1189 = vld [vmem:[%s179 + $0x138] sm:$0xf]
  %v1190 = vsel %vm1020, %v793, %v1189
  %1191 = vst [vmem:[%s179 + $0x138] sm:$0xf] %v1190
  %1192 = vst.msk [vmem:[%s179 + $0x13c] sm:$0xf] %vm164, %v802
  %v1193 = vld [vmem:[%s179 + $0x140] sm:$0x1]
  %v1194 = vsel %vm182, %v803, %v1193
  %1195 = vst [vmem:[%s179 + $0x140] sm:$0x1] %v1194
  %v1196 = vld [vmem:[%s179 + $0x144] sm:$0xf]
  %v1197 = vsel %vm1020, %v810, %v1196
  %1198 = vst [vmem:[%s179 + $0x144] sm:$0xf] %v1197
  %1199 = vst.msk [vmem:[%s179 + $0x148] sm:$0xf] %vm164, %v819
  %v1200 = vld [vmem:[%s179 + $0x14c] sm:$0x1]
  %v1201 = vsel %vm182, %v820, %v1200
  %1202 = vst [vmem:[%s179 + $0x14c] sm:$0x1] %v1201
  %v1203 = vld [vmem:[%s179 + $0x150] sm:$0xf]
  %v1204 = vsel %vm1020, %v827, %v1203
  %1205 = vst [vmem:[%s179 + $0x150] sm:$0xf] %v1204
  %1206 = vst.msk [vmem:[%s179 + $0x154] sm:$0xf] %vm164, %v836
  %v1207 = vld [vmem:[%s179 + $0x158] sm:$0x1]
  %v1208 = vsel %vm182, %v837, %v1207
  %1209 = vst [vmem:[%s179 + $0x158] sm:$0x1] %v1208
  %v1210 = vld [vmem:[%s179 + $0x15c] sm:$0xf]
  %v1211 = vsel %vm1020, %v844, %v1210
  %1212 = vst [vmem:[%s179 + $0x15c] sm:$0xf] %v1211
  %1213 = vst.msk [vmem:[%s179 + $0x160] sm:$0xf] %vm164, %v853
  %v1214 = vld [vmem:[%s179 + $0x164] sm:$0x1]
  %v1215 = vsel %vm182, %v854, %v1214
  %1216 = vst [vmem:[%s179 + $0x164] sm:$0x1] %v1215
  %v1217 = vld [vmem:[%s179 + $0x168] sm:$0xf]
  %v1218 = vsel %vm1020, %v861, %v1217
  %1219 = vst [vmem:[%s179 + $0x168] sm:$0xf] %v1218
  %1220 = vst.msk [vmem:[%s179 + $0x16c] sm:$0xf] %vm164, %v870
  %v1221 = vld [vmem:[%s179 + $0x170] sm:$0x1]
  %v1222 = vsel %vm182, %v871, %v1221
  %1223 = vst [vmem:[%s179 + $0x170] sm:$0x1] %v1222
  %v1224 = vld [vmem:[%s179 + $0x174] sm:$0xf]
  %v1225 = vsel %vm1020, %v878, %v1224
  %1226 = vst [vmem:[%s179 + $0x174] sm:$0xf] %v1225
  %1227 = vst.msk [vmem:[%s179 + $0x178] sm:$0xf] %vm164, %v887
  %v1228 = vld [vmem:[%s179 + $0x17c] sm:$0x1]
  %v1229 = vsel %vm182, %v888, %v1228
  %1230 = vst [vmem:[%s179 + $0x17c] sm:$0x1] %v1229
  %v1231 = vld [vmem:[%s179 + $0x180] sm:$0xf]
  %v1232 = vsel %vm1020, %v895, %v1231
  %1233 = vst [vmem:[%s179 + $0x180] sm:$0xf] %v1232
  %1234 = vst.msk [vmem:[%s179 + $0x184] sm:$0xf] %vm164, %v904
  %v1235 = vld [vmem:[%s179 + $0x188] sm:$0x1]
  %v1236 = vsel %vm182, %v905, %v1235
  %1237 = vst [vmem:[%s179 + $0x188] sm:$0x1] %v1236
  %v1238 = vld [vmem:[%s179 + $0x18c] sm:$0xf]
  %v1239 = vsel %vm1020, %v912, %v1238
  %1240 = vst [vmem:[%s179 + $0x18c] sm:$0xf] %v1239
  %1241 = vst.msk [vmem:[%s179 + $0x190] sm:$0xf] %vm164, %v921
  %v1242 = vld [vmem:[%s179 + $0x194] sm:$0x1]
  %v1243 = vsel %vm182, %v922, %v1242
  %1244 = vst [vmem:[%s179 + $0x194] sm:$0x1] %v1243
  %v1245 = vld [vmem:[#allocation2] sm:$0xf]
  %v1246 = vld [vmem:[#allocation2 + $0x4] sm:$0xf]
  %v1247 = vld [vmem:[#allocation2 + $0xc] sm:$0xf]
  %v1248 = vld [vmem:[#allocation2 + $0x10] sm:$0xf]
  %v1249 = vld [vmem:[#allocation2 + $0x18] sm:$0xf]
  %v1250 = vld [vmem:[#allocation2 + $0x1c] sm:$0xf]
  %v1251 = vld [vmem:[#allocation2 + $0x24] sm:$0xf]
  %v1252 = vld [vmem:[#allocation2 + $0x28] sm:$0xf]
  %v1253 = vld [vmem:[#allocation2 + $0x30] sm:$0xf]
  %v1254 = vld [vmem:[#allocation2 + $0x34] sm:$0xf]
  %v1255 = vld [vmem:[#allocation2 + $0x3c] sm:$0xf]
  %v1256 = vld [vmem:[#allocation2 + $0x40] sm:$0xf]
  %v1257 = vld [vmem:[#allocation2 + $0x48] sm:$0xf]
  %v1258 = vld [vmem:[#allocation2 + $0x4c] sm:$0xf]
  %v1259 = vld [vmem:[#allocation2 + $0x54] sm:$0xf]
  %v1260 = vld [vmem:[#allocation2 + $0x58] sm:$0xf]
  %v1261 = vld [vmem:[#allocation2 + $0x60] sm:$0xf]
  %v1262 = vld [vmem:[#allocation2 + $0x64] sm:$0xf]
  %v1263 = vld [vmem:[#allocation2 + $0x6c] sm:$0xf]
  %v1264 = vld [vmem:[#allocation2 + $0x70] sm:$0xf]
  %v1265 = vld [vmem:[#allocation2 + $0x78] sm:$0xf]
  %v1266 = vld [vmem:[#allocation2 + $0x7c] sm:$0xf]
  %v1267 = vld [vmem:[#allocation2 + $0x84] sm:$0xf]
  %v1268 = vld [vmem:[#allocation2 + $0x88] sm:$0xf]
  %v1269 = vld [vmem:[#allocation2 + $0x90] sm:$0xf]
  %v1270 = vld [vmem:[#allocation2 + $0x94] sm:$0xf]
  %v1271 = vld [vmem:[#allocation2 + $0x9c] sm:$0xf]
  %v1272 = vld [vmem:[#allocation2 + $0xa0] sm:$0xf]
  %v1273 = vld [vmem:[#allocation2 + $0xa8] sm:$0xf]
  %v1274 = vld [vmem:[#allocation2 + $0xac] sm:$0xf]
  %v1275 = vld [vmem:[#allocation2 + $0xb4] sm:$0xf]
  %v1276 = vld [vmem:[#allocation2 + $0xb8] sm:$0xf]
  %v1277 = vld [vmem:[#allocation2 + $0xc0] sm:$0xf]
  %v1278 = vld [vmem:[#allocation2 + $0xc4] sm:$0xf]
  %v1279 = vld [vmem:[#allocation2 + $0xcc] sm:$0xf]
  %v1280 = vld [vmem:[#allocation2 + $0xd0] sm:$0xf]
  %v1281 = vld [vmem:[#allocation2 + $0xd8] sm:$0xf]
  %v1282 = vld [vmem:[#allocation2 + $0xdc] sm:$0xf]
  %v1283 = vld [vmem:[#allocation2 + $0xe4] sm:$0xf]
  %v1284 = vld [vmem:[#allocation2 + $0xe8] sm:$0xf]
  %v1285 = vld [vmem:[#allocation2 + $0xf0] sm:$0xf]
  %v1286 = vld [vmem:[#allocation2 + $0xf4] sm:$0xf]
  %v1287 = vld [vmem:[#allocation2 + $0xfc] sm:$0xf]
  %v1288 = vld [vmem:[#allocation2 + $0x100] sm:$0xf]
  %v1289 = vld [vmem:[#allocation2 + $0x108] sm:$0xf]
  %v1290 = vld [vmem:[#allocation2 + $0x10c] sm:$0xf]
  %v1291 = vld [vmem:[#allocation2 + $0x114] sm:$0xf]
  %v1292 = vld [vmem:[#allocation2 + $0x118] sm:$0xf]
  %v1293 = vld [vmem:[#allocation2 + $0x120] sm:$0xf]
  %v1294 = vld [vmem:[#allocation2 + $0x124] sm:$0xf]
  %v1295 = vld [vmem:[#allocation2 + $0x12c] sm:$0xf]
  %v1296 = vld [vmem:[#allocation2 + $0x130] sm:$0xf]
  %v1297 = vld [vmem:[#allocation2 + $0x138] sm:$0xf]
  %v1298 = vld [vmem:[#allocation2 + $0x13c] sm:$0xf]
  %v1299 = vld [vmem:[#allocation2 + $0x144] sm:$0xf]
  %v1300 = vld [vmem:[#allocation2 + $0x148] sm:$0xf]
  %v1301 = vld [vmem:[#allocation2 + $0x150] sm:$0xf]
  %v1302 = vld [vmem:[#allocation2 + $0x154] sm:$0xf]
  %v1303 = vld [vmem:[#allocation2 + $0x15c] sm:$0xf]
  %v1304 = vld [vmem:[#allocation2 + $0x160] sm:$0xf]
  %v1305 = vld [vmem:[#allocation2 + $0x168] sm:$0xf]
  %v1306 = vld [vmem:[#allocation2 + $0x16c] sm:$0xf]
  %v1307 = vld [vmem:[#allocation2 + $0x174] sm:$0xf]
  %v1308 = vld [vmem:[#allocation2 + $0x178] sm:$0xf]
  %v1309 = vld [vmem:[#allocation2 + $0x180] sm:$0xf]
  %v1310 = vld [vmem:[#allocation2 + $0x184] sm:$0xf]
  %v1311 = vld [vmem:[#allocation2 + $0x18c] sm:$0xf]
  %v1312 = vld [vmem:[#allocation2 + $0x190] sm:$0xf]
  %v1313 = vld [vmem:[#allocation2 + $0x198] sm:$0xf]
  %v1314 = vld [vmem:[#allocation2 + $0x19c] sm:$0xf]
  %v1315 = vld [vmem:[#allocation2 + $0x1a4] sm:$0xf]
  %v1316 = vld [vmem:[#allocation2 + $0x1a8] sm:$0xf]
  %v1317 = vld [vmem:[#allocation2 + $0x8] sm:$0x1]
  %v1318 = vld [vmem:[#allocation2 + $0x14] sm:$0x1]
  %v1319 = vld [vmem:[#allocation2 + $0x20] sm:$0x1]
  %v1320 = vld [vmem:[#allocation2 + $0x2c] sm:$0x1]
  %v1321 = vld [vmem:[#allocation2 + $0x38] sm:$0x1]
  %v1322 = vld [vmem:[#allocation2 + $0x44] sm:$0x1]
  %v1323 = vld [vmem:[#allocation2 + $0x50] sm:$0x1]
  %v1324 = vld [vmem:[#allocation2 + $0x5c] sm:$0x1]
  %v1325 = vld [vmem:[#allocation2 + $0x68] sm:$0x1]
  %v1326 = vld [vmem:[#allocation2 + $0x74] sm:$0x1]
  %v1327 = vld [vmem:[#allocation2 + $0x80] sm:$0x1]
  %v1328 = vld [vmem:[#allocation2 + $0x8c] sm:$0x1]
  %v1329 = vld [vmem:[#allocation2 + $0x98] sm:$0x1]
  %v1330 = vld [vmem:[#allocation2 + $0xa4] sm:$0x1]
  %v1331 = vld [vmem:[#allocation2 + $0xb0] sm:$0x1]
  %v1332 = vld [vmem:[#allocation2 + $0xbc] sm:$0x1]
  %v1333 = vld [vmem:[#allocation2 + $0xc8] sm:$0x1]
  %v1334 = vld [vmem:[#allocation2 + $0xd4] sm:$0x1]
  %v1335 = vld [vmem:[#allocation2 + $0xe0] sm:$0x1]
  %v1336 = vld [vmem:[#allocation2 + $0xec] sm:$0x1]
  %v1337 = vld [vmem:[#allocation2 + $0xf8] sm:$0x1]
  %v1338 = vld [vmem:[#allocation2 + $0x104] sm:$0x1]
  %v1339 = vld [vmem:[#allocation2 + $0x110] sm:$0x1]
  %v1340 = vld [vmem:[#allocation2 + $0x11c] sm:$0x1]
  %v1341 = vld [vmem:[#allocation2 + $0x128] sm:$0x1]
  %v1342 = vld [vmem:[#allocation2 + $0x134] sm:$0x1]
  %v1343 = vld [vmem:[#allocation2 + $0x140] sm:$0x1]
  %v1344 = vld [vmem:[#allocation2 + $0x14c] sm:$0x1]
  %v1345 = vld [vmem:[#allocation2 + $0x158] sm:$0x1]
  %v1346 = vld [vmem:[#allocation2 + $0x164] sm:$0x1]
  %v1347 = vld [vmem:[#allocation2 + $0x170] sm:$0x1]
  %v1348 = vld [vmem:[#allocation2 + $0x17c] sm:$0x1]
  %v1349 = vld [vmem:[#allocation2 + $0x188] sm:$0x1]
  %v1350 = vld [vmem:[#allocation2 + $0x194] sm:$0x1]
  %v1351 = vld [vmem:[#allocation2 + $0x1a0] sm:$0x1]
  %v1352 = vld [vmem:[#allocation2 + $0x1ac] sm:$0x1]
  %v1353 = vld [vmem:[#allocation2] sm:$0xe]
  %v1354 = vld [vmem:[#allocation2 + $0xc] sm:$0xe]
  %v1355 = vld [vmem:[#allocation2 + $0x18] sm:$0xe]
  %v1356 = vld [vmem:[#allocation2 + $0x24] sm:$0xe]
  %v1357 = vld [vmem:[#allocation2 + $0x30] sm:$0xe]
  %v1358 = vld [vmem:[#allocation2 + $0x3c] sm:$0xe]
  %v1359 = vld [vmem:[#allocation2 + $0x48] sm:$0xe]
  %v1360 = vld [vmem:[#allocation2 + $0x54] sm:$0xe]
  %v1361 = vld [vmem:[#allocation2 + $0x60] sm:$0xe]
  %v1362 = vld [vmem:[#allocation2 + $0x6c] sm:$0xe]
  %v1363 = vld [vmem:[#allocation2 + $0x78] sm:$0xe]
  %v1364 = vld [vmem:[#allocation2 + $0x84] sm:$0xe]
  %v1365 = vld [vmem:[#allocation2 + $0x90] sm:$0xe]
  %v1366 = vld [vmem:[#allocation2 + $0x9c] sm:$0xe]
  %v1367 = vld [vmem:[#allocation2 + $0xa8] sm:$0xe]
  %v1368 = vld [vmem:[#allocation2 + $0xb4] sm:$0xe]
  %v1369 = vld [vmem:[#allocation2 + $0xc0] sm:$0xe]
  %v1370 = vld [vmem:[#allocation2 + $0xcc] sm:$0xe]
  %v1371 = vld [vmem:[#allocation2 + $0xd8] sm:$0xe]
  %v1372 = vld [vmem:[#allocation2 + $0xe4] sm:$0xe]
  %v1373 = vld [vmem:[#allocation2 + $0xf0] sm:$0xe]
  %v1374 = vld [vmem:[#allocation2 + $0xfc] sm:$0xe]
  %v1375 = vld [vmem:[#allocation2 + $0x108] sm:$0xe]
  %v1376 = vld [vmem:[#allocation2 + $0x114] sm:$0xe]
  %v1377 = vld [vmem:[#allocation2 + $0x120] sm:$0xe]
  %v1378 = vld [vmem:[#allocation2 + $0x12c] sm:$0xe]
  %v1379 = vld [vmem:[#allocation2 + $0x138] sm:$0xe]
  %v1380 = vld [vmem:[#allocation2 + $0x144] sm:$0xe]
  %v1381 = vld [vmem:[#allocation2 + $0x150] sm:$0xe]
  %v1382 = vld [vmem:[#allocation2 + $0x15c] sm:$0xe]
  %v1383 = vld [vmem:[#allocation2 + $0x168] sm:$0xe]
  %v1384 = vld [vmem:[#allocation2 + $0x174] sm:$0xe]
  %v1385 = vld [vmem:[#allocation2 + $0x180] sm:$0xe]
  %v1386 = vld [vmem:[#allocation2 + $0x18c] sm:$0xe]
  %v1387 = vld [vmem:[#allocation2 + $0x198] sm:$0xe]
  %v1388 = vld [vmem:[#allocation2 + $0x1a4] sm:$0xe]
  %v1461 = vunpack.c.l.b16 %v1245
  %v1462 = vunpack.c.l.b16 %v1246
  %v1463 = vunpack.c.l.b16 %v1247
  %v1464 = vunpack.c.l.b16 %v1248
  %v1465 = vunpack.c.l.b16 %v1249
  %v1466 = vunpack.c.l.b16 %v1250
  %v1467 = vunpack.c.l.b16 %v1251
  %v1468 = vunpack.c.l.b16 %v1252
  %v1469 = vunpack.c.l.b16 %v1253
  %v1470 = vunpack.c.l.b16 %v1254
  %v1471 = vunpack.c.l.b16 %v1255
  %v1472 = vunpack.c.l.b16 %v1256
  %v1473 = vunpack.c.l.b16 %v1257
  %v1474 = vunpack.c.l.b16 %v1258
  %v1475 = vunpack.c.l.b16 %v1259
  %v1476 = vunpack.c.l.b16 %v1260
  %v1477 = vunpack.c.l.b16 %v1261
  %v1478 = vunpack.c.l.b16 %v1262
  %v1479 = vunpack.c.l.b16 %v1263
  %v1480 = vunpack.c.l.b16 %v1264
  %v1481 = vunpack.c.l.b16 %v1265
  %v1482 = vunpack.c.l.b16 %v1266
  %v1483 = vunpack.c.l.b16 %v1267
  %v1484 = vunpack.c.l.b16 %v1268
  %v1485 = vunpack.c.l.b16 %v1269
  %v1486 = vunpack.c.l.b16 %v1270
  %v1487 = vunpack.c.l.b16 %v1271
  %v1488 = vunpack.c.l.b16 %v1272
  %v1489 = vunpack.c.l.b16 %v1273
  %v1490 = vunpack.c.l.b16 %v1274
  %v1491 = vunpack.c.l.b16 %v1275
  %v1492 = vunpack.c.l.b16 %v1276
  %v1493 = vunpack.c.l.b16 %v1277
  %v1494 = vunpack.c.l.b16 %v1278
  %v1495 = vunpack.c.l.b16 %v1279
  %v1496 = vunpack.c.l.b16 %v1280
  %v1497 = vunpack.c.l.b16 %v1281
  %v1498 = vunpack.c.l.b16 %v1282
  %v1499 = vunpack.c.l.b16 %v1283
  %v1500 = vunpack.c.l.b16 %v1284
  %v1501 = vunpack.c.l.b16 %v1285
  %v1502 = vunpack.c.l.b16 %v1286
  %v1503 = vunpack.c.l.b16 %v1287
  %v1504 = vunpack.c.l.b16 %v1288
  %v1505 = vunpack.c.l.b16 %v1289
  %v1506 = vunpack.c.l.b16 %v1290
  %v1507 = vunpack.c.l.b16 %v1291
  %v1508 = vunpack.c.l.b16 %v1292
  %v1509 = vunpack.c.l.b16 %v1293
  %v1510 = vunpack.c.l.b16 %v1294
  %v1511 = vunpack.c.l.b16 %v1295
  %v1512 = vunpack.c.l.b16 %v1296
  %v1513 = vunpack.c.l.b16 %v1297
  %v1514 = vunpack.c.l.b16 %v1298
  %v1515 = vunpack.c.l.b16 %v1299
  %v1516 = vunpack.c.l.b16 %v1300
  %v1517 = vunpack.c.l.b16 %v1301
  %v1518 = vunpack.c.l.b16 %v1302
  %v1519 = vunpack.c.l.b16 %v1303
  %v1520 = vunpack.c.l.b16 %v1304
  %v1521 = vunpack.c.l.b16 %v1305
  %v1522 = vunpack.c.l.b16 %v1306
  %v1523 = vunpack.c.l.b16 %v1307
  %v1524 = vunpack.c.l.b16 %v1308
  %v1525 = vunpack.c.l.b16 %v1309
  %v1526 = vunpack.c.l.b16 %v1310
  %v1527 = vunpack.c.l.b16 %v1311
  %v1528 = vunpack.c.l.b16 %v1312
  %v1529 = vunpack.c.l.b16 %v1313
  %v1530 = vunpack.c.l.b16 %v1314
  %v1531 = vunpack.c.l.b16 %v1315
  %v1532 = vunpack.c.l.b16 %v1316
  %v1533 = vpack.c.b16 %v1462, %v1461
  %v1534 = vpack.c.b16 %v1464, %v1463
  %v1535 = vpack.c.b16 %v1466, %v1465
  %v1536 = vpack.c.b16 %v1468, %v1467
  %v1537 = vpack.c.b16 %v1470, %v1469
  %v1538 = vpack.c.b16 %v1472, %v1471
  %v1539 = vpack.c.b16 %v1474, %v1473
  %v1540 = vpack.c.b16 %v1476, %v1475
  %v1541 = vpack.c.b16 %v1478, %v1477
  %v1542 = vpack.c.b16 %v1480, %v1479
  %v1543 = vpack.c.b16 %v1482, %v1481
  %v1544 = vpack.c.b16 %v1484, %v1483
  %v1545 = vpack.c.b16 %v1486, %v1485
  %v1546 = vpack.c.b16 %v1488, %v1487
  %v1547 = vpack.c.b16 %v1490, %v1489
  %v1548 = vpack.c.b16 %v1492, %v1491
  %v1549 = vpack.c.b16 %v1494, %v1493
  %v1550 = vpack.c.b16 %v1496, %v1495
  %v1551 = vpack.c.b16 %v1498, %v1497
  %v1552 = vpack.c.b16 %v1500, %v1499
  %v1553 = vpack.c.b16 %v1502, %v1501
  %v1554 = vpack.c.b16 %v1504, %v1503
  %v1555 = vpack.c.b16 %v1506, %v1505
  %v1556 = vpack.c.b16 %v1508, %v1507
  %v1557 = vpack.c.b16 %v1510, %v1509
  %v1558 = vpack.c.b16 %v1512, %v1511
  %v1559 = vpack.c.b16 %v1514, %v1513
  %v1560 = vpack.c.b16 %v1516, %v1515
  %v1561 = vpack.c.b16 %v1518, %v1517
  %v1562 = vpack.c.b16 %v1520, %v1519
  %v1563 = vpack.c.b16 %v1522, %v1521
  %v1564 = vpack.c.b16 %v1524, %v1523
  %v1565 = vpack.c.b16 %v1526, %v1525
  %v1566 = vpack.c.b16 %v1528, %v1527
  %v1567 = vpack.c.b16 %v1530, %v1529
  %v1568 = vpack.c.b16 %v1532, %v1531
  %v1605 = vunpack.c.l.b16 %v1317
  %v1606 = vunpack.c.l.b16 %v1318
  %v1607 = vunpack.c.l.b16 %v1319
  %v1608 = vunpack.c.l.b16 %v1320
  %v1609 = vunpack.c.l.b16 %v1321
  %v1610 = vunpack.c.l.b16 %v1322
  %v1611 = vunpack.c.l.b16 %v1323
  %v1612 = vunpack.c.l.b16 %v1324
  %v1613 = vunpack.c.l.b16 %v1325
  %v1614 = vunpack.c.l.b16 %v1326
  %v1615 = vunpack.c.l.b16 %v1327
  %v1616 = vunpack.c.l.b16 %v1328
  %v1617 = vunpack.c.l.b16 %v1329
  %v1618 = vunpack.c.l.b16 %v1330
  %v1619 = vunpack.c.l.b16 %v1331
  %v1620 = vunpack.c.l.b16 %v1332
  %v1621 = vunpack.c.l.b16 %v1333
  %v1622 = vunpack.c.l.b16 %v1334
  %v1623 = vunpack.c.l.b16 %v1335
  %v1624 = vunpack.c.l.b16 %v1336
  %v1625 = vunpack.c.l.b16 %v1337
  %v1626 = vunpack.c.l.b16 %v1338
  %v1627 = vunpack.c.l.b16 %v1339
  %v1628 = vunpack.c.l.b16 %v1340
  %v1629 = vunpack.c.l.b16 %v1341
  %v1630 = vunpack.c.l.b16 %v1342
  %v1631 = vunpack.c.l.b16 %v1343
  %v1632 = vunpack.c.l.b16 %v1344
  %v1633 = vunpack.c.l.b16 %v1345
  %v1634 = vunpack.c.l.b16 %v1346
  %v1635 = vunpack.c.l.b16 %v1347
  %v1636 = vunpack.c.l.b16 %v1348
  %v1637 = vunpack.c.l.b16 %v1349
  %v1638 = vunpack.c.l.b16 %v1350
  %v1639 = vunpack.c.l.b16 %v1351
  %v1640 = vunpack.c.l.b16 %v1352
  %v1641 = vpack.c.b16 %v1605, %v1605
  %v1642 = vpack.c.b16 %v1606, %v1606
  %v1643 = vpack.c.b16 %v1607, %v1607
  %v1644 = vpack.c.b16 %v1608, %v1608
  %v1645 = vpack.c.b16 %v1609, %v1609
  %v1646 = vpack.c.b16 %v1610, %v1610
  %v1647 = vpack.c.b16 %v1611, %v1611
  %v1648 = vpack.c.b16 %v1612, %v1612
  %v1649 = vpack.c.b16 %v1613, %v1613
  %v1650 = vpack.c.b16 %v1614, %v1614
  %v1651 = vpack.c.b16 %v1615, %v1615
  %v1652 = vpack.c.b16 %v1616, %v1616
  %v1653 = vpack.c.b16 %v1617, %v1617
  %v1654 = vpack.c.b16 %v1618, %v1618
  %v1655 = vpack.c.b16 %v1619, %v1619
  %v1656 = vpack.c.b16 %v1620, %v1620
  %v1657 = vpack.c.b16 %v1621, %v1621
  %v1658 = vpack.c.b16 %v1622, %v1622
  %v1659 = vpack.c.b16 %v1623, %v1623
  %v1660 = vpack.c.b16 %v1624, %v1624
  %v1661 = vpack.c.b16 %v1625, %v1625
  %v1662 = vpack.c.b16 %v1626, %v1626
  %v1663 = vpack.c.b16 %v1627, %v1627
  %v1664 = vpack.c.b16 %v1628, %v1628
  %v1665 = vpack.c.b16 %v1629, %v1629
  %v1666 = vpack.c.b16 %v1630, %v1630
  %v1667 = vpack.c.b16 %v1631, %v1631
  %v1668 = vpack.c.b16 %v1632, %v1632
  %v1669 = vpack.c.b16 %v1633, %v1633
  %v1670 = vpack.c.b16 %v1634, %v1634
  %v1671 = vpack.c.b16 %v1635, %v1635
  %v1672 = vpack.c.b16 %v1636, %v1636
  %v1673 = vpack.c.b16 %v1637, %v1637
  %v1674 = vpack.c.b16 %v1638, %v1638
  %v1675 = vpack.c.b16 %v1639, %v1639
  %v1676 = vpack.c.b16 %v1640, %v1640
  %vm1677 = vsmask.f32 7424
  %v1679 = vshrl.u32 %v1533, 16
  %v1681 = vshll.u32 %v1533, 16
  %v1683 = vrot.slane %v1681, 1
  %v1684 = vor.u32 %v1679, %v1683
  %v1686 = vshll.u32 %v1641, 16
  %v1688 = vrot.slane %v1686, 1
  %v1689 = vsel %vm1677, %v1684, %v1688
  %v1691 = vshrl.u32 %v1534, 16
  %v1693 = vshll.u32 %v1534, 16
  %v1695 = vrot.slane %v1693, 1
  %v1696 = vor.u32 %v1691, %v1695
  %v1698 = vshll.u32 %v1642, 16
  %v1700 = vrot.slane %v1698, 1
  %v1701 = vsel %vm1677, %v1696, %v1700
  %v1703 = vshrl.u32 %v1535, 16
  %v1705 = vshll.u32 %v1535, 16
  %v1707 = vrot.slane %v1705, 1
  %v1708 = vor.u32 %v1703, %v1707
  %v1710 = vshll.u32 %v1643, 16
  %v1712 = vrot.slane %v1710, 1
  %v1713 = vsel %vm1677, %v1708, %v1712
  %v1715 = vshrl.u32 %v1536, 16
  %v1717 = vshll.u32 %v1536, 16
  %v1719 = vrot.slane %v1717, 1
  %v1720 = vor.u32 %v1715, %v1719
  %v1722 = vshll.u32 %v1644, 16
  %v1724 = vrot.slane %v1722, 1
  %v1725 = vsel %vm1677, %v1720, %v1724
  %v1727 = vshrl.u32 %v1537, 16
  %v1729 = vshll.u32 %v1537, 16
  %v1731 = vrot.slane %v1729, 1
  %v1732 = vor.u32 %v1727, %v1731
  %v1734 = vshll.u32 %v1645, 16
  %v1736 = vrot.slane %v1734, 1
  %v1737 = vsel %vm1677, %v1732, %v1736
  %v1739 = vshrl.u32 %v1538, 16
  %v1741 = vshll.u32 %v1538, 16
  %v1743 = vrot.slane %v1741, 1
  %v1744 = vor.u32 %v1739, %v1743
  %v1746 = vshll.u32 %v1646, 16
  %v1748 = vrot.slane %v1746, 1
  %v1749 = vsel %vm1677, %v1744, %v1748
  %v1751 = vshrl.u32 %v1539, 16
  %v1753 = vshll.u32 %v1539, 16
  %v1755 = vrot.slane %v1753, 1
  %v1756 = vor.u32 %v1751, %v1755
  %v1758 = vshll.u32 %v1647, 16
  %v1760 = vrot.slane %v1758, 1
  %v1761 = vsel %vm1677, %v1756, %v1760
  %v1763 = vshrl.u32 %v1540, 16
  %v1765 = vshll.u32 %v1540, 16
  %v1767 = vrot.slane %v1765, 1
  %v1768 = vor.u32 %v1763, %v1767
  %v1770 = vshll.u32 %v1648, 16
  %v1772 = vrot.slane %v1770, 1
  %v1773 = vsel %vm1677, %v1768, %v1772
  %v1775 = vshrl.u32 %v1541, 16
  %v1777 = vshll.u32 %v1541, 16
  %v1779 = vrot.slane %v1777, 1
  %v1780 = vor.u32 %v1775, %v1779
  %v1782 = vshll.u32 %v1649, 16
  %v1784 = vrot.slane %v1782, 1
  %v1785 = vsel %vm1677, %v1780, %v1784
  %v1787 = vshrl.u32 %v1542, 16
  %v1789 = vshll.u32 %v1542, 16
  %v1791 = vrot.slane %v1789, 1
  %v1792 = vor.u32 %v1787, %v1791
  %v1794 = vshll.u32 %v1650, 16
  %v1796 = vrot.slane %v1794, 1
  %v1797 = vsel %vm1677, %v1792, %v1796
  %v1799 = vshrl.u32 %v1543, 16
  %v1801 = vshll.u32 %v1543, 16
  %v1803 = vrot.slane %v1801, 1
  %v1804 = vor.u32 %v1799, %v1803
  %v1806 = vshll.u32 %v1651, 16
  %v1808 = vrot.slane %v1806, 1
  %v1809 = vsel %vm1677, %v1804, %v1808
  %v1811 = vshrl.u32 %v1544, 16
  %v1813 = vshll.u32 %v1544, 16
  %v1815 = vrot.slane %v1813, 1
  %v1816 = vor.u32 %v1811, %v1815
  %v1818 = vshll.u32 %v1652, 16
  %v1820 = vrot.slane %v1818, 1
  %v1821 = vsel %vm1677, %v1816, %v1820
  %v1823 = vshrl.u32 %v1545, 16
  %v1825 = vshll.u32 %v1545, 16
  %v1827 = vrot.slane %v1825, 1
  %v1828 = vor.u32 %v1823, %v1827
  %v1830 = vshll.u32 %v1653, 16
  %v1832 = vrot.slane %v1830, 1
  %v1833 = vsel %vm1677, %v1828, %v1832
  %v1835 = vshrl.u32 %v1546, 16
  %v1837 = vshll.u32 %v1546, 16
  %v1839 = vrot.slane %v1837, 1
  %v1840 = vor.u32 %v1835, %v1839
  %v1842 = vshll.u32 %v1654, 16
  %v1844 = vrot.slane %v1842, 1
  %v1845 = vsel %vm1677, %v1840, %v1844
  %v1847 = vshrl.u32 %v1547, 16
  %v1849 = vshll.u32 %v1547, 16
  %v1851 = vrot.slane %v1849, 1
  %v1852 = vor.u32 %v1847, %v1851
  %v1854 = vshll.u32 %v1655, 16
  %v1856 = vrot.slane %v1854, 1
  %v1857 = vsel %vm1677, %v1852, %v1856
  %v1859 = vshrl.u32 %v1548, 16
  %v1861 = vshll.u32 %v1548, 16
  %v1863 = vrot.slane %v1861, 1
  %v1864 = vor.u32 %v1859, %v1863
  %v1866 = vshll.u32 %v1656, 16
  %v1868 = vrot.slane %v1866, 1
  %v1869 = vsel %vm1677, %v1864, %v1868
  %v1871 = vshrl.u32 %v1549, 16
  %v1873 = vshll.u32 %v1549, 16
  %v1875 = vrot.slane %v1873, 1
  %v1876 = vor.u32 %v1871, %v1875
  %v1878 = vshll.u32 %v1657, 16
  %v1880 = vrot.slane %v1878, 1
  %v1881 = vsel %vm1677, %v1876, %v1880
  %v1883 = vshrl.u32 %v1550, 16
  %v1885 = vshll.u32 %v1550, 16
  %v1887 = vrot.slane %v1885, 1
  %v1888 = vor.u32 %v1883, %v1887
  %v1890 = vshll.u32 %v1658, 16
  %v1892 = vrot.slane %v1890, 1
  %v1893 = vsel %vm1677, %v1888, %v1892
  %v1895 = vshrl.u32 %v1551, 16
  %v1897 = vshll.u32 %v1551, 16
  %v1899 = vrot.slane %v1897, 1
  %v1900 = vor.u32 %v1895, %v1899
  %v1902 = vshll.u32 %v1659, 16
  %v1904 = vrot.slane %v1902, 1
  %v1905 = vsel %vm1677, %v1900, %v1904
  %v1907 = vshrl.u32 %v1552, 16
  %v1909 = vshll.u32 %v1552, 16
  %v1911 = vrot.slane %v1909, 1
  %v1912 = vor.u32 %v1907, %v1911
  %v1914 = vshll.u32 %v1660, 16
  %v1916 = vrot.slane %v1914, 1
  %v1917 = vsel %vm1677, %v1912, %v1916
  %v1919 = vshrl.u32 %v1553, 16
  %v1921 = vshll.u32 %v1553, 16
  %v1923 = vrot.slane %v1921, 1
  %v1924 = vor.u32 %v1919, %v1923
  %v1926 = vshll.u32 %v1661, 16
  %v1928 = vrot.slane %v1926, 1
  %v1929 = vsel %vm1677, %v1924, %v1928
  %v1931 = vshrl.u32 %v1554, 16
  %v1933 = vshll.u32 %v1554, 16
  %v1935 = vrot.slane %v1933, 1
  %v1936 = vor.u32 %v1931, %v1935
  %v1938 = vshll.u32 %v1662, 16
  %v1940 = vrot.slane %v1938, 1
  %v1941 = vsel %vm1677, %v1936, %v1940
  %v1943 = vshrl.u32 %v1555, 16
  %v1945 = vshll.u32 %v1555, 16
  %v1947 = vrot.slane %v1945, 1
  %v1948 = vor.u32 %v1943, %v1947
  %v1950 = vshll.u32 %v1663, 16
  %v1952 = vrot.slane %v1950, 1
  %v1953 = vsel %vm1677, %v1948, %v1952
  %v1955 = vshrl.u32 %v1556, 16
  %v1957 = vshll.u32 %v1556, 16
  %v1959 = vrot.slane %v1957, 1
  %v1960 = vor.u32 %v1955, %v1959
  %v1962 = vshll.u32 %v1664, 16
  %v1964 = vrot.slane %v1962, 1
  %v1965 = vsel %vm1677, %v1960, %v1964
  %v1967 = vshrl.u32 %v1557, 16
  %v1969 = vshll.u32 %v1557, 16
  %v1971 = vrot.slane %v1969, 1
  %v1972 = vor.u32 %v1967, %v1971
  %v1974 = vshll.u32 %v1665, 16
  %v1976 = vrot.slane %v1974, 1
  %v1977 = vsel %vm1677, %v1972, %v1976
  %v1979 = vshrl.u32 %v1558, 16
  %v1981 = vshll.u32 %v1558, 16
  %v1983 = vrot.slane %v1981, 1
  %v1984 = vor.u32 %v1979, %v1983
  %v1986 = vshll.u32 %v1666, 16
  %v1988 = vrot.slane %v1986, 1
  %v1989 = vsel %vm1677, %v1984, %v1988
  %v1991 = vshrl.u32 %v1559, 16
  %v1993 = vshll.u32 %v1559, 16
  %v1995 = vrot.slane %v1993, 1
  %v1996 = vor.u32 %v1991, %v1995
  %v1998 = vshll.u32 %v1667, 16
  %v2000 = vrot.slane %v1998, 1
  %v2001 = vsel %vm1677, %v1996, %v2000
  %v2003 = vshrl.u32 %v1560, 16
  %v2005 = vshll.u32 %v1560, 16
  %v2007 = vrot.slane %v2005, 1
  %v2008 = vor.u32 %v2003, %v2007
  %v2010 = vshll.u32 %v1668, 16
  %v2012 = vrot.slane %v2010, 1
  %v2013 = vsel %vm1677, %v2008, %v2012
  %v2015 = vshrl.u32 %v1561, 16
  %v2017 = vshll.u32 %v1561, 16
  %v2019 = vrot.slane %v2017, 1
  %v2020 = vor.u32 %v2015, %v2019
  %v2022 = vshll.u32 %v1669, 16
  %v2024 = vrot.slane %v2022, 1
  %v2025 = vsel %vm1677, %v2020, %v2024
  %v2027 = vshrl.u32 %v1562, 16
  %v2029 = vshll.u32 %v1562, 16
  %v2031 = vrot.slane %v2029, 1
  %v2032 = vor.u32 %v2027, %v2031
  %v2034 = vshll.u32 %v1670, 16
  %v2036 = vrot.slane %v2034, 1
  %v2037 = vsel %vm1677, %v2032, %v2036
  %v2039 = vshrl.u32 %v1563, 16
  %v2041 = vshll.u32 %v1563, 16
  %v2043 = vrot.slane %v2041, 1
  %v2044 = vor.u32 %v2039, %v2043
  %v2046 = vshll.u32 %v1671, 16
  %v2048 = vrot.slane %v2046, 1
  %v2049 = vsel %vm1677, %v2044, %v2048
  %v2051 = vshrl.u32 %v1564, 16
  %v2053 = vshll.u32 %v1564, 16
  %v2055 = vrot.slane %v2053, 1
  %v2056 = vor.u32 %v2051, %v2055
  %v2058 = vshll.u32 %v1672, 16
  %v2060 = vrot.slane %v2058, 1
  %v2061 = vsel %vm1677, %v2056, %v2060
  %v2063 = vshrl.u32 %v1565, 16
  %v2065 = vshll.u32 %v1565, 16
  %v2067 = vrot.slane %v2065, 1
  %v2068 = vor.u32 %v2063, %v2067
  %v2070 = vshll.u32 %v1673, 16
  %v2072 = vrot.slane %v2070, 1
  %v2073 = vsel %vm1677, %v2068, %v2072
  %v2075 = vshrl.u32 %v1566, 16
  %v2077 = vshll.u32 %v1566, 16
  %v2079 = vrot.slane %v2077, 1
  %v2080 = vor.u32 %v2075, %v2079
  %v2082 = vshll.u32 %v1674, 16
  %v2084 = vrot.slane %v2082, 1
  %v2085 = vsel %vm1677, %v2080, %v2084
  %v2087 = vshrl.u32 %v1567, 16
  %v2089 = vshll.u32 %v1567, 16
  %v2091 = vrot.slane %v2089, 1
  %v2092 = vor.u32 %v2087, %v2091
  %v2094 = vshll.u32 %v1675, 16
  %v2096 = vrot.slane %v2094, 1
  %v2097 = vsel %vm1677, %v2092, %v2096
  %v2099 = vshrl.u32 %v1568, 16
  %v2101 = vshll.u32 %v1568, 16
  %v2103 = vrot.slane %v2101, 1
  %v2104 = vor.u32 %v2099, %v2103
  %v2106 = vshll.u32 %v1676, 16
  %v2108 = vrot.slane %v2106, 1
  %v2109 = vsel %vm1677, %v2104, %v2108
  %2110 = vrot.lane.b32.xlu0 %v1689, 4
  %v2111 = vpop.permute.xlu0 %2110
  %2112 = vrot.lane.b32.xlu0 %v1701, 4
  %v2113 = vpop.permute.xlu0 %2112
  %2114 = vrot.lane.b32.xlu0 %v1713, 4
  %v2115 = vpop.permute.xlu0 %2114
  %2116 = vrot.lane.b32.xlu0 %v1725, 4
  %v2117 = vpop.permute.xlu0 %2116
  %2118 = vrot.lane.b32.xlu0 %v1737, 4
  %v2119 = vpop.permute.xlu0 %2118
  %2120 = vrot.lane.b32.xlu0 %v1749, 4
  %v2121 = vpop.permute.xlu0 %2120
  %2122 = vrot.lane.b32.xlu0 %v1761, 4
  %v2123 = vpop.permute.xlu0 %2122
  %2124 = vrot.lane.b32.xlu0 %v1773, 4
  %v2125 = vpop.permute.xlu0 %2124
  %2126 = vrot.lane.b32.xlu0 %v1785, 4
  %v2127 = vpop.permute.xlu0 %2126
  %2128 = vrot.lane.b32.xlu0 %v1797, 4
  %v2129 = vpop.permute.xlu0 %2128
  %2130 = vrot.lane.b32.xlu0 %v1809, 4
  %v2131 = vpop.permute.xlu0 %2130
  %2132 = vrot.lane.b32.xlu0 %v1821, 4
  %v2133 = vpop.permute.xlu0 %2132
  %2134 = vrot.lane.b32.xlu0 %v1833, 4
  %v2135 = vpop.permute.xlu0 %2134
  %2136 = vrot.lane.b32.xlu0 %v1845, 4
  %v2137 = vpop.permute.xlu0 %2136
  %2138 = vrot.lane.b32.xlu0 %v1857, 4
  %v2139 = vpop.permute.xlu0 %2138
  %2140 = vrot.lane.b32.xlu0 %v1869, 4
  %v2141 = vpop.permute.xlu0 %2140
  %2142 = vrot.lane.b32.xlu0 %v1881, 4
  %v2143 = vpop.permute.xlu0 %2142
  %2144 = vrot.lane.b32.xlu0 %v1893, 4
  %v2145 = vpop.permute.xlu0 %2144
  %2146 = vrot.lane.b32.xlu0 %v1905, 4
  %v2147 = vpop.permute.xlu0 %2146
  %2148 = vrot.lane.b32.xlu0 %v1917, 4
  %v2149 = vpop.permute.xlu0 %2148
  %2150 = vrot.lane.b32.xlu0 %v1929, 4
  %v2151 = vpop.permute.xlu0 %2150
  %2152 = vrot.lane.b32.xlu0 %v1941, 4
  %v2153 = vpop.permute.xlu0 %2152
  %2154 = vrot.lane.b32.xlu0 %v1953, 4
  %v2155 = vpop.permute.xlu0 %2154
  %2156 = vrot.lane.b32.xlu0 %v1965, 4
  %v2157 = vpop.permute.xlu0 %2156
  %2158 = vrot.lane.b32.xlu0 %v1977, 4
  %v2159 = vpop.permute.xlu0 %2158
  %2160 = vrot.lane.b32.xlu0 %v1989, 4
  %v2161 = vpop.permute.xlu0 %2160
  %2162 = vrot.lane.b32.xlu0 %v2001, 4
  %v2163 = vpop.permute.xlu0 %2162
  %2164 = vrot.lane.b32.xlu0 %v2013, 4
  %v2165 = vpop.permute.xlu0 %2164
  %2166 = vrot.lane.b32.xlu0 %v2025, 4
  %v2167 = vpop.permute.xlu0 %2166
  %2168 = vrot.lane.b32.xlu0 %v2037, 4
  %v2169 = vpop.permute.xlu0 %2168
  %2170 = vrot.lane.b32.xlu0 %v2049, 4
  %v2171 = vpop.permute.xlu0 %2170
  %2172 = vrot.lane.b32.xlu0 %v2061, 4
  %v2173 = vpop.permute.xlu0 %2172
  %2174 = vrot.lane.b32.xlu0 %v2073, 4
  %v2175 = vpop.permute.xlu0 %2174
  %2176 = vrot.lane.b32.xlu0 %v2085, 4
  %v2177 = vpop.permute.xlu0 %2176
  %2178 = vrot.lane.b32.xlu0 %v2097, 4
  %v2179 = vpop.permute.xlu0 %2178
  %2180 = vrot.lane.b32.xlu0 %v2109, 4
  %v2181 = vpop.permute.xlu0 %2180
  %v2218 = vunpack.c.l.b16 %v1353
  %v2219 = vunpack.c.l.b16 %v1354
  %v2220 = vunpack.c.l.b16 %v1355
  %v2221 = vunpack.c.l.b16 %v1356
  %v2222 = vunpack.c.l.b16 %v1357
  %v2223 = vunpack.c.l.b16 %v1358
  %v2224 = vunpack.c.l.b16 %v1359
  %v2225 = vunpack.c.l.b16 %v1360
  %v2226 = vunpack.c.l.b16 %v1361
  %v2227 = vunpack.c.l.b16 %v1362
  %v2228 = vunpack.c.l.b16 %v1363
  %v2229 = vunpack.c.l.b16 %v1364
  %v2230 = vunpack.c.l.b16 %v1365
  %v2231 = vunpack.c.l.b16 %v1366
  %v2232 = vunpack.c.l.b16 %v1367
  %v2233 = vunpack.c.l.b16 %v1368
  %v2234 = vunpack.c.l.b16 %v1369
  %v2235 = vunpack.c.l.b16 %v1370
  %v2236 = vunpack.c.l.b16 %v1371
  %v2237 = vunpack.c.l.b16 %v1372
  %v2238 = vunpack.c.l.b16 %v1373
  %v2239 = vunpack.c.l.b16 %v1374
  %v2240 = vunpack.c.l.b16 %v1375
  %v2241 = vunpack.c.l.b16 %v1376
  %v2242 = vunpack.c.l.b16 %v1377
  %v2243 = vunpack.c.l.b16 %v1378
  %v2244 = vunpack.c.l.b16 %v1379
  %v2245 = vunpack.c.l.b16 %v1380
  %v2246 = vunpack.c.l.b16 %v1381
  %v2247 = vunpack.c.l.b16 %v1382
  %v2248 = vunpack.c.l.b16 %v1383
  %v2249 = vunpack.c.l.b16 %v1384
  %v2250 = vunpack.c.l.b16 %v1385
  %v2251 = vunpack.c.l.b16 %v1386
  %v2252 = vunpack.c.l.b16 %v1387
  %v2253 = vunpack.c.l.b16 %v1388
  %v2254 = vpack.c.b16 %v1462, %v2218
  %v2255 = vpack.c.b16 %v1464, %v2219
  %v2256 = vpack.c.b16 %v1466, %v2220
  %v2257 = vpack.c.b16 %v1468, %v2221
  %v2258 = vpack.c.b16 %v1470, %v2222
  %v2259 = vpack.c.b16 %v1472, %v2223
  %v2260 = vpack.c.b16 %v1474, %v2224
  %v2261 = vpack.c.b16 %v1476, %v2225
  %v2262 = vpack.c.b16 %v1478, %v2226
  %v2263 = vpack.c.b16 %v1480, %v2227
  %v2264 = vpack.c.b16 %v1482, %v2228
  %v2265 = vpack.c.b16 %v1484, %v2229
  %v2266 = vpack.c.b16 %v1486, %v2230
  %v2267 = vpack.c.b16 %v1488, %v2231
  %v2268 = vpack.c.b16 %v1490, %v2232
  %v2269 = vpack.c.b16 %v1492, %v2233
  %v2270 = vpack.c.b16 %v1494, %v2234
  %v2271 = vpack.c.b16 %v1496, %v2235
  %v2272 = vpack.c.b16 %v1498, %v2236
  %v2273 = vpack.c.b16 %v1500, %v2237
  %v2274 = vpack.c.b16 %v1502, %v2238
  %v2275 = vpack.c.b16 %v1504, %v2239
  %v2276 = vpack.c.b16 %v1506, %v2240
  %v2277 = vpack.c.b16 %v1508, %v2241
  %v2278 = vpack.c.b16 %v1510, %v2242
  %v2279 = vpack.c.b16 %v1512, %v2243
  %v2280 = vpack.c.b16 %v1514, %v2244
  %v2281 = vpack.c.b16 %v1516, %v2245
  %v2282 = vpack.c.b16 %v1518, %v2246
  %v2283 = vpack.c.b16 %v1520, %v2247
  %v2284 = vpack.c.b16 %v1522, %v2248
  %v2285 = vpack.c.b16 %v1524, %v2249
  %v2286 = vpack.c.b16 %v1526, %v2250
  %v2287 = vpack.c.b16 %v1528, %v2251
  %v2288 = vpack.c.b16 %v1530, %v2252
  %v2289 = vpack.c.b16 %v1532, %v2253
  %vm2290 = vcmask 1046528
  %v2291 = vrot.slane %v2254, 1
  %v2292 = vrot.slane %v1641, 1
  %v2293 = vsel %vm2290, %v2291, %v2292
  %v2294 = vrot.slane %v2255, 1
  %v2295 = vrot.slane %v1642, 1
  %v2296 = vsel %vm2290, %v2294, %v2295
  %v2297 = vrot.slane %v2256, 1
  %v2298 = vrot.slane %v1643, 1
  %v2299 = vsel %vm2290, %v2297, %v2298
  %v2300 = vrot.slane %v2257, 1
  %v2301 = vrot.slane %v1644, 1
  %v2302 = vsel %vm2290, %v2300, %v2301
  %v2303 = vrot.slane %v2258, 1
  %v2304 = vrot.slane %v1645, 1
  %v2305 = vsel %vm2290, %v2303, %v2304
  %v2306 = vrot.slane %v2259, 1
  %v2307 = vrot.slane %v1646, 1
  %v2308 = vsel %vm2290, %v2306, %v2307
  %v2309 = vrot.slane %v2260, 1
  %v2310 = vrot.slane %v1647, 1
  %v2311 = vsel %vm2290, %v2309, %v2310
  %v2312 = vrot.slane %v2261, 1
  %v2313 = vrot.slane %v1648, 1
  %v2314 = vsel %vm2290, %v2312, %v2313
  %v2315 = vrot.slane %v2262, 1
  %v2316 = vrot.slane %v1649, 1
  %v2317 = vsel %vm2290, %v2315, %v2316
  %v2318 = vrot.slane %v2263, 1
  %v2319 = vrot.slane %v1650, 1
  %v2320 = vsel %vm2290, %v2318, %v2319
  %v2321 = vrot.slane %v2264, 1
  %v2322 = vrot.slane %v1651, 1
  %v2323 = vsel %vm2290, %v2321, %v2322
  %v2324 = vrot.slane %v2265, 1
  %v2325 = vrot.slane %v1652, 1
  %v2326 = vsel %vm2290, %v2324, %v2325
  %v2327 = vrot.slane %v2266, 1
  %v2328 = vrot.slane %v1653, 1
  %v2329 = vsel %vm2290, %v2327, %v2328
  %v2330 = vrot.slane %v2267, 1
  %v2331 = vrot.slane %v1654, 1
  %v2332 = vsel %vm2290, %v2330, %v2331
  %v2333 = vrot.slane %v2268, 1
  %v2334 = vrot.slane %v1655, 1
  %v2335 = vsel %vm2290, %v2333, %v2334
  %v2336 = vrot.slane %v2269, 1
  %v2337 = vrot.slane %v1656, 1
  %v2338 = vsel %vm2290, %v2336, %v2337
  %v2339 = vrot.slane %v2270, 1
  %v2340 = vrot.slane %v1657, 1
  %v2341 = vsel %vm2290, %v2339, %v2340
  %v2342 = vrot.slane %v2271, 1
  %v2343 = vrot.slane %v1658, 1
  %v2344 = vsel %vm2290, %v2342, %v2343
  %v2345 = vrot.slane %v2272, 1
  %v2346 = vrot.slane %v1659, 1
  %v2347 = vsel %vm2290, %v2345, %v2346
  %v2348 = vrot.slane %v2273, 1
  %v2349 = vrot.slane %v1660, 1
  %v2350 = vsel %vm2290, %v2348, %v2349
  %v2351 = vrot.slane %v2274, 1
  %v2352 = vrot.slane %v1661, 1
  %v2353 = vsel %vm2290, %v2351, %v2352
  %v2354 = vrot.slane %v2275, 1
  %v2355 = vrot.slane %v1662, 1
  %v2356 = vsel %vm2290, %v2354, %v2355
  %v2357 = vrot.slane %v2276, 1
  %v2358 = vrot.slane %v1663, 1
  %v2359 = vsel %vm2290, %v2357, %v2358
  %v2360 = vrot.slane %v2277, 1
  %v2361 = vrot.slane %v1664, 1
  %v2362 = vsel %vm2290, %v2360, %v2361
  %v2363 = vrot.slane %v2278, 1
  %v2364 = vrot.slane %v1665, 1
  %v2365 = vsel %vm2290, %v2363, %v2364
  %v2366 = vrot.slane %v2279, 1
  %v2367 = vrot.slane %v1666, 1
  %v2368 = vsel %vm2290, %v2366, %v2367
  %v2369 = vrot.slane %v2280, 1
  %v2370 = vrot.slane %v1667, 1
  %v2371 = vsel %vm2290, %v2369, %v2370
  %v2372 = vrot.slane %v2281, 1
  %v2373 = vrot.slane %v1668, 1
  %v2374 = vsel %vm2290, %v2372, %v2373
  %v2375 = vrot.slane %v2282, 1
  %v2376 = vrot.slane %v1669, 1
  %v2377 = vsel %vm2290, %v2375, %v2376
  %v2378 = vrot.slane %v2283, 1
  %v2379 = vrot.slane %v1670, 1
  %v2380 = vsel %vm2290, %v2378, %v2379
  %v2381 = vrot.slane %v2284, 1
  %v2382 = vrot.slane %v1671, 1
  %v2383 = vsel %vm2290, %v2381, %v2382
  %v2384 = vrot.slane %v2285, 1
  %v2385 = vrot.slane %v1672, 1
  %v2386 = vsel %vm2290, %v2384, %v2385
  %v2387 = vrot.slane %v2286, 1
  %v2388 = vrot.slane %v1673, 1
  %v2389 = vsel %vm2290, %v2387, %v2388
  %v2390 = vrot.slane %v2287, 1
  %v2391 = vrot.slane %v1674, 1
  %v2392 = vsel %vm2290, %v2390, %v2391
  %v2393 = vrot.slane %v2288, 1
  %v2394 = vrot.slane %v1675, 1
  %v2395 = vsel %vm2290, %v2393, %v2394
  %v2396 = vrot.slane %v2289, 1
  %v2397 = vrot.slane %v1676, 1
  %v2398 = vsel %vm2290, %v2396, %v2397
  %2399 = vrot.lane.b32.xlu0 %v2293, 8
  %v2400 = vpop.permute.xlu0 %2399
  %2401 = vrot.lane.b32.xlu0 %v2296, 8
  %v2402 = vpop.permute.xlu0 %2401
  %2403 = vrot.lane.b32.xlu0 %v2299, 8
  %v2404 = vpop.permute.xlu0 %2403
  %2405 = vrot.lane.b32.xlu0 %v2302, 8
  %v2406 = vpop.permute.xlu0 %2405
  %2407 = vrot.lane.b32.xlu0 %v2305, 8
  %v2408 = vpop.permute.xlu0 %2407
  %2409 = vrot.lane.b32.xlu0 %v2308, 8
  %v2410 = vpop.permute.xlu0 %2409
  %2411 = vrot.lane.b32.xlu0 %v2311, 8
  %v2412 = vpop.permute.xlu0 %2411
  %2413 = vrot.lane.b32.xlu0 %v2314, 8
  %v2414 = vpop.permute.xlu0 %2413
  %2415 = vrot.lane.b32.xlu0 %v2317, 8
  %v2416 = vpop.permute.xlu0 %2415
  %2417 = vrot.lane.b32.xlu0 %v2320, 8
  %v2418 = vpop.permute.xlu0 %2417
  %2419 = vrot.lane.b32.xlu0 %v2323, 8
  %v2420 = vpop.permute.xlu0 %2419
  %2421 = vrot.lane.b32.xlu0 %v2326, 8
  %v2422 = vpop.permute.xlu0 %2421
  %2423 = vrot.lane.b32.xlu0 %v2329, 8
  %v2424 = vpop.permute.xlu0 %2423
  %2425 = vrot.lane.b32.xlu0 %v2332, 8
  %v2426 = vpop.permute.xlu0 %2425
  %2427 = vrot.lane.b32.xlu0 %v2335, 8
  %v2428 = vpop.permute.xlu0 %2427
  %2429 = vrot.lane.b32.xlu0 %v2338, 8
  %v2430 = vpop.permute.xlu0 %2429
  %2431 = vrot.lane.b32.xlu0 %v2341, 8
  %v2432 = vpop.permute.xlu0 %2431
  %2433 = vrot.lane.b32.xlu0 %v2344, 8
  %v2434 = vpop.permute.xlu0 %2433
  %2435 = vrot.lane.b32.xlu0 %v2347, 8
  %v2436 = vpop.permute.xlu0 %2435
  %2437 = vrot.lane.b32.xlu0 %v2350, 8
  %v2438 = vpop.permute.xlu0 %2437
  %2439 = vrot.lane.b32.xlu0 %v2353, 8
  %v2440 = vpop.permute.xlu0 %2439
  %2441 = vrot.lane.b32.xlu0 %v2356, 8
  %v2442 = vpop.permute.xlu0 %2441
  %2443 = vrot.lane.b32.xlu0 %v2359, 8
  %v2444 = vpop.permute.xlu0 %2443
  %2445 = vrot.lane.b32.xlu0 %v2362, 8
  %v2446 = vpop.permute.xlu0 %2445
  %2447 = vrot.lane.b32.xlu0 %v2365, 8
  %v2448 = vpop.permute.xlu0 %2447
  %2449 = vrot.lane.b32.xlu0 %v2368, 8
  %v2450 = vpop.permute.xlu0 %2449
  %2451 = vrot.lane.b32.xlu0 %v2371, 8
  %v2452 = vpop.permute.xlu0 %2451
  %2453 = vrot.lane.b32.xlu0 %v2374, 8
  %v2454 = vpop.permute.xlu0 %2453
  %2455 = vrot.lane.b32.xlu0 %v2377, 8
  %v2456 = vpop.permute.xlu0 %2455
  %2457 = vrot.lane.b32.xlu0 %v2380, 8
  %v2458 = vpop.permute.xlu0 %2457
  %2459 = vrot.lane.b32.xlu0 %v2383, 8
  %v2460 = vpop.permute.xlu0 %2459
  %2461 = vrot.lane.b32.xlu0 %v2386, 8
  %v2462 = vpop.permute.xlu0 %2461
  %2463 = vrot.lane.b32.xlu0 %v2389, 8
  %v2464 = vpop.permute.xlu0 %2463
  %2465 = vrot.lane.b32.xlu0 %v2392, 8
  %v2466 = vpop.permute.xlu0 %2465
  %2467 = vrot.lane.b32.xlu0 %v2395, 8
  %v2468 = vpop.permute.xlu0 %2467
  %2469 = vrot.lane.b32.xlu0 %v2398, 8
  %v2470 = vpop.permute.xlu0 %2469
  %vm2471 = vcmask 31744
  %v2473 = vsel %vm2471, %v1533, %v2111
  %v2475 = vsel %vm2471, %v1534, %v2113
  %v2477 = vsel %vm2471, %v1535, %v2115
  %v2479 = vsel %vm2471, %v1536, %v2117
  %v2481 = vsel %vm2471, %v1537, %v2119
  %v2483 = vsel %vm2471, %v1538, %v2121
  %v2485 = vsel %vm2471, %v1539, %v2123
  %v2487 = vsel %vm2471, %v1540, %v2125
  %v2489 = vsel %vm2471, %v1541, %v2127
  %v2491 = vsel %vm2471, %v1542, %v2129
  %v2493 = vsel %vm2471, %v1543, %v2131
  %v2495 = vsel %vm2471, %v1544, %v2133
  %v2497 = vsel %vm2471, %v1545, %v2135
  %v2499 = vsel %vm2471, %v1546, %v2137
  %v2501 = vsel %vm2471, %v1547, %v2139
  %v2503 = vsel %vm2471, %v1548, %v2141
  %v2505 = vsel %vm2471, %v1549, %v2143
  %v2507 = vsel %vm2471, %v1550, %v2145
  %v2509 = vsel %vm2471, %v1551, %v2147
  %v2511 = vsel %vm2471, %v1552, %v2149
  %v2513 = vsel %vm2471, %v1553, %v2151
  %v2515 = vsel %vm2471, %v1554, %v2153
  %v2517 = vsel %vm2471, %v1555, %v2155
  %v2519 = vsel %vm2471, %v1556, %v2157
  %v2521 = vsel %vm2471, %v1557, %v2159
  %v2523 = vsel %vm2471, %v1558, %v2161
  %v2525 = vsel %vm2471, %v1559, %v2163
  %v2527 = vsel %vm2471, %v1560, %v2165
  %v2529 = vsel %vm2471, %v1561, %v2167
  %v2531 = vsel %vm2471, %v1562, %v2169
  %v2533 = vsel %vm2471, %v1563, %v2171
  %v2535 = vsel %vm2471, %v1564, %v2173
  %v2537 = vsel %vm2471, %v1565, %v2175
  %v2539 = vsel %vm2471, %v1566, %v2177
  %v2541 = vsel %vm2471, %v1567, %v2179
  %v2543 = vsel %vm2471, %v1568, %v2181
  %vm2544 = vcmask 64512
  %v2546 = vsel %vm2544, %v2473, %v2400
  %v2548 = vsel %vm2544, %v2475, %v2402
  %v2550 = vsel %vm2544, %v2477, %v2404
  %v2552 = vsel %vm2544, %v2479, %v2406
  %v2554 = vsel %vm2544, %v2481, %v2408
  %v2556 = vsel %vm2544, %v2483, %v2410
  %v2558 = vsel %vm2544, %v2485, %v2412
  %v2560 = vsel %vm2544, %v2487, %v2414
  %v2562 = vsel %vm2544, %v2489, %v2416
  %v2564 = vsel %vm2544, %v2491, %v2418
  %v2566 = vsel %vm2544, %v2493, %v2420
  %v2568 = vsel %vm2544, %v2495, %v2422
  %v2570 = vsel %vm2544, %v2497, %v2424
  %v2572 = vsel %vm2544, %v2499, %v2426
  %v2574 = vsel %vm2544, %v2501, %v2428
  %v2576 = vsel %vm2544, %v2503, %v2430
  %v2578 = vsel %vm2544, %v2505, %v2432
  %v2580 = vsel %vm2544, %v2507, %v2434
  %v2582 = vsel %vm2544, %v2509, %v2436
  %v2584 = vsel %vm2544, %v2511, %v2438
  %v2586 = vsel %vm2544, %v2513, %v2440
  %v2588 = vsel %vm2544, %v2515, %v2442
  %v2590 = vsel %vm2544, %v2517, %v2444
  %v2592 = vsel %vm2544, %v2519, %v2446
  %v2594 = vsel %vm2544, %v2521, %v2448
  %v2596 = vsel %vm2544, %v2523, %v2450
  %v2598 = vsel %vm2544, %v2525, %v2452
  %v2600 = vsel %vm2544, %v2527, %v2454
  %v2602 = vsel %vm2544, %v2529, %v2456
  %v2604 = vsel %vm2544, %v2531, %v2458
  %v2606 = vsel %vm2544, %v2533, %v2460
  %v2608 = vsel %vm2544, %v2535, %v2462
  %v2610 = vsel %vm2544, %v2537, %v2464
  %v2612 = vsel %vm2544, %v2539, %v2466
  %v2614 = vsel %vm2544, %v2541, %v2468
  %v2616 = vsel %vm2544, %v2543, %v2470
  %v2617 = vld [vmem:[%s1] sm:$0xf]
  %s2618 = scalar_lea.vmem %s1, 4
  %v2619 = vld [vmem:[%s2618] sm:$0xf]
  %vm2620 = vcmask 97280
  %v2622 = vsel %vm2620, %v2619, 0
  %v2624 = vsel %vm2620, %v2548, 0
  %v2626 = vsel %vm2620, %v2550, 0
  %v2628 = vsel %vm2620, %v2552, 0
  %v2630 = vsel %vm2620, %v2554, 0
  %v2632 = vsel %vm2620, %v2556, 0
  %v2634 = vsel %vm2620, %v2558, 0
  %v2636 = vsel %vm2620, %v2560, 0
  %v2638 = vsel %vm2620, %v2562, 0
  %v2640 = vsel %vm2620, %v2564, 0
  %v2642 = vsel %vm2620, %v2566, 0
  %v2644 = vsel %vm2620, %v2568, 0
  %v2646 = vsel %vm2620, %v2570, 0
  %v2648 = vsel %vm2620, %v2572, 0
  %v2650 = vsel %vm2620, %v2574, 0
  %v2652 = vsel %vm2620, %v2576, 0
  %v2654 = vsel %vm2620, %v2578, 0
  %v2656 = vsel %vm2620, %v2584, 0
  %v2658 = vsel %vm2620, %v2586, 0
  %v2660 = vsel %vm2620, %v2588, 0
  %v2662 = vsel %vm2620, %v2590, 0
  %v2664 = vsel %vm2620, %v2592, 0
  %v2666 = vsel %vm2620, %v2594, 0
  %v2668 = vsel %vm2620, %v2596, 0
  %v2670 = vsel %vm2620, %v2598, 0
  %v2672 = vsel %vm2620, %v2600, 0
  %v2674 = vsel %vm2620, %v2602, 0
  %v2676 = vsel %vm2620, %v2604, 0
  %v2678 = vsel %vm2620, %v2606, 0
  %v2680 = vsel %vm2620, %v2608, 0
  %v2682 = vsel %vm2620, %v2610, 0
  %v2684 = vsel %vm2620, %v2612, 0
  %v2686 = vsel %vm2620, %v2614, 0
  %2688 = vmatpush.bf16.xpose.msra.mxu0 %v2638
  %2689 = vmatpush.bf16.xpose.msra.mxu0 %v2636
  %2690 = vmatpush.bf16.xpose.msra.mxu0 %v2634
  %2691 = vmatpush.bf16.xpose.msra.mxu0 %v2632
  %2692 = vmatpush.bf16.xpose.msra.mxu0 %v2630
  %2693 = vmatpush.bf16.xpose.msra.mxu0 %v2628
  %2694 = vmatpush.bf16.xpose.msra.mxu0 %v2626
  %2695 = vmatpush.bf16.xpose.msra.mxu0 %v2624
  %2696 = vmatmul.bf16.gmra.mxu0 %v2622
  %v2697 = vpop.f32.mrf.mxu0
  %v2698 = vadd.f32 0.0, %v2697
  %v2699 = vpop.f32.mrf.mxu0
  %2700 = vdwg.mxu0
  %2701 = vmatpush.bf16.xpose.msra.mxu0 %v2654
  %2702 = vmatpush.bf16.xpose.msra.mxu0 %v2652
  %2703 = vmatpush.bf16.xpose.msra.mxu0 %v2650
  %2704 = vmatpush.bf16.xpose.msra.mxu0 %v2648
  %2705 = vmatpush.bf16.xpose.msra.mxu0 %v2646
  %2706 = vmatpush.bf16.xpose.msra.mxu0 %v2644
  %2707 = vmatpush.bf16.xpose.msra.mxu0 %v2642
  %2708 = vmatpush.bf16.xpose.msra.mxu0 %v2640
  %2709 = vmatmul.bf16.gmra.mxu0 %v2622
  %v2710 = vpop.f32.mrf.mxu0
  %v2711 = vadd.f32 0.0, %v2710
  %v2712 = vpop.f32.mrf.mxu0
  %2713 = vdwg.mxu0
  %2714 = vmatpush.bf16.xpose.msra.mxu0 %v2670
  %2715 = vmatpush.bf16.xpose.msra.mxu0 %v2668
  %2716 = vmatpush.bf16.xpose.msra.mxu0 %v2666
  %2717 = vmatpush.bf16.xpose.msra.mxu0 %v2664
  %2718 = vmatpush.bf16.xpose.msra.mxu0 %v2662
  %2719 = vmatpush.bf16.xpose.msra.mxu0 %v2660
  %2720 = vmatpush.bf16.xpose.msra.mxu0 %v2658
  %2721 = vmatpush.bf16.xpose.msra.mxu0 %v2656
  %2722 = vmatmul.bf16.gmra.mxu0 %v2622
  %v2723 = vpop.f32.mrf.mxu0
  %v2724 = vadd.f32 0.0, %v2723
  %v2725 = vpop.f32.mrf.mxu0
  %2726 = vdwg.mxu0
  %2727 = vmatpush.bf16.xpose.msra.mxu0 %v2686
  %2728 = vmatpush.bf16.xpose.msra.mxu0 %v2684
  %2729 = vmatpush.bf16.xpose.msra.mxu0 %v2682
  %2730 = vmatpush.bf16.xpose.msra.mxu0 %v2680
  %2731 = vmatpush.bf16.xpose.msra.mxu0 %v2678
  %2732 = vmatpush.bf16.xpose.msra.mxu0 %v2676
  %2733 = vmatpush.bf16.xpose.msra.mxu0 %v2674
  %2734 = vmatpush.bf16.xpose.msra.mxu0 %v2672
  %2735 = vmatmul.bf16.gmra.mxu0 %v2622
  %v2736 = vpop.f32.mrf.mxu0
  %v2737 = vadd.f32 0.0, %v2736
  %v2738 = vpop.f32.mrf.mxu0
  %2739 = vdwg.mxu0
  %v2741 = vsel %vm2620, %v2617, 0
  %v2743 = vsel %vm2620, %v2546, 0
  %v2745 = vsel %vm2620, %v2582, 0
  %2747 = vmatpush.bf16.xpose.msra.mxu0 %v2636
  %2748 = vmatpush.bf16.xpose.msra.mxu0 %v2634
  %2749 = vmatpush.bf16.xpose.msra.mxu0 %v2632
  %2750 = vmatpush.bf16.xpose.msra.mxu0 %v2630
  %2751 = vmatpush.bf16.xpose.msra.mxu0 %v2628
  %2752 = vmatpush.bf16.xpose.msra.mxu0 %v2626
  %2753 = vmatpush.bf16.xpose.msra.mxu0 %v2624
  %2754 = vmatpush.bf16.xpose.msra.mxu0 %v2743
  %2755 = vmatmul.bf16.gmra.mxu0 %v2741
  %v2756 = vpop.f32.mrf.mxu0
  %v2757 = vadd.f32 %v2698, %v2756
  %v2758 = vpop.f32.mrf.mxu0
  %2759 = vdwg.mxu0
  %2760 = vmatpush.bf16.xpose.msra.mxu0 %v2652
  %2761 = vmatpush.bf16.xpose.msra.mxu0 %v2650
  %2762 = vmatpush.bf16.xpose.msra.mxu0 %v2648
  %2763 = vmatpush.bf16.xpose.msra.mxu0 %v2646
  %2764 = vmatpush.bf16.xpose.msra.mxu0 %v2644
  %2765 = vmatpush.bf16.xpose.msra.mxu0 %v2642
  %2766 = vmatpush.bf16.xpose.msra.mxu0 %v2640
  %2767 = vmatpush.bf16.xpose.msra.mxu0 %v2638
  %2768 = vmatmul.bf16.gmra.mxu0 %v2741
  %v2769 = vpop.f32.mrf.mxu0
  %v2770 = vadd.f32 %v2711, %v2769
  %v2771 = vpop.f32.mrf.mxu0
  %2772 = vdwg.mxu0
  %2773 = vmatpush.bf16.xpose.msra.mxu0 %v2668
  %2774 = vmatpush.bf16.xpose.msra.mxu0 %v2666
  %2775 = vmatpush.bf16.xpose.msra.mxu0 %v2664
  %2776 = vmatpush.bf16.xpose.msra.mxu0 %v2662
  %2777 = vmatpush.bf16.xpose.msra.mxu0 %v2660
  %2778 = vmatpush.bf16.xpose.msra.mxu0 %v2658
  %2779 = vmatpush.bf16.xpose.msra.mxu0 %v2656
  %2780 = vmatpush.bf16.xpose.msra.mxu0 %v2745
  %2781 = vmatmul.bf16.gmra.mxu0 %v2741
  %v2782 = vpop.f32.mrf.mxu0
  %v2783 = vadd.f32 %v2724, %v2782
  %v2784 = vpop.f32.mrf.mxu0
  %2785 = vdwg.mxu0
  %2786 = vmatpush.bf16.xpose.msra.mxu0 %v2684
  %2787 = vmatpush.bf16.xpose.msra.mxu0 %v2682
  %2788 = vmatpush.bf16.xpose.msra.mxu0 %v2680
  %2789 = vmatpush.bf16.xpose.msra.mxu0 %v2678
  %2790 = vmatpush.bf16.xpose.msra.mxu0 %v2676
  %2791 = vmatpush.bf16.xpose.msra.mxu0 %v2674
  %2792 = vmatpush.bf16.xpose.msra.mxu0 %v2672
  %2793 = vmatpush.bf16.xpose.msra.mxu0 %v2670
  %2794 = vmatmul.bf16.gmra.mxu0 %v2741
  %v2795 = vpop.f32.mrf.mxu0
  %v2796 = vadd.f32 %v2737, %v2795
  %v2797 = vpop.f32.mrf.mxu0
  %2798 = vdwg.mxu0
  %s2799 = scalar_lea.vmem %s1, 8
  %v2800 = vld [vmem:[%s2799] sm:$0xf]
  %v2802 = vsel %vm2620, %v2800, 0
  %v2804 = vsel %vm2620, %v2580, 0
  %v2806 = vsel %vm2620, %v2616, 0
  %2808 = vmatpush.bf16.xpose.msra.mxu0 %v2640
  %2809 = vmatpush.bf16.xpose.msra.mxu0 %v2638
  %2810 = vmatpush.bf16.xpose.msra.mxu0 %v2636
  %2811 = vmatpush.bf16.xpose.msra.mxu0 %v2634
  %2812 = vmatpush.bf16.xpose.msra.mxu0 %v2632
  %2813 = vmatpush.bf16.xpose.msra.mxu0 %v2630
  %2814 = vmatpush.bf16.xpose.msra.mxu0 %v2628
  %2815 = vmatpush.bf16.xpose.msra.mxu0 %v2626
  %2816 = vmatmul.bf16.gmra.mxu0 %v2802
  %v2817 = vpop.f32.mrf.mxu0
  %v2818 = vadd.f32 0.0, %v2817
  %v2819 = vpop.f32.mrf.mxu0
  %2820 = vdwg.mxu0
  %2821 = vmatpush.bf16.xpose.msra.mxu0 %v2804
  %2822 = vmatpush.bf16.xpose.msra.mxu0 %v2654
  %2823 = vmatpush.bf16.xpose.msra.mxu0 %v2652
  %2824 = vmatpush.bf16.xpose.msra.mxu0 %v2650
  %2825 = vmatpush.bf16.xpose.msra.mxu0 %v2648
  %2826 = vmatpush.bf16.xpose.msra.mxu0 %v2646
  %2827 = vmatpush.bf16.xpose.msra.mxu0 %v2644
  %2828 = vmatpush.bf16.xpose.msra.mxu0 %v2642
  %2829 = vmatmul.bf16.gmra.mxu0 %v2802
  %v2830 = vpop.f32.mrf.mxu0
  %v2831 = vadd.f32 0.0, %v2830
  %v2832 = vpop.f32.mrf.mxu0
  %2833 = vdwg.mxu0
  %2834 = vmatpush.bf16.xpose.msra.mxu0 %v2672
  %2835 = vmatpush.bf16.xpose.msra.mxu0 %v2670
  %2836 = vmatpush.bf16.xpose.msra.mxu0 %v2668
  %2837 = vmatpush.bf16.xpose.msra.mxu0 %v2666
  %2838 = vmatpush.bf16.xpose.msra.mxu0 %v2664
  %2839 = vmatpush.bf16.xpose.msra.mxu0 %v2662
  %2840 = vmatpush.bf16.xpose.msra.mxu0 %v2660
  %2841 = vmatpush.bf16.xpose.msra.mxu0 %v2658
  %2842 = vmatmul.bf16.gmra.mxu0 %v2802
  %v2843 = vpop.f32.mrf.mxu0
  %v2844 = vadd.f32 0.0, %v2843
  %v2845 = vpop.f32.mrf.mxu0
  %2846 = vdwg.mxu0
  %2847 = vmatpush.bf16.xpose.msra.mxu0 %v2806
  %2848 = vmatpush.bf16.xpose.msra.mxu0 %v2686
  %2849 = vmatpush.bf16.xpose.msra.mxu0 %v2684
  %2850 = vmatpush.bf16.xpose.msra.mxu0 %v2682
  %2851 = vmatpush.bf16.xpose.msra.mxu0 %v2680
  %2852 = vmatpush.bf16.xpose.msra.mxu0 %v2678
  %2853 = vmatpush.bf16.xpose.msra.mxu0 %v2676
  %2854 = vmatpush.bf16.xpose.msra.mxu0 %v2674
  %2855 = vmatmul.bf16.gmra.mxu0 %v2802
  %v2856 = vpop.f32.mrf.mxu0
  %v2857 = vadd.f32 0.0, %v2856
  %v2858 = vpop.f32.mrf.mxu0
  %2859 = vdwg.mxu0
  %v2860 = vadd.f32 %v2757, %v2818
  %v2861 = vadd.f32 %v2770, %v2831
  %v2862 = vadd.f32 %v2783, %v2844
  %v2863 = vadd.f32 %v2796, %v2857
  %v2864 = vld [vmem:[%s2] sm:$0xff]
  %v2865 = vld [vmem:[%s3] sm:$0xff]
  %v2866 = vadd.f32 %v2860, %v2861
  %v2867 = vadd.f32 %v2866, %v2862
  %v2868 = vadd.f32 %v2867, %v2863
  %2869 = vadd.xlane.f32.xlu0 %v2868
  %v2870 = vpop.xlane.xlu0 %2869
  %v2871 = vrcp.pop 512.0
  %v2872 = vmul.f32 512.0, %v2871
  %v2873 = vsub.f32 1.0, %v2872
  %v2874 = vmul.f32 %v2871, %v2873
  %v2875 = vadd.f32 %v2871, %v2874
  %vm2876 = vweird.f32 %v2871
  %v2877 = vsel %vm2876, %v2871, %v2875
  %v2878 = vmul.f32 %v2870, %v2877
  %v2879 = vsub.f32 %v2860, %v2878
  %v2880 = vsub.f32 %v2861, %v2878
  %v2881 = vsub.f32 %v2862, %v2878
  %v2882 = vsub.f32 %v2863, %v2878
  %v2883 = vmul.f32 %v2879, %v2879
  %v2884 = vmul.f32 %v2880, %v2880
  %v2885 = vmul.f32 %v2881, %v2881
  %v2886 = vmul.f32 %v2882, %v2882
  %v2887 = vadd.f32 %v2883, %v2884
  %v2888 = vadd.f32 %v2887, %v2885
  %v2889 = vadd.f32 %v2888, %v2886
  %2890 = vadd.xlane.f32.xlu0 %v2889
  %v2891 = vpop.xlane.xlu0 %2890
  %v2892 = vmul.f32 %v2891, %v2877
  %v2893 = vadd.f32 %v2892, 1e-05
  %v2894 = vrsqrt.pop %v2893
  %v2895 = vmul.f32 %v2894, %v2893
  %v2896 = vmul.f32 %v2895, %v2894
  %v2897 = vmul.f32 0.5, %v2896
  %v2898 = vsub.f32 1.5, %v2897
  %v2899 = vmul.f32 %v2894, %v2898
  %vm2900 = vweird.f32 %v2893
  %vm2901 = vweird.f32 %v2894
  %vm2902 = vmor %vm2900, %vm2901
  %v2903 = vsel %vm2902, %v2894, %v2899
  %v2904 = vmul.f32 %v2864, %v2903
  %2906 = vset.pattern.permute.xlu0 0
  %2907 = vperm.xlu0 %2906, %v2904
  %v2908 = vpop.permute.xlu0 %2907
  %v2910 = vmul.f32 %v2879, %v2908
  %v2911 = vmul.f32 %v2880, %v2908
  %v2912 = vmul.f32 %v2881, %v2908
  %v2913 = vmul.f32 %v2882, %v2908
  %2915 = vset.pattern.permute.xlu0 0
  %2916 = vperm.xlu0 %2915, %v2865
  %v2917 = vpop.permute.xlu0 %2916
  %v2919 = vadd.f32 %v2910, %v2917
  %v2920 = vadd.f32 %v2911, %v2917
  %v2921 = vadd.f32 %v2912, %v2917
  %v2922 = vadd.f32 %v2913, %v2917
  %v2923 = vmax.f32 %v2919, 0.0
  %v2924 = vmax.f32 %v2920, 0.0
  %v2925 = vmax.f32 %v2921, 0.0
  %v2926 = vmax.f32 %v2922, 0.0
  %2927 = vxpose.xlu0.b32.start [1/16] %v2923, 128
  %2928 = vxpose.xlu0.b32.cont [2/16] 0.0, 128
  %2929 = vxpose.xlu0.b32.cont [3/16] 0.0, 128
  %2930 = vxpose.xlu0.b32.cont [4/16] 0.0, 128
  %2931 = vxpose.xlu0.b32.cont [5/16] 0.0, 128
  %2932 = vxpose.xlu0.b32.cont [6/16] 0.0, 128
  %2933 = vxpose.xlu0.b32.cont [7/16] 0.0, 128
  %2934 = vxpose.xlu0.b32.cont [8/16] 0.0, 128
  %2935 = vxpose.xlu0.b32.cont [9/16] 0.0, 128
  %2936 = vxpose.xlu0.b32.cont [10/16] 0.0, 128
  %2937 = vxpose.xlu0.b32.cont [11/16] 0.0, 128
  %2938 = vxpose.xlu0.b32.cont [12/16] 0.0, 128
  %2939 = vxpose.xlu0.b32.cont [13/16] 0.0, 128
  %2940 = vxpose.xlu0.b32.cont [14/16] 0.0, 128
  %2941 = vxpose.xlu0.b32.cont [15/16] 0.0, 128
  %2942 = vxpose.xlu0.b32.end [16/16] 0.0, 128
  %v2943 = vpop.trf.xlu0
  %v2944 = vpop.trf.xlu0
  %v2945 = vpop.trf.xlu0
  %v2946 = vpop.trf.xlu0
  %v2947 = vpop.trf.xlu0
  %v2948 = vpop.trf.xlu0
  %v2949 = vpop.trf.xlu0
  %v2950 = vpop.trf.xlu0
  %v2951 = vpop.trf.xlu0
  %v2952 = vpop.trf.xlu0
  %v2953 = vpop.trf.xlu0
  %v2954 = vpop.trf.xlu0
  %v2955 = vpop.trf.xlu0
  %v2956 = vpop.trf.xlu0
  %v2957 = vpop.trf.xlu0
  %v2958 = vpop.trf.xlu0
  %2959 = vxpose.xlu0.b32.start [1/16] %v2924, 128
  %2960 = vxpose.xlu0.b32.cont [2/16] 0.0, 128
  %2961 = vxpose.xlu0.b32.cont [3/16] 0.0, 128
  %2962 = vxpose.xlu0.b32.cont [4/16] 0.0, 128
  %2963 = vxpose.xlu0.b32.cont [5/16] 0.0, 128
  %2964 = vxpose.xlu0.b32.cont [6/16] 0.0, 128
  %2965 = vxpose.xlu0.b32.cont [7/16] 0.0, 128
  %2966 = vxpose.xlu0.b32.cont [8/16] 0.0, 128
  %2967 = vxpose.xlu0.b32.cont [9/16] 0.0, 128
  %2968 = vxpose.xlu0.b32.cont [10/16] 0.0, 128
  %2969 = vxpose.xlu0.b32.cont [11/16] 0.0, 128
  %2970 = vxpose.xlu0.b32.cont [12/16] 0.0, 128
  %2971 = vxpose.xlu0.b32.cont [13/16] 0.0, 128
  %2972 = vxpose.xlu0.b32.cont [14/16] 0.0, 128
  %2973 = vxpose.xlu0.b32.cont [15/16] 0.0, 128
  %2974 = vxpose.xlu0.b32.end [16/16] 0.0, 128
  %v2975 = vpop.trf.xlu0
  %v2976 = vpop.trf.xlu0
  %v2977 = vpop.trf.xlu0
  %v2978 = vpop.trf.xlu0
  %v2979 = vpop.trf.xlu0
  %v2980 = vpop.trf.xlu0
  %v2981 = vpop.trf.xlu0
  %v2982 = vpop.trf.xlu0
  %v2983 = vpop.trf.xlu0
  %v2984 = vpop.trf.xlu0
  %v2985 = vpop.trf.xlu0
  %v2986 = vpop.trf.xlu0
  %v2987 = vpop.trf.xlu0
  %v2988 = vpop.trf.xlu0
  %v2989 = vpop.trf.xlu0
  %v2990 = vpop.trf.xlu0
  %2991 = vxpose.xlu0.b32.start [1/16] %v2925, 128
  %2992 = vxpose.xlu0.b32.cont [2/16] 0.0, 128
  %2993 = vxpose.xlu0.b32.cont [3/16] 0.0, 128
  %2994 = vxpose.xlu0.b32.cont [4/16] 0.0, 128
  %2995 = vxpose.xlu0.b32.cont [5/16] 0.0, 128
  %2996 = vxpose.xlu0.b32.cont [6/16] 0.0, 128
  %2997 = vxpose.xlu0.b32.cont [7/16] 0.0, 128
  %2998 = vxpose.xlu0.b32.cont [8/16] 0.0, 128
  %2999 = vxpose.xlu0.b32.cont [9/16] 0.0, 128
  %3000 = vxpose.xlu0.b32.cont [10/16] 0.0, 128
  %3001 = vxpose.xlu0.b32.cont [11/16] 0.0, 128
  %3002 = vxpose.xlu0.b32.cont [12/16] 0.0, 128
  %3003 = vxpose.xlu0.b32.cont [13/16] 0.0, 128
  %3004 = vxpose.xlu0.b32.cont [14/16] 0.0, 128
  %3005 = vxpose.xlu0.b32.cont [15/16] 0.0, 128
  %3006 = vxpose.xlu0.b32.end [16/16] 0.0, 128
  %v3007 = vpop.trf.xlu0
  %v3008 = vpop.trf.xlu0
  %v3009 = vpop.trf.xlu0
  %v3010 = vpop.trf.xlu0
  %v3011 = vpop.trf.xlu0
  %v3012 = vpop.trf.xlu0
  %v3013 = vpop.trf.xlu0
  %v3014 = vpop.trf.xlu0
  %v3015 = vpop.trf.xlu0
  %v3016 = vpop.trf.xlu0
  %v3017 = vpop.trf.xlu0
  %v3018 = vpop.trf.xlu0
  %v3019 = vpop.trf.xlu0
  %v3020 = vpop.trf.xlu0
  %v3021 = vpop.trf.xlu0
  %v3022 = vpop.trf.xlu0
  %3023 = vxpose.xlu0.b32.start [1/16] %v2926, 128
  %3024 = vxpose.xlu0.b32.cont [2/16] 0.0, 128
  %3025 = vxpose.xlu0.b32.cont [3/16] 0.0, 128
  %3026 = vxpose.xlu0.b32.cont [4/16] 0.0, 128
  %3027 = vxpose.xlu0.b32.cont [5/16] 0.0, 128
  %3028 = vxpose.xlu0.b32.cont [6/16] 0.0, 128
  %3029 = vxpose.xlu0.b32.cont [7/16] 0.0, 128
  %3030 = vxpose.xlu0.b32.cont [8/16] 0.0, 128
  %3031 = vxpose.xlu0.b32.cont [9/16] 0.0, 128
  %3032 = vxpose.xlu0.b32.cont [10/16] 0.0, 128
  %3033 = vxpose.xlu0.b32.cont [11/16] 0.0, 128
  %3034 = vxpose.xlu0.b32.cont [12/16] 0.0, 128
  %3035 = vxpose.xlu0.b32.cont [13/16] 0.0, 128
  %3036 = vxpose.xlu0.b32.cont [14/16] 0.0, 128
  %3037 = vxpose.xlu0.b32.cont [15/16] 0.0, 128
  %3038 = vxpose.xlu0.b32.end [16/16] 0.0, 128
  %v3039 = vpop.trf.xlu0
  %v3040 = vpop.trf.xlu0
  %v3041 = vpop.trf.xlu0
  %v3042 = vpop.trf.xlu0
  %v3043 = vpop.trf.xlu0
  %v3044 = vpop.trf.xlu0
  %v3045 = vpop.trf.xlu0
  %v3046 = vpop.trf.xlu0
  %v3047 = vpop.trf.xlu0
  %v3048 = vpop.trf.xlu0
  %v3049 = vpop.trf.xlu0
  %v3050 = vpop.trf.xlu0
  %v3051 = vpop.trf.xlu0
  %v3052 = vpop.trf.xlu0
  %v3053 = vpop.trf.xlu0
  %v3054 = vpop.trf.xlu0
  %v3055 = vpack.c.bf16 %v2943, %v2943
  %v3056 = vpack.c.bf16 %v2944, %v2944
  %v3057 = vpack.c.bf16 %v2945, %v2945
  %v3058 = vpack.c.bf16 %v2946, %v2946
  %v3059 = vpack.c.bf16 %v2947, %v2947
  %v3060 = vpack.c.bf16 %v2948, %v2948
  %v3061 = vpack.c.bf16 %v2949, %v2949
  %v3062 = vpack.c.bf16 %v2950, %v2950
  %v3063 = vpack.c.bf16 %v2951, %v2951
  %v3064 = vpack.c.bf16 %v2952, %v2952
  %v3065 = vpack.c.bf16 %v2953, %v2953
  %v3066 = vpack.c.bf16 %v2954, %v2954
  %v3067 = vpack.c.bf16 %v2955, %v2955
  %v3068 = vpack.c.bf16 %v2956, %v2956
  %v3069 = vpack.c.bf16 %v2957, %v2957
  %v3070 = vpack.c.bf16 %v2958, %v2958
  %v3071 = vpack.c.bf16 %v2975, %v2975
  %v3072 = vpack.c.bf16 %v2976, %v2976
  %v3073 = vpack.c.bf16 %v2977, %v2977
  %v3074 = vpack.c.bf16 %v2978, %v2978
  %v3075 = vpack.c.bf16 %v2979, %v2979
  %v3076 = vpack.c.bf16 %v2980, %v2980
  %v3077 = vpack.c.bf16 %v2981, %v2981
  %v3078 = vpack.c.bf16 %v2982, %v2982
  %v3079 = vpack.c.bf16 %v2983, %v2983
  %v3080 = vpack.c.bf16 %v2984, %v2984
  %v3081 = vpack.c.bf16 %v2985, %v2985
  %v3082 = vpack.c.bf16 %v2986, %v2986
  %v3083 = vpack.c.bf16 %v2987, %v2987
  %v3084 = vpack.c.bf16 %v2988, %v2988
  %v3085 = vpack.c.bf16 %v2989, %v2989
  %v3086 = vpack.c.bf16 %v2990, %v2990
  %v3087 = vpack.c.bf16 %v3007, %v3007
  %v3088 = vpack.c.bf16 %v3008, %v3008
  %v3089 = vpack.c.bf16 %v3009, %v3009
  %v3090 = vpack.c.bf16 %v3010, %v3010
  %v3091 = vpack.c.bf16 %v3011, %v3011
  %v3092 = vpack.c.bf16 %v3012, %v3012
  %v3093 = vpack.c.bf16 %v3013, %v3013
  %v3094 = vpack.c.bf16 %v3014, %v3014
  %v3095 = vpack.c.bf16 %v3015, %v3015
  %v3096 = vpack.c.bf16 %v3016, %v3016
  %v3097 = vpack.c.bf16 %v3017, %v3017
  %v3098 = vpack.c.bf16 %v3018, %v3018
  %v3099 = vpack.c.bf16 %v3019, %v3019
  %v3100 = vpack.c.bf16 %v3020, %v3020
  %v3101 = vpack.c.bf16 %v3021, %v3021
  %v3102 = vpack.c.bf16 %v3022, %v3022
  %v3103 = vpack.c.bf16 %v3039, %v3039
  %v3104 = vpack.c.bf16 %v3040, %v3040
  %v3105 = vpack.c.bf16 %v3041, %v3041
  %v3106 = vpack.c.bf16 %v3042, %v3042
  %v3107 = vpack.c.bf16 %v3043, %v3043
  %v3108 = vpack.c.bf16 %v3044, %v3044
  %v3109 = vpack.c.bf16 %v3045, %v3045
  %v3110 = vpack.c.bf16 %v3046, %v3046
  %v3111 = vpack.c.bf16 %v3047, %v3047
  %v3112 = vpack.c.bf16 %v3048, %v3048
  %v3113 = vpack.c.bf16 %v3049, %v3049
  %v3114 = vpack.c.bf16 %v3050, %v3050
  %v3115 = vpack.c.bf16 %v3051, %v3051
  %v3116 = vpack.c.bf16 %v3052, %v3052
  %v3117 = vpack.c.bf16 %v3053, %v3053
  %v3118 = vpack.c.bf16 %v3054, %v3054
  %vm3119 = vcmask 60416
  %3120 = vst.msk [vmem:[#allocation3] sm:$0xf] %vm3119, 0
  %3121 = vst.msk [vmem:[#allocation3 + $0x4] sm:$0xf] %vm3119, 0
  %vm3122 = vcmask 57344
  %3123 = vst.msk [vmem:[#allocation3 + $0x8] sm:$0x1] %vm3122, 0
  %3124 = vst.msk [vmem:[#allocation3 + $0xd8] sm:$0xf] %vm3119, 0
  %3125 = vst.msk [vmem:[#allocation3 + $0xdc] sm:$0xf] %vm3119, 0
  %3126 = vst.msk [vmem:[#allocation3 + $0xe0] sm:$0x1] %vm3122, 0
  %s3127 = scalar_lea.vmem [#allocation3], 204
  %3128 = vst.msk [vmem:[%s3127] sm:$0xf] %vm3119, 0
  %3129 = vst.msk [vmem:[%s3127 + $0x4] sm:$0xf] %vm3119, 0
  %3130 = vst.msk [vmem:[%s3127 + $0x8] sm:$0x1] %vm3122, 0
  %3131 = vst.msk [vmem:[%s3127 + $0xd8] sm:$0xf] %vm3119, 0
  %3132 = vst.msk [vmem:[%s3127 + $0xdc] sm:$0xf] %vm3119, 0
  %3133 = vst.msk [vmem:[%s3127 + $0xe0] sm:$0x1] %vm3122, 0
  %s3134 = scalar_lea.vmem [#allocation3], 12
  %vm3135 = vcmask 57344
  %vm3136 = vmand %vm3135, %vm181
  %v3137 = vld [vmem:[%s3134] sm:$0x1]
  %v3138 = vsel %vm3136, 0, %v3137
  %3139 = vst [vmem:[%s3134] sm:$0x1] %v3138
  %v3140 = vld [vmem:[%s3134 + $0xc] sm:$0x1]
  %v3141 = vsel %vm3136, 0, %v3140
  %3142 = vst [vmem:[%s3134 + $0xc] sm:$0x1] %v3141
  %v3143 = vld [vmem:[%s3134 + $0x18] sm:$0x1]
  %v3144 = vsel %vm3136, 0, %v3143
  %3145 = vst [vmem:[%s3134 + $0x18] sm:$0x1] %v3144
  %v3146 = vld [vmem:[%s3134 + $0x24] sm:$0x1]
  %v3147 = vsel %vm3136, 0, %v3146
  %3148 = vst [vmem:[%s3134 + $0x24] sm:$0x1] %v3147
  %v3149 = vld [vmem:[%s3134 + $0x30] sm:$0x1]
  %v3150 = vsel %vm3136, 0, %v3149
  %3151 = vst [vmem:[%s3134 + $0x30] sm:$0x1] %v3150
  %v3152 = vld [vmem:[%s3134 + $0x3c] sm:$0x1]
  %v3153 = vsel %vm3136, 0, %v3152
  %3154 = vst [vmem:[%s3134 + $0x3c] sm:$0x1] %v3153
  %v3155 = vld [vmem:[%s3134 + $0x48] sm:$0x1]
  %v3156 = vsel %vm3136, 0, %v3155
  %3157 = vst [vmem:[%s3134 + $0x48] sm:$0x1] %v3156
  %v3158 = vld [vmem:[%s3134 + $0x54] sm:$0x1]
  %v3159 = vsel %vm3136, 0, %v3158
  %3160 = vst [vmem:[%s3134 + $0x54] sm:$0x1] %v3159
  %v3161 = vld [vmem:[%s3134 + $0x60] sm:$0x1]
  %v3162 = vsel %vm3136, 0, %v3161
  %3163 = vst [vmem:[%s3134 + $0x60] sm:$0x1] %v3162
  %v3164 = vld [vmem:[%s3134 + $0x6c] sm:$0x1]
  %v3165 = vsel %vm3136, 0, %v3164
  %3166 = vst [vmem:[%s3134 + $0x6c] sm:$0x1] %v3165
  %v3167 = vld [vmem:[%s3134 + $0x78] sm:$0x1]
  %v3168 = vsel %vm3136, 0, %v3167
  %3169 = vst [vmem:[%s3134 + $0x78] sm:$0x1] %v3168
  %v3170 = vld [vmem:[%s3134 + $0x84] sm:$0x1]
  %v3171 = vsel %vm3136, 0, %v3170
  %3172 = vst [vmem:[%s3134 + $0x84] sm:$0x1] %v3171
  %v3173 = vld [vmem:[%s3134 + $0x90] sm:$0x1]
  %v3174 = vsel %vm3136, 0, %v3173
  %3175 = vst [vmem:[%s3134 + $0x90] sm:$0x1] %v3174
  %v3176 = vld [vmem:[%s3134 + $0x9c] sm:$0x1]
  %v3177 = vsel %vm3136, 0, %v3176
  %3178 = vst [vmem:[%s3134 + $0x9c] sm:$0x1] %v3177
  %v3179 = vld [vmem:[%s3134 + $0xa8] sm:$0x1]
  %v3180 = vsel %vm3136, 0, %v3179
  %3181 = vst [vmem:[%s3134 + $0xa8] sm:$0x1] %v3180
  %v3182 = vld [vmem:[%s3134 + $0xb4] sm:$0x1]
  %v3183 = vsel %vm3136, 0, %v3182
  %3184 = vst [vmem:[%s3134 + $0xb4] sm:$0x1] %v3183
  %v3185 = vld [vmem:[%s3134 + $0xd8] sm:$0x1]
  %v3186 = vsel %vm3136, 0, %v3185
  %3187 = vst [vmem:[%s3134 + $0xd8] sm:$0x1] %v3186
  %v3188 = vld [vmem:[%s3134 + $0xe4] sm:$0x1]
  %v3189 = vsel %vm3136, 0, %v3188
  %3190 = vst [vmem:[%s3134 + $0xe4] sm:$0x1] %v3189
  %v3191 = vld [vmem:[%s3134 + $0xf0] sm:$0x1]
  %v3192 = vsel %vm3136, 0, %v3191
  %3193 = vst [vmem:[%s3134 + $0xf0] sm:$0x1] %v3192
  %v3194 = vld [vmem:[%s3134 + $0xfc] sm:$0x1]
  %v3195 = vsel %vm3136, 0, %v3194
  %3196 = vst [vmem:[%s3134 + $0xfc] sm:$0x1] %v3195
  %v3197 = vld [vmem:[%s3134 + $0x108] sm:$0x1]
  %v3198 = vsel %vm3136, 0, %v3197
  %3199 = vst [vmem:[%s3134 + $0x108] sm:$0x1] %v3198
  %v3200 = vld [vmem:[%s3134 + $0x114] sm:$0x1]
  %v3201 = vsel %vm3136, 0, %v3200
  %3202 = vst [vmem:[%s3134 + $0x114] sm:$0x1] %v3201
  %v3203 = vld [vmem:[%s3134 + $0x120] sm:$0x1]
  %v3204 = vsel %vm3136, 0, %v3203
  %3205 = vst [vmem:[%s3134 + $0x120] sm:$0x1] %v3204
  %v3206 = vld [vmem:[%s3134 + $0x12c] sm:$0x1]
  %v3207 = vsel %vm3136, 0, %v3206
  %3208 = vst [vmem:[%s3134 + $0x12c] sm:$0x1] %v3207
  %v3209 = vld [vmem:[%s3134 + $0x138] sm:$0x1]
  %v3210 = vsel %vm3136, 0, %v3209
  %3211 = vst [vmem:[%s3134 + $0x138] sm:$0x1] %v3210
  %v3212 = vld [vmem:[%s3134 + $0x144] sm:$0x1]
  %v3213 = vsel %vm3136, 0, %v3212
  %3214 = vst [vmem:[%s3134 + $0x144] sm:$0x1] %v3213
  %v3215 = vld [vmem:[%s3134 + $0x150] sm:$0x1]
  %v3216 = vsel %vm3136, 0, %v3215
  %3217 = vst [vmem:[%s3134 + $0x150] sm:$0x1] %v3216
  %v3218 = vld [vmem:[%s3134 + $0x15c] sm:$0x1]
  %v3219 = vsel %vm3136, 0, %v3218
  %3220 = vst [vmem:[%s3134 + $0x15c] sm:$0x1] %v3219
  %v3221 = vld [vmem:[%s3134 + $0x168] sm:$0x1]
  %v3222 = vsel %vm3136, 0, %v3221
  %3223 = vst [vmem:[%s3134 + $0x168] sm:$0x1] %v3222
  %v3224 = vld [vmem:[%s3134 + $0x174] sm:$0x1]
  %v3225 = vsel %vm3136, 0, %v3224
  %3226 = vst [vmem:[%s3134 + $0x174] sm:$0x1] %v3225
  %v3227 = vld [vmem:[%s3134 + $0x180] sm:$0x1]
  %v3228 = vsel %vm3136, 0, %v3227
  %3229 = vst [vmem:[%s3134 + $0x180] sm:$0x1] %v3228
  %v3230 = vld [vmem:[%s3134 + $0x18c] sm:$0x1]
  %v3231 = vsel %vm3136, 0, %v3230
  %3232 = vst [vmem:[%s3134 + $0x18c] sm:$0x1] %v3231
  %vm3233 = vmand %vm3135, %vm279
  %v3234 = vld [vmem:[%s3134 + $0x8] sm:$0x1]
  %v3235 = vsel %vm3233, 0, %v3234
  %3236 = vst [vmem:[%s3134 + $0x8] sm:$0x1] %v3235
  %v3237 = vld [vmem:[%s3134 + $0x14] sm:$0x1]
  %v3238 = vsel %vm3233, 0, %v3237
  %3239 = vst [vmem:[%s3134 + $0x14] sm:$0x1] %v3238
  %v3240 = vld [vmem:[%s3134 + $0x20] sm:$0x1]
  %v3241 = vsel %vm3233, 0, %v3240
  %3242 = vst [vmem:[%s3134 + $0x20] sm:$0x1] %v3241
  %v3243 = vld [vmem:[%s3134 + $0x2c] sm:$0x1]
  %v3244 = vsel %vm3233, 0, %v3243
  %3245 = vst [vmem:[%s3134 + $0x2c] sm:$0x1] %v3244
  %v3246 = vld [vmem:[%s3134 + $0x38] sm:$0x1]
  %v3247 = vsel %vm3233, 0, %v3246
  %3248 = vst [vmem:[%s3134 + $0x38] sm:$0x1] %v3247
  %v3249 = vld [vmem:[%s3134 + $0x44] sm:$0x1]
  %v3250 = vsel %vm3233, 0, %v3249
  %3251 = vst [vmem:[%s3134 + $0x44] sm:$0x1] %v3250
  %v3252 = vld [vmem:[%s3134 + $0x50] sm:$0x1]
  %v3253 = vsel %vm3233, 0, %v3252
  %3254 = vst [vmem:[%s3134 + $0x50] sm:$0x1] %v3253
  %v3255 = vld [vmem:[%s3134 + $0x5c] sm:$0x1]
  %v3256 = vsel %vm3233, 0, %v3255
  %3257 = vst [vmem:[%s3134 + $0x5c] sm:$0x1] %v3256
  %v3258 = vld [vmem:[%s3134 + $0x68] sm:$0x1]
  %v3259 = vsel %vm3233, 0, %v3258
  %3260 = vst [vmem:[%s3134 + $0x68] sm:$0x1] %v3259
  %v3261 = vld [vmem:[%s3134 + $0x74] sm:$0x1]
  %v3262 = vsel %vm3233, 0, %v3261
  %3263 = vst [vmem:[%s3134 + $0x74] sm:$0x1] %v3262
  %v3264 = vld [vmem:[%s3134 + $0x80] sm:$0x1]
  %v3265 = vsel %vm3233, 0, %v3264
  %3266 = vst [vmem:[%s3134 + $0x80] sm:$0x1] %v3265
  %v3267 = vld [vmem:[%s3134 + $0x8c] sm:$0x1]
  %v3268 = vsel %vm3233, 0, %v3267
  %3269 = vst [vmem:[%s3134 + $0x8c] sm:$0x1] %v3268
  %v3270 = vld [vmem:[%s3134 + $0x98] sm:$0x1]
  %v3271 = vsel %vm3233, 0, %v3270
  %3272 = vst [vmem:[%s3134 + $0x98] sm:$0x1] %v3271
  %v3273 = vld [vmem:[%s3134 + $0xa4] sm:$0x1]
  %v3274 = vsel %vm3233, 0, %v3273
  %3275 = vst [vmem:[%s3134 + $0xa4] sm:$0x1] %v3274
  %v3276 = vld [vmem:[%s3134 + $0xb0] sm:$0x1]
  %v3277 = vsel %vm3233, 0, %v3276
  %3278 = vst [vmem:[%s3134 + $0xb0] sm:$0x1] %v3277
  %v3279 = vld [vmem:[%s3134 + $0xbc] sm:$0x1]
  %v3280 = vsel %vm3233, 0, %v3279
  %3281 = vst [vmem:[%s3134 + $0xbc] sm:$0x1] %v3280
  %v3282 = vld [vmem:[%s3134 + $0xe0] sm:$0x1]
  %v3283 = vsel %vm3233, 0, %v3282
  %3284 = vst [vmem:[%s3134 + $0xe0] sm:$0x1] %v3283
  %v3285 = vld [vmem:[%s3134 + $0xec] sm:$0x1]
  %v3286 = vsel %vm3233, 0, %v3285
  %3287 = vst [vmem:[%s3134 + $0xec] sm:$0x1] %v3286
  %v3288 = vld [vmem:[%s3134 + $0xf8] sm:$0x1]
  %v3289 = vsel %vm3233, 0, %v3288
  %3290 = vst [vmem:[%s3134 + $0xf8] sm:$0x1] %v3289
  %v3291 = vld [vmem:[%s3134 + $0x104] sm:$0x1]
  %v3292 = vsel %vm3233, 0, %v3291
  %3293 = vst [vmem:[%s3134 + $0x104] sm:$0x1] %v3292
  %v3294 = vld [vmem:[%s3134 + $0x110] sm:$0x1]
  %v3295 = vsel %vm3233, 0, %v3294
  %3296 = vst [vmem:[%s3134 + $0x110] sm:$0x1] %v3295
  %v3297 = vld [vmem:[%s3134 + $0x11c] sm:$0x1]
  %v3298 = vsel %vm3233, 0, %v3297
  %3299 = vst [vmem:[%s3134 + $0x11c] sm:$0x1] %v3298
  %v3300 = vld [vmem:[%s3134 + $0x128] sm:$0x1]
  %v3301 = vsel %vm3233, 0, %v3300
  %3302 = vst [vmem:[%s3134 + $0x128] sm:$0x1] %v3301
  %v3303 = vld [vmem:[%s3134 + $0x134] sm:$0x1]
  %v3304 = vsel %vm3233, 0, %v3303
  %3305 = vst [vmem:[%s3134 + $0x134] sm:$0x1] %v3304
  %v3306 = vld [vmem:[%s3134 + $0x140] sm:$0x1]
  %v3307 = vsel %vm3233, 0, %v3306
  %3308 = vst [vmem:[%s3134 + $0x140] sm:$0x1] %v3307
  %v3309 = vld [vmem:[%s3134 + $0x14c] sm:$0x1]
  %v3310 = vsel %vm3233, 0, %v3309
  %3311 = vst [vmem:[%s3134 + $0x14c] sm:$0x1] %v3310
  %v3312 = vld [vmem:[%s3134 + $0x158] sm:$0x1]
  %v3313 = vsel %vm3233, 0, %v3312
  %3314 = vst [vmem:[%s3134 + $0x158] sm:$0x1] %v3313
  %v3315 = vld [vmem:[%s3134 + $0x164] sm:$0x1]
  %v3316 = vsel %vm3233, 0, %v3315
  %3317 = vst [vmem:[%s3134 + $0x164] sm:$0x1] %v3316
  %v3318 = vld [vmem:[%s3134 + $0x170] sm:$0x1]
  %v3319 = vsel %vm3233, 0, %v3318
  %3320 = vst [vmem:[%s3134 + $0x170] sm:$0x1] %v3319
  %v3321 = vld [vmem:[%s3134 + $0x17c] sm:$0x1]
  %v3322 = vsel %vm3233, 0, %v3321
  %3323 = vst [vmem:[%s3134 + $0x17c] sm:$0x1] %v3322
  %v3324 = vld [vmem:[%s3134 + $0x188] sm:$0x1]
  %v3325 = vsel %vm3233, 0, %v3324
  %3326 = vst [vmem:[%s3134 + $0x188] sm:$0x1] %v3325
  %v3327 = vld [vmem:[%s3134 + $0x194] sm:$0x1]
  %v3328 = vsel %vm3233, 0, %v3327
  %3329 = vst [vmem:[%s3134 + $0x194] sm:$0x1] %v3328
  %v3331 = vshrl.u32 %v3055, 16
  %v3333 = vrot.slane %v3331, 7
  %v3334 = vshll.u32 %v3055, 16
  %v3336 = vor.u32 %v3333, %v3334
  %v3337 = vrot.slane %v3333, 4
  %v3339 = vshrl.u32 %v3056, 16
  %v3341 = vrot.slane %v3339, 7
  %v3342 = vshll.u32 %v3056, 16
  %v3344 = vor.u32 %v3341, %v3342
  %v3345 = vsel %vm378, %v3337, %v3344
  %v3346 = vrot.slane %v3341, 4
  %v3348 = vshrl.u32 %v3057, 16
  %v3350 = vrot.slane %v3348, 7
  %v3351 = vshll.u32 %v3057, 16
  %v3353 = vor.u32 %v3350, %v3351
  %v3354 = vrot.slane %v3350, 4
  %v3356 = vshrl.u32 %v3058, 16
  %v3358 = vrot.slane %v3356, 7
  %v3359 = vshll.u32 %v3058, 16
  %v3361 = vor.u32 %v3358, %v3359
  %v3362 = vsel %vm378, %v3354, %v3361
  %v3363 = vrot.slane %v3358, 4
  %v3365 = vshrl.u32 %v3059, 16
  %v3367 = vrot.slane %v3365, 7
  %v3368 = vshll.u32 %v3059, 16
  %v3370 = vor.u32 %v3367, %v3368
  %v3371 = vrot.slane %v3367, 4
  %v3373 = vshrl.u32 %v3060, 16
  %v3375 = vrot.slane %v3373, 7
  %v3376 = vshll.u32 %v3060, 16
  %v3378 = vor.u32 %v3375, %v3376
  %v3379 = vsel %vm378, %v3371, %v3378
  %v3380 = vrot.slane %v3375, 4
  %v3382 = vshrl.u32 %v3061, 16
  %v3384 = vrot.slane %v3382, 7
  %v3385 = vshll.u32 %v3061, 16
  %v3387 = vor.u32 %v3384, %v3385
  %v3388 = vrot.slane %v3384, 4
  %v3390 = vshrl.u32 %v3062, 16
  %v3392 = vrot.slane %v3390, 7
  %v3393 = vshll.u32 %v3062, 16
  %v3395 = vor.u32 %v3392, %v3393
  %v3396 = vsel %vm378, %v3388, %v3395
  %v3397 = vrot.slane %v3392, 4
  %v3399 = vshrl.u32 %v3063, 16
  %v3401 = vrot.slane %v3399, 7
  %v3402 = vshll.u32 %v3063, 16
  %v3404 = vor.u32 %v3401, %v3402
  %v3405 = vrot.slane %v3401, 4
  %v3407 = vshrl.u32 %v3064, 16
  %v3409 = vrot.slane %v3407, 7
  %v3410 = vshll.u32 %v3064, 16
  %v3412 = vor.u32 %v3409, %v3410
  %v3413 = vsel %vm378, %v3405, %v3412
  %v3414 = vrot.slane %v3409, 4
  %v3416 = vshrl.u32 %v3065, 16
  %v3418 = vrot.slane %v3416, 7
  %v3419 = vshll.u32 %v3065, 16
  %v3421 = vor.u32 %v3418, %v3419
  %v3422 = vrot.slane %v3418, 4
  %v3424 = vshrl.u32 %v3066, 16
  %v3426 = vrot.slane %v3424, 7
  %v3427 = vshll.u32 %v3066, 16
  %v3429 = vor.u32 %v3426, %v3427
  %v3430 = vsel %vm378, %v3422, %v3429
  %v3431 = vrot.slane %v3426, 4
  %v3433 = vshrl.u32 %v3067, 16
  %v3435 = vrot.slane %v3433, 7
  %v3436 = vshll.u32 %v3067, 16
  %v3438 = vor.u32 %v3435, %v3436
  %v3439 = vrot.slane %v3435, 4
  %v3441 = vshrl.u32 %v3068, 16
  %v3443 = vrot.slane %v3441, 7
  %v3444 = vshll.u32 %v3068, 16
  %v3446 = vor.u32 %v3443, %v3444
  %v3447 = vsel %vm378, %v3439, %v3446
  %v3448 = vrot.slane %v3443, 4
  %v3450 = vshrl.u32 %v3069, 16
  %v3452 = vrot.slane %v3450, 7
  %v3453 = vshll.u32 %v3069, 16
  %v3455 = vor.u32 %v3452, %v3453
  %v3456 = vrot.slane %v3452, 4
  %v3458 = vshrl.u32 %v3070, 16
  %v3460 = vrot.slane %v3458, 7
  %v3461 = vshll.u32 %v3070, 16
  %v3463 = vor.u32 %v3460, %v3461
  %v3464 = vsel %vm378, %v3456, %v3463
  %v3465 = vrot.slane %v3460, 4
  %v3467 = vshrl.u32 %v3071, 16
  %v3469 = vrot.slane %v3467, 7
  %v3470 = vshll.u32 %v3071, 16
  %v3472 = vor.u32 %v3469, %v3470
  %v3473 = vrot.slane %v3469, 4
  %v3475 = vshrl.u32 %v3072, 16
  %v3477 = vrot.slane %v3475, 7
  %v3478 = vshll.u32 %v3072, 16
  %v3480 = vor.u32 %v3477, %v3478
  %v3481 = vsel %vm378, %v3473, %v3480
  %v3482 = vrot.slane %v3477, 4
  %v3484 = vshrl.u32 %v3073, 16
  %v3486 = vrot.slane %v3484, 7
  %v3487 = vshll.u32 %v3073, 16
  %v3489 = vor.u32 %v3486, %v3487
  %v3490 = vrot.slane %v3486, 4
  %v3492 = vshrl.u32 %v3074, 16
  %v3494 = vrot.slane %v3492, 7
  %v3495 = vshll.u32 %v3074, 16
  %v3497 = vor.u32 %v3494, %v3495
  %v3498 = vsel %vm378, %v3490, %v3497
  %v3499 = vrot.slane %v3494, 4
  %v3501 = vshrl.u32 %v3075, 16
  %v3503 = vrot.slane %v3501, 7
  %v3504 = vshll.u32 %v3075, 16
  %v3506 = vor.u32 %v3503, %v3504
  %v3507 = vrot.slane %v3503, 4
  %v3509 = vshrl.u32 %v3076, 16
  %v3511 = vrot.slane %v3509, 7
  %v3512 = vshll.u32 %v3076, 16
  %v3514 = vor.u32 %v3511, %v3512
  %v3515 = vsel %vm378, %v3507, %v3514
  %v3516 = vrot.slane %v3511, 4
  %v3518 = vshrl.u32 %v3077, 16
  %v3520 = vrot.slane %v3518, 7
  %v3521 = vshll.u32 %v3077, 16
  %v3523 = vor.u32 %v3520, %v3521
  %v3524 = vrot.slane %v3520, 4
  %v3526 = vshrl.u32 %v3078, 16
  %v3528 = vrot.slane %v3526, 7
  %v3529 = vshll.u32 %v3078, 16
  %v3531 = vor.u32 %v3528, %v3529
  %v3532 = vsel %vm378, %v3524, %v3531
  %v3533 = vrot.slane %v3528, 4
  %v3535 = vshrl.u32 %v3079, 16
  %v3537 = vrot.slane %v3535, 7
  %v3538 = vshll.u32 %v3079, 16
  %v3540 = vor.u32 %v3537, %v3538
  %v3541 = vrot.slane %v3537, 4
  %v3543 = vshrl.u32 %v3080, 16
  %v3545 = vrot.slane %v3543, 7
  %v3546 = vshll.u32 %v3080, 16
  %v3548 = vor.u32 %v3545, %v3546
  %v3549 = vsel %vm378, %v3541, %v3548
  %v3550 = vrot.slane %v3545, 4
  %v3552 = vshrl.u32 %v3081, 16
  %v3554 = vrot.slane %v3552, 7
  %v3555 = vshll.u32 %v3081, 16
  %v3557 = vor.u32 %v3554, %v3555
  %v3558 = vrot.slane %v3554, 4
  %v3560 = vshrl.u32 %v3082, 16
  %v3562 = vrot.slane %v3560, 7
  %v3563 = vshll.u32 %v3082, 16
  %v3565 = vor.u32 %v3562, %v3563
  %v3566 = vsel %vm378, %v3558, %v3565
  %v3567 = vrot.slane %v3562, 4
  %v3569 = vshrl.u32 %v3083, 16
  %v3571 = vrot.slane %v3569, 7
  %v3572 = vshll.u32 %v3083, 16
  %v3574 = vor.u32 %v3571, %v3572
  %v3575 = vrot.slane %v3571, 4
  %v3577 = vshrl.u32 %v3084, 16
  %v3579 = vrot.slane %v3577, 7
  %v3580 = vshll.u32 %v3084, 16
  %v3582 = vor.u32 %v3579, %v3580
  %v3583 = vsel %vm378, %v3575, %v3582
  %v3584 = vrot.slane %v3579, 4
  %v3586 = vshrl.u32 %v3085, 16
  %v3588 = vrot.slane %v3586, 7
  %v3589 = vshll.u32 %v3085, 16
  %v3591 = vor.u32 %v3588, %v3589
  %v3592 = vrot.slane %v3588, 4
  %v3594 = vshrl.u32 %v3086, 16
  %v3596 = vrot.slane %v3594, 7
  %v3597 = vshll.u32 %v3086, 16
  %v3599 = vor.u32 %v3596, %v3597
  %v3600 = vsel %vm378, %v3592, %v3599
  %v3601 = vrot.slane %v3596, 4
  %v3603 = vshrl.u32 %v3087, 16
  %v3605 = vrot.slane %v3603, 7
  %v3606 = vshll.u32 %v3087, 16
  %v3608 = vor.u32 %v3605, %v3606
  %v3609 = vrot.slane %v3605, 4
  %v3611 = vshrl.u32 %v3088, 16
  %v3613 = vrot.slane %v3611, 7
  %v3614 = vshll.u32 %v3088, 16
  %v3616 = vor.u32 %v3613, %v3614
  %v3617 = vsel %vm378, %v3609, %v3616
  %v3618 = vrot.slane %v3613, 4
  %v3620 = vshrl.u32 %v3089, 16
  %v3622 = vrot.slane %v3620, 7
  %v3623 = vshll.u32 %v3089, 16
  %v3625 = vor.u32 %v3622, %v3623
  %v3626 = vrot.slane %v3622, 4
  %v3628 = vshrl.u32 %v3090, 16
  %v3630 = vrot.slane %v3628, 7
  %v3631 = vshll.u32 %v3090, 16
  %v3633 = vor.u32 %v3630, %v3631
  %v3634 = vsel %vm378, %v3626, %v3633
  %v3635 = vrot.slane %v3630, 4
  %v3637 = vshrl.u32 %v3091, 16
  %v3639 = vrot.slane %v3637, 7
  %v3640 = vshll.u32 %v3091, 16
  %v3642 = vor.u32 %v3639, %v3640
  %v3643 = vrot.slane %v3639, 4
  %v3645 = vshrl.u32 %v3092, 16
  %v3647 = vrot.slane %v3645, 7
  %v3648 = vshll.u32 %v3092, 16
  %v3650 = vor.u32 %v3647, %v3648
  %v3651 = vsel %vm378, %v3643, %v3650
  %v3652 = vrot.slane %v3647, 4
  %v3654 = vshrl.u32 %v3093, 16
  %v3656 = vrot.slane %v3654, 7
  %v3657 = vshll.u32 %v3093, 16
  %v3659 = vor.u32 %v3656, %v3657
  %v3660 = vrot.slane %v3656, 4
  %v3662 = vshrl.u32 %v3094, 16
  %v3664 = vrot.slane %v3662, 7
  %v3665 = vshll.u32 %v3094, 16
  %v3667 = vor.u32 %v3664, %v3665
  %v3668 = vsel %vm378, %v3660, %v3667
  %v3669 = vrot.slane %v3664, 4
  %v3671 = vshrl.u32 %v3095, 16
  %v3673 = vrot.slane %v3671, 7
  %v3674 = vshll.u32 %v3095, 16
  %v3676 = vor.u32 %v3673, %v3674
  %v3677 = vrot.slane %v3673, 4
  %v3679 = vshrl.u32 %v3096, 16
  %v3681 = vrot.slane %v3679, 7
  %v3682 = vshll.u32 %v3096, 16
  %v3684 = vor.u32 %v3681, %v3682
  %v3685 = vsel %vm378, %v3677, %v3684
  %v3686 = vrot.slane %v3681, 4
  %v3688 = vshrl.u32 %v3097, 16
  %v3690 = vrot.slane %v3688, 7
  %v3691 = vshll.u32 %v3097, 16
  %v3693 = vor.u32 %v3690, %v3691
  %v3694 = vrot.slane %v3690, 4
  %v3696 = vshrl.u32 %v3098, 16
  %v3698 = vrot.slane %v3696, 7
  %v3699 = vshll.u32 %v3098, 16
  %v3701 = vor.u32 %v3698, %v3699
  %v3702 = vsel %vm378, %v3694, %v3701
  %v3703 = vrot.slane %v3698, 4
  %v3705 = vshrl.u32 %v3099, 16
  %v3707 = vrot.slane %v3705, 7
  %v3708 = vshll.u32 %v3099, 16
  %v3710 = vor.u32 %v3707, %v3708
  %v3711 = vrot.slane %v3707, 4
  %v3713 = vshrl.u32 %v3100, 16
  %v3715 = vrot.slane %v3713, 7
  %v3716 = vshll.u32 %v3100, 16
  %v3718 = vor.u32 %v3715, %v3716
  %v3719 = vsel %vm378, %v3711, %v3718
  %v3720 = vrot.slane %v3715, 4
  %v3722 = vshrl.u32 %v3101, 16
  %v3724 = vrot.slane %v3722, 7
  %v3725 = vshll.u32 %v3101, 16
  %v3727 = vor.u32 %v3724, %v3725
  %v3728 = vrot.slane %v3724, 4
  %v3730 = vshrl.u32 %v3102, 16
  %v3732 = vrot.slane %v3730, 7
  %v3733 = vshll.u32 %v3102, 16
  %v3735 = vor.u32 %v3732, %v3733
  %v3736 = vsel %vm378, %v3728, %v3735
  %v3737 = vrot.slane %v3732, 4
  %v3739 = vshrl.u32 %v3103, 16
  %v3741 = vrot.slane %v3739, 7
  %v3742 = vshll.u32 %v3103, 16
  %v3744 = vor.u32 %v3741, %v3742
  %v3745 = vrot.slane %v3741, 4
  %v3747 = vshrl.u32 %v3104, 16
  %v3749 = vrot.slane %v3747, 7
  %v3750 = vshll.u32 %v3104, 16
  %v3752 = vor.u32 %v3749, %v3750
  %v3753 = vsel %vm378, %v3745, %v3752
  %v3754 = vrot.slane %v3749, 4
  %v3756 = vshrl.u32 %v3105, 16
  %v3758 = vrot.slane %v3756, 7
  %v3759 = vshll.u32 %v3105, 16
  %v3761 = vor.u32 %v3758, %v3759
  %v3762 = vrot.slane %v3758, 4
  %v3764 = vshrl.u32 %v3106, 16
  %v3766 = vrot.slane %v3764, 7
  %v3767 = vshll.u32 %v3106, 16
  %v3769 = vor.u32 %v3766, %v3767
  %v3770 = vsel %vm378, %v3762, %v3769
  %v3771 = vrot.slane %v3766, 4
  %v3773 = vshrl.u32 %v3107, 16
  %v3775 = vrot.slane %v3773, 7
  %v3776 = vshll.u32 %v3107, 16
  %v3778 = vor.u32 %v3775, %v3776
  %v3779 = vrot.slane %v3775, 4
  %v3781 = vshrl.u32 %v3108, 16
  %v3783 = vrot.slane %v3781, 7
  %v3784 = vshll.u32 %v3108, 16
  %v3786 = vor.u32 %v3783, %v3784
  %v3787 = vsel %vm378, %v3779, %v3786
  %v3788 = vrot.slane %v3783, 4
  %v3790 = vshrl.u32 %v3109, 16
  %v3792 = vrot.slane %v3790, 7
  %v3793 = vshll.u32 %v3109, 16
  %v3795 = vor.u32 %v3792, %v3793
  %v3796 = vrot.slane %v3792, 4
  %v3798 = vshrl.u32 %v3110, 16
  %v3800 = vrot.slane %v3798, 7
  %v3801 = vshll.u32 %v3110, 16
  %v3803 = vor.u32 %v3800, %v3801
  %v3804 = vsel %vm378, %v3796, %v3803
  %v3805 = vrot.slane %v3800, 4
  %v3807 = vshrl.u32 %v3111, 16
  %v3809 = vrot.slane %v3807, 7
  %v3810 = vshll.u32 %v3111, 16
  %v3812 = vor.u32 %v3809, %v3810
  %v3813 = vrot.slane %v3809, 4
  %v3815 = vshrl.u32 %v3112, 16
  %v3817 = vrot.slane %v3815, 7
  %v3818 = vshll.u32 %v3112, 16
  %v3820 = vor.u32 %v3817, %v3818
  %v3821 = vsel %vm378, %v3813, %v3820
  %v3822 = vrot.slane %v3817, 4
  %v3824 = vshrl.u32 %v3113, 16
  %v3826 = vrot.slane %v3824, 7
  %v3827 = vshll.u32 %v3113, 16
  %v3829 = vor.u32 %v3826, %v3827
  %v3830 = vrot.slane %v3826, 4
  %v3832 = vshrl.u32 %v3114, 16
  %v3834 = vrot.slane %v3832, 7
  %v3835 = vshll.u32 %v3114, 16
  %v3837 = vor.u32 %v3834, %v3835
  %v3838 = vsel %vm378, %v3830, %v3837
  %v3839 = vrot.slane %v3834, 4
  %v3841 = vshrl.u32 %v3115, 16
  %v3843 = vrot.slane %v3841, 7
  %v3844 = vshll.u32 %v3115, 16
  %v3846 = vor.u32 %v3843, %v3844
  %v3847 = vrot.slane %v3843, 4
  %v3849 = vshrl.u32 %v3116, 16
  %v3851 = vrot.slane %v3849, 7
  %v3852 = vshll.u32 %v3116, 16
  %v3854 = vor.u32 %v3851, %v3852
  %v3855 = vsel %vm378, %v3847, %v3854
  %v3856 = vrot.slane %v3851, 4
  %v3858 = vshrl.u32 %v3117, 16
  %v3860 = vrot.slane %v3858, 7
  %v3861 = vshll.u32 %v3117, 16
  %v3863 = vor.u32 %v3860, %v3861
  %v3864 = vrot.slane %v3860, 4
  %v3866 = vshrl.u32 %v3118, 16
  %v3868 = vrot.slane %v3866, 7
  %v3869 = vshll.u32 %v3118, 16
  %v3871 = vor.u32 %v3868, %v3869
  %v3872 = vsel %vm378, %v3864, %v3871
  %v3873 = vrot.slane %v3868, 4
  %vm3970 = vcmask 60416
  %vm3971 = vmand %vm3970, %vm279
  %v3972 = vld [vmem:[%s3134] sm:$0xf]
  %v3973 = vsel %vm3971, %v3336, %v3972
  %3974 = vst [vmem:[%s3134] sm:$0xf] %v3973
  %3975 = vst.msk [vmem:[%s3134 + $0x4] sm:$0xf] %vm3119, %v3345
  %v3976 = vld [vmem:[%s3134 + $0x8] sm:$0x1]
  %v3977 = vsel %vm3136, %v3346, %v3976
  %3978 = vst [vmem:[%s3134 + $0x8] sm:$0x1] %v3977
  %v3979 = vld [vmem:[%s3134 + $0xc] sm:$0xf]
  %v3980 = vsel %vm3971, %v3353, %v3979
  %3981 = vst [vmem:[%s3134 + $0xc] sm:$0xf] %v3980
  %3982 = vst.msk [vmem:[%s3134 + $0x10] sm:$0xf] %vm3119, %v3362
  %v3983 = vld [vmem:[%s3134 + $0x14] sm:$0x1]
  %v3984 = vsel %vm3136, %v3363, %v3983
  %3985 = vst [vmem:[%s3134 + $0x14] sm:$0x1] %v3984
  %v3986 = vld [vmem:[%s3134 + $0x18] sm:$0xf]
  %v3987 = vsel %vm3971, %v3370, %v3986
  %3988 = vst [vmem:[%s3134 + $0x18] sm:$0xf] %v3987
  %3989 = vst.msk [vmem:[%s3134 + $0x1c] sm:$0xf] %vm3119, %v3379
  %v3990 = vld [vmem:[%s3134 + $0x20] sm:$0x1]
  %v3991 = vsel %vm3136, %v3380, %v3990
  %3992 = vst [vmem:[%s3134 + $0x20] sm:$0x1] %v3991
  %v3993 = vld [vmem:[%s3134 + $0x24] sm:$0xf]
  %v3994 = vsel %vm3971, %v3387, %v3993
  %3995 = vst [vmem:[%s3134 + $0x24] sm:$0xf] %v3994
  %3996 = vst.msk [vmem:[%s3134 + $0x28] sm:$0xf] %vm3119, %v3396
  %v3997 = vld [vmem:[%s3134 + $0x2c] sm:$0x1]
  %v3998 = vsel %vm3136, %v3397, %v3997
  %3999 = vst [vmem:[%s3134 + $0x2c] sm:$0x1] %v3998
  %v4000 = vld [vmem:[%s3134 + $0x30] sm:$0xf]
  %v4001 = vsel %vm3971, %v3404, %v4000
  %4002 = vst [vmem:[%s3134 + $0x30] sm:$0xf] %v4001
  %4003 = vst.msk [vmem:[%s3134 + $0x34] sm:$0xf] %vm3119, %v3413
  %v4004 = vld [vmem:[%s3134 + $0x38] sm:$0x1]
  %v4005 = vsel %vm3136, %v3414, %v4004
  %4006 = vst [vmem:[%s3134 + $0x38] sm:$0x1] %v4005
  %v4007 = vld [vmem:[%s3134 + $0x3c] sm:$0xf]
  %v4008 = vsel %vm3971, %v3421, %v4007
  %4009 = vst [vmem:[%s3134 + $0x3c] sm:$0xf] %v4008
  %4010 = vst.msk [vmem:[%s3134 + $0x40] sm:$0xf] %vm3119, %v3430
  %v4011 = vld [vmem:[%s3134 + $0x44] sm:$0x1]
  %v4012 = vsel %vm3136, %v3431, %v4011
  %4013 = vst [vmem:[%s3134 + $0x44] sm:$0x1] %v4012
  %v4014 = vld [vmem:[%s3134 + $0x48] sm:$0xf]
  %v4015 = vsel %vm3971, %v3438, %v4014
  %4016 = vst [vmem:[%s3134 + $0x48] sm:$0xf] %v4015
  %4017 = vst.msk [vmem:[%s3134 + $0x4c] sm:$0xf] %vm3119, %v3447
  %v4018 = vld [vmem:[%s3134 + $0x50] sm:$0x1]
  %v4019 = vsel %vm3136, %v3448, %v4018
  %4020 = vst [vmem:[%s3134 + $0x50] sm:$0x1] %v4019
  %v4021 = vld [vmem:[%s3134 + $0x54] sm:$0xf]
  %v4022 = vsel %vm3971, %v3455, %v4021
  %4023 = vst [vmem:[%s3134 + $0x54] sm:$0xf] %v4022
  %4024 = vst.msk [vmem:[%s3134 + $0x58] sm:$0xf] %vm3119, %v3464
  %v4025 = vld [vmem:[%s3134 + $0x5c] sm:$0x1]
  %v4026 = vsel %vm3136, %v3465, %v4025
  %4027 = vst [vmem:[%s3134 + $0x5c] sm:$0x1] %v4026
  %v4028 = vld [vmem:[%s3134 + $0x60] sm:$0xf]
  %v4029 = vsel %vm3971, %v3472, %v4028
  %4030 = vst [vmem:[%s3134 + $0x60] sm:$0xf] %v4029
  %4031 = vst.msk [vmem:[%s3134 + $0x64] sm:$0xf] %vm3119, %v3481
  %v4032 = vld [vmem:[%s3134 + $0x68] sm:$0x1]
  %v4033 = vsel %vm3136, %v3482, %v4032
  %4034 = vst [vmem:[%s3134 + $0x68] sm:$0x1] %v4033
  %v4035 = vld [vmem:[%s3134 + $0x6c] sm:$0xf]
  %v4036 = vsel %vm3971, %v3489, %v4035
  %4037 = vst [vmem:[%s3134 + $0x6c] sm:$0xf] %v4036
  %4038 = vst.msk [vmem:[%s3134 + $0x70] sm:$0xf] %vm3119, %v3498
  %v4039 = vld [vmem:[%s3134 + $0x74] sm:$0x1]
  %v4040 = vsel %vm3136, %v3499, %v4039
  %4041 = vst [vmem:[%s3134 + $0x74] sm:$0x1] %v4040
  %v4042 = vld [vmem:[%s3134 + $0x78] sm:$0xf]
  %v4043 = vsel %vm3971, %v3506, %v4042
  %4044 = vst [vmem:[%s3134 + $0x78] sm:$0xf] %v4043
  %4045 = vst.msk [vmem:[%s3134 + $0x7c] sm:$0xf] %vm3119, %v3515
  %v4046 = vld [vmem:[%s3134 + $0x80] sm:$0x1]
  %v4047 = vsel %vm3136, %v3516, %v4046
  %4048 = vst [vmem:[%s3134 + $0x80] sm:$0x1] %v4047
  %v4049 = vld [vmem:[%s3134 + $0x84] sm:$0xf]
  %v4050 = vsel %vm3971, %v3523, %v4049
  %4051 = vst [vmem:[%s3134 + $0x84] sm:$0xf] %v4050
  %4052 = vst.msk [vmem:[%s3134 + $0x88] sm:$0xf] %vm3119, %v3532
  %v4053 = vld [vmem:[%s3134 + $0x8c] sm:$0x1]
  %v4054 = vsel %vm3136, %v3533, %v4053
  %4055 = vst [vmem:[%s3134 + $0x8c] sm:$0x1] %v4054
  %v4056 = vld [vmem:[%s3134 + $0x90] sm:$0xf]
  %v4057 = vsel %vm3971, %v3540, %v4056
  %4058 = vst [vmem:[%s3134 + $0x90] sm:$0xf] %v4057
  %4059 = vst.msk [vmem:[%s3134 + $0x94] sm:$0xf] %vm3119, %v3549
  %v4060 = vld [vmem:[%s3134 + $0x98] sm:$0x1]
  %v4061 = vsel %vm3136, %v3550, %v4060
  %4062 = vst [vmem:[%s3134 + $0x98] sm:$0x1] %v4061
  %v4063 = vld [vmem:[%s3134 + $0x9c] sm:$0xf]
  %v4064 = vsel %vm3971, %v3557, %v4063
  %4065 = vst [vmem:[%s3134 + $0x9c] sm:$0xf] %v4064
  %4066 = vst.msk [vmem:[%s3134 + $0xa0] sm:$0xf] %vm3119, %v3566
  %v4067 = vld [vmem:[%s3134 + $0xa4] sm:$0x1]
  %v4068 = vsel %vm3136, %v3567, %v4067
  %4069 = vst [vmem:[%s3134 + $0xa4] sm:$0x1] %v4068
  %v4070 = vld [vmem:[%s3134 + $0xa8] sm:$0xf]
  %v4071 = vsel %vm3971, %v3574, %v4070
  %4072 = vst [vmem:[%s3134 + $0xa8] sm:$0xf] %v4071
  %4073 = vst.msk [vmem:[%s3134 + $0xac] sm:$0xf] %vm3119, %v3583
  %v4074 = vld [vmem:[%s3134 + $0xb0] sm:$0x1]
  %v4075 = vsel %vm3136, %v3584, %v4074
  %4076 = vst [vmem:[%s3134 + $0xb0] sm:$0x1] %v4075
  %v4077 = vld [vmem:[%s3134 + $0xb4] sm:$0xf]
  %v4078 = vsel %vm3971, %v3591, %v4077
  %4079 = vst [vmem:[%s3134 + $0xb4] sm:$0xf] %v4078
  %4080 = vst.msk [vmem:[%s3134 + $0xb8] sm:$0xf] %vm3119, %v3600
  %v4081 = vld [vmem:[%s3134 + $0xbc] sm:$0x1]
  %v4082 = vsel %vm3136, %v3601, %v4081
  %4083 = vst [vmem:[%s3134 + $0xbc] sm:$0x1] %v4082
  %v4084 = vld [vmem:[%s3134 + $0xd8] sm:$0xf]
  %v4085 = vsel %vm3971, %v3608, %v4084
  %4086 = vst [vmem:[%s3134 + $0xd8] sm:$0xf] %v4085
  %4087 = vst.msk [vmem:[%s3134 + $0xdc] sm:$0xf] %vm3119, %v3617
  %v4088 = vld [vmem:[%s3134 + $0xe0] sm:$0x1]
  %v4089 = vsel %vm3136, %v3618, %v4088
  %4090 = vst [vmem:[%s3134 + $0xe0] sm:$0x1] %v4089
  %v4091 = vld [vmem:[%s3134 + $0xe4] sm:$0xf]
  %v4092 = vsel %vm3971, %v3625, %v4091
  %4093 = vst [vmem:[%s3134 + $0xe4] sm:$0xf] %v4092
  %4094 = vst.msk [vmem:[%s3134 + $0xe8] sm:$0xf] %vm3119, %v3634
  %v4095 = vld [vmem:[%s3134 + $0xec] sm:$0x1]
  %v4096 = vsel %vm3136, %v3635, %v4095
  %4097 = vst [vmem:[%s3134 + $0xec] sm:$0x1] %v4096
  %v4098 = vld [vmem:[%s3134 + $0xf0] sm:$0xf]
  %v4099 = vsel %vm3971, %v3642, %v4098
  %4100 = vst [vmem:[%s3134 + $0xf0] sm:$0xf] %v4099
  %4101 = vst.msk [vmem:[%s3134 + $0xf4] sm:$0xf] %vm3119, %v3651
  %v4102 = vld [vmem:[%s3134 + $0xf8] sm:$0x1]
  %v4103 = vsel %vm3136, %v3652, %v4102
  %4104 = vst [vmem:[%s3134 + $0xf8] sm:$0x1] %v4103
  %v4105 = vld [vmem:[%s3134 + $0xfc] sm:$0xf]
  %v4106 = vsel %vm3971, %v3659, %v4105
  %4107 = vst [vmem:[%s3134 + $0xfc] sm:$0xf] %v4106
  %4108 = vst.msk [vmem:[%s3134 + $0x100] sm:$0xf] %vm3119, %v3668
  %v4109 = vld [vmem:[%s3134 + $0x104] sm:$0x1]
  %v4110 = vsel %vm3136, %v3669, %v4109
  %4111 = vst [vmem:[%s3134 + $0x104] sm:$0x1] %v4110
  %v4112 = vld [vmem:[%s3134 + $0x108] sm:$0xf]
  %v4113 = vsel %vm3971, %v3676, %v4112
  %4114 = vst [vmem:[%s3134 + $0x108] sm:$0xf] %v4113
  %4115 = vst.msk [vmem:[%s3134 + $0x10c] sm:$0xf] %vm3119, %v3685
  %v4116 = vld [vmem:[%s3134 + $0x110] sm:$0x1]
  %v4117 = vsel %vm3136, %v3686, %v4116
  %4118 = vst [vmem:[%s3134 + $0x110] sm:$0x1] %v4117
  %v4119 = vld [vmem:[%s3134 + $0x114] sm:$0xf]
  %v4120 = vsel %vm3971, %v3693, %v4119
  %4121 = vst [vmem:[%s3134 + $0x114] sm:$0xf] %v4120
  %4122 = vst.msk [vmem:[%s3134 + $0x118] sm:$0xf] %vm3119, %v3702
  %v4123 = vld [vmem:[%s3134 + $0x11c] sm:$0x1]
  %v4124 = vsel %vm3136, %v3703, %v4123
  %4125 = vst [vmem:[%s3134 + $0x11c] sm:$0x1] %v4124
  %v4126 = vld [vmem:[%s3134 + $0x120] sm:$0xf]
  %v4127 = vsel %vm3971, %v3710, %v4126
  %4128 = vst [vmem:[%s3134 + $0x120] sm:$0xf] %v4127
  %4129 = vst.msk [vmem:[%s3134 + $0x124] sm:$0xf] %vm3119, %v3719
  %v4130 = vld [vmem:[%s3134 + $0x128] sm:$0x1]
  %v4131 = vsel %vm3136, %v3720, %v4130
  %4132 = vst [vmem:[%s3134 + $0x128] sm:$0x1] %v4131
  %v4133 = vld [vmem:[%s3134 + $0x12c] sm:$0xf]
  %v4134 = vsel %vm3971, %v3727, %v4133
  %4135 = vst [vmem:[%s3134 + $0x12c] sm:$0xf] %v4134
  %4136 = vst.msk [vmem:[%s3134 + $0x130] sm:$0xf] %vm3119, %v3736
  %v4137 = vld [vmem:[%s3134 + $0x134] sm:$0x1]
  %v4138 = vsel %vm3136, %v3737, %v4137
  %4139 = vst [vmem:[%s3134 + $0x134] sm:$0x1] %v4138
  %v4140 = vld [vmem:[%s3134 + $0x138] sm:$0xf]
  %v4141 = vsel %vm3971, %v3744, %v4140
  %4142 = vst [vmem:[%s3134 + $0x138] sm:$0xf] %v4141
  %4143 = vst.msk [vmem:[%s3134 + $0x13c] sm:$0xf] %vm3119, %v3753
  %v4144 = vld [vmem:[%s3134 + $0x140] sm:$0x1]
  %v4145 = vsel %vm3136, %v3754, %v4144
  %4146 = vst [vmem:[%s3134 + $0x140] sm:$0x1] %v4145
  %v4147 = vld [vmem:[%s3134 + $0x144] sm:$0xf]
  %v4148 = vsel %vm3971, %v3761, %v4147
  %4149 = vst [vmem:[%s3134 + $0x144] sm:$0xf] %v4148
  %4150 = vst.msk [vmem:[%s3134 + $0x148] sm:$0xf] %vm3119, %v3770
  %v4151 = vld [vmem:[%s3134 + $0x14c] sm:$0x1]
  %v4152 = vsel %vm3136, %v3771, %v4151
  %4153 = vst [vmem:[%s3134 + $0x14c] sm:$0x1] %v4152
  %v4154 = vld [vmem:[%s3134 + $0x150] sm:$0xf]
  %v4155 = vsel %vm3971, %v3778, %v4154
  %4156 = vst [vmem:[%s3134 + $0x150] sm:$0xf] %v4155
  %4157 = vst.msk [vmem:[%s3134 + $0x154] sm:$0xf] %vm3119, %v3787
  %v4158 = vld [vmem:[%s3134 + $0x158] sm:$0x1]
  %v4159 = vsel %vm3136, %v3788, %v4158
  %4160 = vst [vmem:[%s3134 + $0x158] sm:$0x1] %v4159
  %v4161 = vld [vmem:[%s3134 + $0x15c] sm:$0xf]
  %v4162 = vsel %vm3971, %v3795, %v4161
  %4163 = vst [vmem:[%s3134 + $0x15c] sm:$0xf] %v4162
  %4164 = vst.msk [vmem:[%s3134 + $0x160] sm:$0xf] %vm3119, %v3804
  %v4165 = vld [vmem:[%s3134 + $0x164] sm:$0x1]
  %v4166 = vsel %vm3136, %v3805, %v4165
  %4167 = vst [vmem:[%s3134 + $0x164] sm:$0x1] %v4166
  %v4168 = vld [vmem:[%s3134 + $0x168] sm:$0xf]
  %v4169 = vsel %vm3971, %v3812, %v4168
  %4170 = vst [vmem:[%s3134 + $0x168] sm:$0xf] %v4169
  %4171 = vst.msk [vmem:[%s3134 + $0x16c] sm:$0xf] %vm3119, %v3821
  %v4172 = vld [vmem:[%s3134 + $0x170] sm:$0x1]
  %v4173 = vsel %vm3136, %v3822, %v4172
  %4174 = vst [vmem:[%s3134 + $0x170] sm:$0x1] %v4173
  %v4175 = vld [vmem:[%s3134 + $0x174] sm:$0xf]
  %v4176 = vsel %vm3971, %v3829, %v4175
  %4177 = vst [vmem:[%s3134 + $0x174] sm:$0xf] %v4176
  %4178 = vst.msk [vmem:[%s3134 + $0x178] sm:$0xf] %vm3119, %v3838
  %v4179 = vld [vmem:[%s3134 + $0x17c] sm:$0x1]
  %v4180 = vsel %vm3136, %v3839, %v4179
  %4181 = vst [vmem:[%s3134 + $0x17c] sm:$0x1] %v4180
  %v4182 = vld [vmem:[%s3134 + $0x180] sm:$0xf]
  %v4183 = vsel %vm3971, %v3846, %v4182
  %4184 = vst [vmem:[%s3134 + $0x180] sm:$0xf] %v4183
  %4185 = vst.msk [vmem:[%s3134 + $0x184] sm:$0xf] %vm3119, %v3855
  %v4186 = vld [vmem:[%s3134 + $0x188] sm:$0x1]
  %v4187 = vsel %vm3136, %v3856, %v4186
  %4188 = vst [vmem:[%s3134 + $0x188] sm:$0x1] %v4187
  %v4189 = vld [vmem:[%s3134 + $0x18c] sm:$0xf]
  %v4190 = vsel %vm3971, %v3863, %v4189
  %4191 = vst [vmem:[%s3134 + $0x18c] sm:$0xf] %v4190
  %4192 = vst.msk [vmem:[%s3134 + $0x190] sm:$0xf] %vm3119, %v3872
  %v4193 = vld [vmem:[%s3134 + $0x194] sm:$0x1]
  %v4194 = vsel %vm3136, %v3873, %v4193
  %4195 = vst [vmem:[%s3134 + $0x194] sm:$0x1] %v4194
  %v4196 = vld [vmem:[#allocation3] sm:$0xf]
  %v4197 = vld [vmem:[#allocation3 + $0x4] sm:$0xf]
  %v4198 = vld [vmem:[#allocation3 + $0xc] sm:$0xf]
  %v4199 = vld [vmem:[#allocation3 + $0x10] sm:$0xf]
  %v4200 = vld [vmem:[#allocation3 + $0x18] sm:$0xf]
  %v4201 = vld [vmem:[#allocation3 + $0x1c] sm:$0xf]
  %v4202 = vld [vmem:[#allocation3 + $0x24] sm:$0xf]
  %v4203 = vld [vmem:[#allocation3 + $0x28] sm:$0xf]
  %v4204 = vld [vmem:[#allocation3 + $0x30] sm:$0xf]
  %v4205 = vld [vmem:[#allocation3 + $0x34] sm:$0xf]
  %v4206 = vld [vmem:[#allocation3 + $0x3c] sm:$0xf]
  %v4207 = vld [vmem:[#allocation3 + $0x40] sm:$0xf]
  %v4208 = vld [vmem:[#allocation3 + $0x48] sm:$0xf]
  %v4209 = vld [vmem:[#allocation3 + $0x4c] sm:$0xf]
  %v4210 = vld [vmem:[#allocation3 + $0x54] sm:$0xf]
  %v4211 = vld [vmem:[#allocation3 + $0x58] sm:$0xf]
  %v4212 = vld [vmem:[#allocation3 + $0x60] sm:$0xf]
  %v4213 = vld [vmem:[#allocation3 + $0x64] sm:$0xf]
  %v4214 = vld [vmem:[#allocation3 + $0x6c] sm:$0xf]
  %v4215 = vld [vmem:[#allocation3 + $0x70] sm:$0xf]
  %v4216 = vld [vmem:[#allocation3 + $0x78] sm:$0xf]
  %v4217 = vld [vmem:[#allocation3 + $0x7c] sm:$0xf]
  %v4218 = vld [vmem:[#allocation3 + $0x84] sm:$0xf]
  %v4219 = vld [vmem:[#allocation3 + $0x88] sm:$0xf]
  %v4220 = vld [vmem:[#allocation3 + $0x90] sm:$0xf]
  %v4221 = vld [vmem:[#allocation3 + $0x94] sm:$0xf]
  %v4222 = vld [vmem:[#allocation3 + $0x9c] sm:$0xf]
  %v4223 = vld [vmem:[#allocation3 + $0xa0] sm:$0xf]
  %v4224 = vld [vmem:[#allocation3 + $0xa8] sm:$0xf]
  %v4225 = vld [vmem:[#allocation3 + $0xac] sm:$0xf]
  %v4226 = vld [vmem:[#allocation3 + $0xb4] sm:$0xf]
  %v4227 = vld [vmem:[#allocation3 + $0xb8] sm:$0xf]
  %v4228 = vld [vmem:[#allocation3 + $0xc0] sm:$0xf]
  %v4229 = vld [vmem:[#allocation3 + $0xc4] sm:$0xf]
  %v4230 = vld [vmem:[#allocation3 + $0xcc] sm:$0xf]
  %v4231 = vld [vmem:[#allocation3 + $0xd0] sm:$0xf]
  %v4232 = vld [vmem:[#allocation3 + $0xd8] sm:$0xf]
  %v4233 = vld [vmem:[#allocation3 + $0xdc] sm:$0xf]
  %v4234 = vld [vmem:[#allocation3 + $0xe4] sm:$0xf]
  %v4235 = vld [vmem:[#allocation3 + $0xe8] sm:$0xf]
  %v4236 = vld [vmem:[#allocation3 + $0xf0] sm:$0xf]
  %v4237 = vld [vmem:[#allocation3 + $0xf4] sm:$0xf]
  %v4238 = vld [vmem:[#allocation3 + $0xfc] sm:$0xf]
  %v4239 = vld [vmem:[#allocation3 + $0x100] sm:$0xf]
  %v4240 = vld [vmem:[#allocation3 + $0x108] sm:$0xf]
  %v4241 = vld [vmem:[#allocation3 + $0x10c] sm:$0xf]
  %v4242 = vld [vmem:[#allocation3 + $0x114] sm:$0xf]
  %v4243 = vld [vmem:[#allocation3 + $0x118] sm:$0xf]
  %v4244 = vld [vmem:[#allocation3 + $0x120] sm:$0xf]
  %v4245 = vld [vmem:[#allocation3 + $0x124] sm:$0xf]
  %v4246 = vld [vmem:[#allocation3 + $0x12c] sm:$0xf]
  %v4247 = vld [vmem:[#allocation3 + $0x130] sm:$0xf]
  %v4248 = vld [vmem:[#allocation3 + $0x138] sm:$0xf]
  %v4249 = vld [vmem:[#allocation3 + $0x13c] sm:$0xf]
  %v4250 = vld [vmem:[#allocation3 + $0x144] sm:$0xf]
  %v4251 = vld [vmem:[#allocation3 + $0x148] sm:$0xf]
  %v4252 = vld [vmem:[#allocation3 + $0x150] sm:$0xf]
  %v4253 = vld [vmem:[#allocation3 + $0x154] sm:$0xf]
  %v4254 = vld [vmem:[#allocation3 + $0x15c] sm:$0xf]
  %v4255 = vld [vmem:[#allocation3 + $0x160] sm:$0xf]
  %v4256 = vld [vmem:[#allocation3 + $0x168] sm:$0xf]
  %v4257 = vld [vmem:[#allocation3 + $0x16c] sm:$0xf]
  %v4258 = vld [vmem:[#allocation3 + $0x174] sm:$0xf]
  %v4259 = vld [vmem:[#allocation3 + $0x178] sm:$0xf]
  %v4260 = vld [vmem:[#allocation3 + $0x180] sm:$0xf]
  %v4261 = vld [vmem:[#allocation3 + $0x184] sm:$0xf]
  %v4262 = vld [vmem:[#allocation3 + $0x18c] sm:$0xf]
  %v4263 = vld [vmem:[#allocation3 + $0x190] sm:$0xf]
  %v4264 = vld [vmem:[#allocation3 + $0x198] sm:$0xf]
  %v4265 = vld [vmem:[#allocation3 + $0x19c] sm:$0xf]
  %v4266 = vld [vmem:[#allocation3 + $0x1a4] sm:$0xf]
  %v4267 = vld [vmem:[#allocation3 + $0x1a8] sm:$0xf]
  %v4268 = vld [vmem:[#allocation3 + $0x8] sm:$0x1]
  %v4269 = vld [vmem:[#allocation3 + $0x14] sm:$0x1]
  %v4270 = vld [vmem:[#allocation3 + $0x20] sm:$0x1]
  %v4271 = vld [vmem:[#allocation3 + $0x2c] sm:$0x1]
  %v4272 = vld [vmem:[#allocation3 + $0x38] sm:$0x1]
  %v4273 = vld [vmem:[#allocation3 + $0x44] sm:$0x1]
  %v4274 = vld [vmem:[#allocation3 + $0x50] sm:$0x1]
  %v4275 = vld [vmem:[#allocation3 + $0x5c] sm:$0x1]
  %v4276 = vld [vmem:[#allocation3 + $0x68] sm:$0x1]
  %v4277 = vld [vmem:[#allocation3 + $0x74] sm:$0x1]
  %v4278 = vld [vmem:[#allocation3 + $0x80] sm:$0x1]
  %v4279 = vld [vmem:[#allocation3 + $0x8c] sm:$0x1]
  %v4280 = vld [vmem:[#allocation3 + $0x98] sm:$0x1]
  %v4281 = vld [vmem:[#allocation3 + $0xa4] sm:$0x1]
  %v4282 = vld [vmem:[#allocation3 + $0xb0] sm:$0x1]
  %v4283 = vld [vmem:[#allocation3 + $0xbc] sm:$0x1]
  %v4284 = vld [vmem:[#allocation3 + $0xc8] sm:$0x1]
  %v4285 = vld [vmem:[#allocation3 + $0xd4] sm:$0x1]
  %v4286 = vld [vmem:[#allocation3 + $0xe0] sm:$0x1]
  %v4287 = vld [vmem:[#allocation3 + $0xec] sm:$0x1]
  %v4288 = vld [vmem:[#allocation3 + $0xf8] sm:$0x1]
  %v4289 = vld [vmem:[#allocation3 + $0x104] sm:$0x1]
  %v4290 = vld [vmem:[#allocation3 + $0x110] sm:$0x1]
  %v4291 = vld [vmem:[#allocation3 + $0x11c] sm:$0x1]
  %v4292 = vld [vmem:[#allocation3 + $0x128] sm:$0x1]
  %v4293 = vld [vmem:[#allocation3 + $0x134] sm:$0x1]
  %v4294 = vld [vmem:[#allocation3 + $0x140] sm:$0x1]
  %v4295 = vld [vmem:[#allocation3 + $0x14c] sm:$0x1]
  %v4296 = vld [vmem:[#allocation3 + $0x158] sm:$0x1]
  %v4297 = vld [vmem:[#allocation3 + $0x164] sm:$0x1]
  %v4298 = vld [vmem:[#allocation3 + $0x170] sm:$0x1]
  %v4299 = vld [vmem:[#allocation3 + $0x17c] sm:$0x1]
  %v4300 = vld [vmem:[#allocation3 + $0x188] sm:$0x1]
  %v4301 = vld [vmem:[#allocation3 + $0x194] sm:$0x1]
  %v4302 = vld [vmem:[#allocation3 + $0x1a0] sm:$0x1]
  %v4303 = vld [vmem:[#allocation3 + $0x1ac] sm:$0x1]
  %v4304 = vld [vmem:[#allocation3] sm:$0xe]
  %v4305 = vld [vmem:[#allocation3 + $0xc] sm:$0xe]
  %v4306 = vld [vmem:[#allocation3 + $0x18] sm:$0xe]
  %v4307 = vld [vmem:[#allocation3 + $0x24] sm:$0xe]
  %v4308 = vld [vmem:[#allocation3 + $0x30] sm:$0xe]
  %v4309 = vld [vmem:[#allocation3 + $0x3c] sm:$0xe]
  %v4310 = vld [vmem:[#allocation3 + $0x48] sm:$0xe]
  %v4311 = vld [vmem:[#allocation3 + $0x54] sm:$0xe]
  %v4312 = vld [vmem:[#allocation3 + $0x60] sm:$0xe]
  %v4313 = vld [vmem:[#allocation3 + $0x6c] sm:$0xe]
  %v4314 = vld [vmem:[#allocation3 + $0x78] sm:$0xe]
  %v4315 = vld [vmem:[#allocation3 + $0x84] sm:$0xe]
  %v4316 = vld [vmem:[#allocation3 + $0x90] sm:$0xe]
  %v4317 = vld [vmem:[#allocation3 + $0x9c] sm:$0xe]
  %v4318 = vld [vmem:[#allocation3 + $0xa8] sm:$0xe]
  %v4319 = vld [vmem:[#allocation3 + $0xb4] sm:$0xe]
  %v4320 = vld [vmem:[#allocation3 + $0xc0] sm:$0xe]
  %v4321 = vld [vmem:[#allocation3 + $0xcc] sm:$0xe]
  %v4322 = vld [vmem:[#allocation3 + $0xd8] sm:$0xe]
  %v4323 = vld [vmem:[#allocation3 + $0xe4] sm:$0xe]
  %v4324 = vld [vmem:[#allocation3 + $0xf0] sm:$0xe]
  %v4325 = vld [vmem:[#allocation3 + $0xfc] sm:$0xe]
  %v4326 = vld [vmem:[#allocation3 + $0x108] sm:$0xe]
  %v4327 = vld [vmem:[#allocation3 + $0x114] sm:$0xe]
  %v4328 = vld [vmem:[#allocation3 + $0x120] sm:$0xe]
  %v4329 = vld [vmem:[#allocation3 + $0x12c] sm:$0xe]
  %v4330 = vld [vmem:[#allocation3 + $0x138] sm:$0xe]
  %v4331 = vld [vmem:[#allocation3 + $0x144] sm:$0xe]
  %v4332 = vld [vmem:[#allocation3 + $0x150] sm:$0xe]
  %v4333 = vld [vmem:[#allocation3 + $0x15c] sm:$0xe]
  %v4334 = vld [vmem:[#allocation3 + $0x168] sm:$0xe]
  %v4335 = vld [vmem:[#allocation3 + $0x174] sm:$0xe]
  %v4336 = vld [vmem:[#allocation3 + $0x180] sm:$0xe]
  %v4337 = vld [vmem:[#allocation3 + $0x18c] sm:$0xe]
  %v4338 = vld [vmem:[#allocation3 + $0x198] sm:$0xe]
  %v4339 = vld [vmem:[#allocation3 + $0x1a4] sm:$0xe]
  %v4412 = vunpack.c.l.b16 %v4196
  %v4413 = vunpack.c.l.b16 %v4197
  %v4414 = vunpack.c.l.b16 %v4198
  %v4415 = vunpack.c.l.b16 %v4199
  %v4416 = vunpack.c.l.b16 %v4200
  %v4417 = vunpack.c.l.b16 %v4201
  %v4418 = vunpack.c.l.b16 %v4202
  %v4419 = vunpack.c.l.b16 %v4203
  %v4420 = vunpack.c.l.b16 %v4204
  %v4421 = vunpack.c.l.b16 %v4205
  %v4422 = vunpack.c.l.b16 %v4206
  %v4423 = vunpack.c.l.b16 %v4207
  %v4424 = vunpack.c.l.b16 %v4208
  %v4425 = vunpack.c.l.b16 %v4209
  %v4426 = vunpack.c.l.b16 %v4210
  %v4427 = vunpack.c.l.b16 %v4211
  %v4428 = vunpack.c.l.b16 %v4212
  %v4429 = vunpack.c.l.b16 %v4213
  %v4430 = vunpack.c.l.b16 %v4214
  %v4431 = vunpack.c.l.b16 %v4215
  %v4432 = vunpack.c.l.b16 %v4216
  %v4433 = vunpack.c.l.b16 %v4217
  %v4434 = vunpack.c.l.b16 %v4218
  %v4435 = vunpack.c.l.b16 %v4219
  %v4436 = vunpack.c.l.b16 %v4220
  %v4437 = vunpack.c.l.b16 %v4221
  %v4438 = vunpack.c.l.b16 %v4222
  %v4439 = vunpack.c.l.b16 %v4223
  %v4440 = vunpack.c.l.b16 %v4224
  %v4441 = vunpack.c.l.b16 %v4225
  %v4442 = vunpack.c.l.b16 %v4226
  %v4443 = vunpack.c.l.b16 %v4227
  %v4444 = vunpack.c.l.b16 %v4228
  %v4445 = vunpack.c.l.b16 %v4229
  %v4446 = vunpack.c.l.b16 %v4230
  %v4447 = vunpack.c.l.b16 %v4231
  %v4448 = vunpack.c.l.b16 %v4232
  %v4449 = vunpack.c.l.b16 %v4233
  %v4450 = vunpack.c.l.b16 %v4234
  %v4451 = vunpack.c.l.b16 %v4235
  %v4452 = vunpack.c.l.b16 %v4236
  %v4453 = vunpack.c.l.b16 %v4237
  %v4454 = vunpack.c.l.b16 %v4238
  %v4455 = vunpack.c.l.b16 %v4239
  %v4456 = vunpack.c.l.b16 %v4240
  %v4457 = vunpack.c.l.b16 %v4241
  %v4458 = vunpack.c.l.b16 %v4242
  %v4459 = vunpack.c.l.b16 %v4243
  %v4460 = vunpack.c.l.b16 %v4244
  %v4461 = vunpack.c.l.b16 %v4245
  %v4462 = vunpack.c.l.b16 %v4246
  %v4463 = vunpack.c.l.b16 %v4247
  %v4464 = vunpack.c.l.b16 %v4248
  %v4465 = vunpack.c.l.b16 %v4249
  %v4466 = vunpack.c.l.b16 %v4250
  %v4467 = vunpack.c.l.b16 %v4251
  %v4468 = vunpack.c.l.b16 %v4252
  %v4469 = vunpack.c.l.b16 %v4253
  %v4470 = vunpack.c.l.b16 %v4254
  %v4471 = vunpack.c.l.b16 %v4255
  %v4472 = vunpack.c.l.b16 %v4256
  %v4473 = vunpack.c.l.b16 %v4257
  %v4474 = vunpack.c.l.b16 %v4258
  %v4475 = vunpack.c.l.b16 %v4259
  %v4476 = vunpack.c.l.b16 %v4260
  %v4477 = vunpack.c.l.b16 %v4261
  %v4478 = vunpack.c.l.b16 %v4262
  %v4479 = vunpack.c.l.b16 %v4263
  %v4480 = vunpack.c.l.b16 %v4264
  %v4481 = vunpack.c.l.b16 %v4265
  %v4482 = vunpack.c.l.b16 %v4266
  %v4483 = vunpack.c.l.b16 %v4267
  %v4484 = vpack.c.b16 %v4413, %v4412
  %v4485 = vpack.c.b16 %v4415, %v4414
  %v4486 = vpack.c.b16 %v4417, %v4416
  %v4487 = vpack.c.b16 %v4419, %v4418
  %v4488 = vpack.c.b16 %v4421, %v4420
  %v4489 = vpack.c.b16 %v4423, %v4422
  %v4490 = vpack.c.b16 %v4425, %v4424
  %v4491 = vpack.c.b16 %v4427, %v4426
  %v4492 = vpack.c.b16 %v4429, %v4428
  %v4493 = vpack.c.b16 %v4431, %v4430
  %v4494 = vpack.c.b16 %v4433, %v4432
  %v4495 = vpack.c.b16 %v4435, %v4434
  %v4496 = vpack.c.b16 %v4437, %v4436
  %v4497 = vpack.c.b16 %v4439, %v4438
  %v4498 = vpack.c.b16 %v4441, %v4440
  %v4499 = vpack.c.b16 %v4443, %v4442
  %v4500 = vpack.c.b16 %v4445, %v4444
  %v4501 = vpack.c.b16 %v4447, %v4446
  %v4502 = vpack.c.b16 %v4449, %v4448
  %v4503 = vpack.c.b16 %v4451, %v4450
  %v4504 = vpack.c.b16 %v4453, %v4452
  %v4505 = vpack.c.b16 %v4455, %v4454
  %v4506 = vpack.c.b16 %v4457, %v4456
  %v4507 = vpack.c.b16 %v4459, %v4458
  %v4508 = vpack.c.b16 %v4461, %v4460
  %v4509 = vpack.c.b16 %v4463, %v4462
  %v4510 = vpack.c.b16 %v4465, %v4464
  %v4511 = vpack.c.b16 %v4467, %v4466
  %v4512 = vpack.c.b16 %v4469, %v4468
  %v4513 = vpack.c.b16 %v4471, %v4470
  %v4514 = vpack.c.b16 %v4473, %v4472
  %v4515 = vpack.c.b16 %v4475, %v4474
  %v4516 = vpack.c.b16 %v4477, %v4476
  %v4517 = vpack.c.b16 %v4479, %v4478
  %v4518 = vpack.c.b16 %v4481, %v4480
  %v4519 = vpack.c.b16 %v4483, %v4482
  %v4556 = vunpack.c.l.b16 %v4268
  %v4557 = vunpack.c.l.b16 %v4269
  %v4558 = vunpack.c.l.b16 %v4270
  %v4559 = vunpack.c.l.b16 %v4271
  %v4560 = vunpack.c.l.b16 %v4272
  %v4561 = vunpack.c.l.b16 %v4273
  %v4562 = vunpack.c.l.b16 %v4274
  %v4563 = vunpack.c.l.b16 %v4275
  %v4564 = vunpack.c.l.b16 %v4276
  %v4565 = vunpack.c.l.b16 %v4277
  %v4566 = vunpack.c.l.b16 %v4278
  %v4567 = vunpack.c.l.b16 %v4279
  %v4568 = vunpack.c.l.b16 %v4280
  %v4569 = vunpack.c.l.b16 %v4281
  %v4570 = vunpack.c.l.b16 %v4282
  %v4571 = vunpack.c.l.b16 %v4283
  %v4572 = vunpack.c.l.b16 %v4284
  %v4573 = vunpack.c.l.b16 %v4285
  %v4574 = vunpack.c.l.b16 %v4286
  %v4575 = vunpack.c.l.b16 %v4287
  %v4576 = vunpack.c.l.b16 %v4288
  %v4577 = vunpack.c.l.b16 %v4289
  %v4578 = vunpack.c.l.b16 %v4290
  %v4579 = vunpack.c.l.b16 %v4291
  %v4580 = vunpack.c.l.b16 %v4292
  %v4581 = vunpack.c.l.b16 %v4293
  %v4582 = vunpack.c.l.b16 %v4294
  %v4583 = vunpack.c.l.b16 %v4295
  %v4584 = vunpack.c.l.b16 %v4296
  %v4585 = vunpack.c.l.b16 %v4297
  %v4586 = vunpack.c.l.b16 %v4298
  %v4587 = vunpack.c.l.b16 %v4299
  %v4588 = vunpack.c.l.b16 %v4300
  %v4589 = vunpack.c.l.b16 %v4301
  %v4590 = vunpack.c.l.b16 %v4302
  %v4591 = vunpack.c.l.b16 %v4303
  %v4592 = vpack.c.b16 %v4556, %v4556
  %v4593 = vpack.c.b16 %v4557, %v4557
  %v4594 = vpack.c.b16 %v4558, %v4558
  %v4595 = vpack.c.b16 %v4559, %v4559
  %v4596 = vpack.c.b16 %v4560, %v4560
  %v4597 = vpack.c.b16 %v4561, %v4561
  %v4598 = vpack.c.b16 %v4562, %v4562
  %v4599 = vpack.c.b16 %v4563, %v4563
  %v4600 = vpack.c.b16 %v4564, %v4564
  %v4601 = vpack.c.b16 %v4565, %v4565
  %v4602 = vpack.c.b16 %v4566, %v4566
  %v4603 = vpack.c.b16 %v4567, %v4567
  %v4604 = vpack.c.b16 %v4568, %v4568
  %v4605 = vpack.c.b16 %v4569, %v4569
  %v4606 = vpack.c.b16 %v4570, %v4570
  %v4607 = vpack.c.b16 %v4571, %v4571
  %v4608 = vpack.c.b16 %v4572, %v4572
  %v4609 = vpack.c.b16 %v4573, %v4573
  %v4610 = vpack.c.b16 %v4574, %v4574
  %v4611 = vpack.c.b16 %v4575, %v4575
  %v4612 = vpack.c.b16 %v4576, %v4576
  %v4613 = vpack.c.b16 %v4577, %v4577
  %v4614 = vpack.c.b16 %v4578, %v4578
  %v4615 = vpack.c.b16 %v4579, %v4579
  %v4616 = vpack.c.b16 %v4580, %v4580
  %v4617 = vpack.c.b16 %v4581, %v4581
  %v4618 = vpack.c.b16 %v4582, %v4582
  %v4619 = vpack.c.b16 %v4583, %v4583
  %v4620 = vpack.c.b16 %v4584, %v4584
  %v4621 = vpack.c.b16 %v4585, %v4585
  %v4622 = vpack.c.b16 %v4586, %v4586
  %v4623 = vpack.c.b16 %v4587, %v4587
  %v4624 = vpack.c.b16 %v4588, %v4588
  %v4625 = vpack.c.b16 %v4589, %v4589
  %v4626 = vpack.c.b16 %v4590, %v4590
  %v4627 = vpack.c.b16 %v4591, %v4591
  %v4629 = vshrl.u32 %v4484, 16
  %v4631 = vshll.u32 %v4484, 16
  %v4633 = vrot.slane %v4631, 1
  %v4634 = vor.u32 %v4629, %v4633
  %v4636 = vshll.u32 %v4592, 16
  %v4638 = vrot.slane %v4636, 1
  %v4639 = vsel %vm1677, %v4634, %v4638
  %v4641 = vshrl.u32 %v4485, 16
  %v4643 = vshll.u32 %v4485, 16
  %v4645 = vrot.slane %v4643, 1
  %v4646 = vor.u32 %v4641, %v4645
  %v4648 = vshll.u32 %v4593, 16
  %v4650 = vrot.slane %v4648, 1
  %v4651 = vsel %vm1677, %v4646, %v4650
  %v4653 = vshrl.u32 %v4486, 16
  %v4655 = vshll.u32 %v4486, 16
  %v4657 = vrot.slane %v4655, 1
  %v4658 = vor.u32 %v4653, %v4657
  %v4660 = vshll.u32 %v4594, 16
  %v4662 = vrot.slane %v4660, 1
  %v4663 = vsel %vm1677, %v4658, %v4662
  %v4665 = vshrl.u32 %v4487, 16
  %v4667 = vshll.u32 %v4487, 16
  %v4669 = vrot.slane %v4667, 1
  %v4670 = vor.u32 %v4665, %v4669
  %v4672 = vshll.u32 %v4595, 16
  %v4674 = vrot.slane %v4672, 1
  %v4675 = vsel %vm1677, %v4670, %v4674
  %v4677 = vshrl.u32 %v4488, 16
  %v4679 = vshll.u32 %v4488, 16
  %v4681 = vrot.slane %v4679, 1
  %v4682 = vor.u32 %v4677, %v4681
  %v4684 = vshll.u32 %v4596, 16
  %v4686 = vrot.slane %v4684, 1
  %v4687 = vsel %vm1677, %v4682, %v4686
  %v4689 = vshrl.u32 %v4489, 16
  %v4691 = vshll.u32 %v4489, 16
  %v4693 = vrot.slane %v4691, 1
  %v4694 = vor.u32 %v4689, %v4693
  %v4696 = vshll.u32 %v4597, 16
  %v4698 = vrot.slane %v4696, 1
  %v4699 = vsel %vm1677, %v4694, %v4698
  %v4701 = vshrl.u32 %v4490, 16
  %v4703 = vshll.u32 %v4490, 16
  %v4705 = vrot.slane %v4703, 1
  %v4706 = vor.u32 %v4701, %v4705
  %v4708 = vshll.u32 %v4598, 16
  %v4710 = vrot.slane %v4708, 1
  %v4711 = vsel %vm1677, %v4706, %v4710
  %v4713 = vshrl.u32 %v4491, 16
  %v4715 = vshll.u32 %v4491, 16
  %v4717 = vrot.slane %v4715, 1
  %v4718 = vor.u32 %v4713, %v4717
  %v4720 = vshll.u32 %v4599, 16
  %v4722 = vrot.slane %v4720, 1
  %v4723 = vsel %vm1677, %v4718, %v4722
  %v4725 = vshrl.u32 %v4492, 16
  %v4727 = vshll.u32 %v4492, 16
  %v4729 = vrot.slane %v4727, 1
  %v4730 = vor.u32 %v4725, %v4729
  %v4732 = vshll.u32 %v4600, 16
  %v4734 = vrot.slane %v4732, 1
  %v4735 = vsel %vm1677, %v4730, %v4734
  %v4737 = vshrl.u32 %v4493, 16
  %v4739 = vshll.u32 %v4493, 16
  %v4741 = vrot.slane %v4739, 1
  %v4742 = vor.u32 %v4737, %v4741
  %v4744 = vshll.u32 %v4601, 16
  %v4746 = vrot.slane %v4744, 1
  %v4747 = vsel %vm1677, %v4742, %v4746
  %v4749 = vshrl.u32 %v4494, 16
  %v4751 = vshll.u32 %v4494, 16
  %v4753 = vrot.slane %v4751, 1
  %v4754 = vor.u32 %v4749, %v4753
  %v4756 = vshll.u32 %v4602, 16
  %v4758 = vrot.slane %v4756, 1
  %v4759 = vsel %vm1677, %v4754, %v4758
  %v4761 = vshrl.u32 %v4495, 16
  %v4763 = vshll.u32 %v4495, 16
  %v4765 = vrot.slane %v4763, 1
  %v4766 = vor.u32 %v4761, %v4765
  %v4768 = vshll.u32 %v4603, 16
  %v4770 = vrot.slane %v4768, 1
  %v4771 = vsel %vm1677, %v4766, %v4770
  %v4773 = vshrl.u32 %v4496, 16
  %v4775 = vshll.u32 %v4496, 16
  %v4777 = vrot.slane %v4775, 1
  %v4778 = vor.u32 %v4773, %v4777
  %v4780 = vshll.u32 %v4604, 16
  %v4782 = vrot.slane %v4780, 1
  %v4783 = vsel %vm1677, %v4778, %v4782
  %v4785 = vshrl.u32 %v4497, 16
  %v4787 = vshll.u32 %v4497, 16
  %v4789 = vrot.slane %v4787, 1
  %v4790 = vor.u32 %v4785, %v4789
  %v4792 = vshll.u32 %v4605, 16
  %v4794 = vrot.slane %v4792, 1
  %v4795 = vsel %vm1677, %v4790, %v4794
  %v4797 = vshrl.u32 %v4498, 16
  %v4799 = vshll.u32 %v4498, 16
  %v4801 = vrot.slane %v4799, 1
  %v4802 = vor.u32 %v4797, %v4801
  %v4804 = vshll.u32 %v4606, 16
  %v4806 = vrot.slane %v4804, 1
  %v4807 = vsel %vm1677, %v4802, %v4806
  %v4809 = vshrl.u32 %v4499, 16
  %v4811 = vshll.u32 %v4499, 16
  %v4813 = vrot.slane %v4811, 1
  %v4814 = vor.u32 %v4809, %v4813
  %v4816 = vshll.u32 %v4607, 16
  %v4818 = vrot.slane %v4816, 1
  %v4819 = vsel %vm1677, %v4814, %v4818
  %v4821 = vshrl.u32 %v4500, 16
  %v4823 = vshll.u32 %v4500, 16
  %v4825 = vrot.slane %v4823, 1
  %v4826 = vor.u32 %v4821, %v4825
  %v4828 = vshll.u32 %v4608, 16
  %v4830 = vrot.slane %v4828, 1
  %v4831 = vsel %vm1677, %v4826, %v4830
  %v4833 = vshrl.u32 %v4501, 16
  %v4835 = vshll.u32 %v4501, 16
  %v4837 = vrot.slane %v4835, 1
  %v4838 = vor.u32 %v4833, %v4837
  %v4840 = vshll.u32 %v4609, 16
  %v4842 = vrot.slane %v4840, 1
  %v4843 = vsel %vm1677, %v4838, %v4842
  %v4845 = vshrl.u32 %v4502, 16
  %v4847 = vshll.u32 %v4502, 16
  %v4849 = vrot.slane %v4847, 1
  %v4850 = vor.u32 %v4845, %v4849
  %v4852 = vshll.u32 %v4610, 16
  %v4854 = vrot.slane %v4852, 1
  %v4855 = vsel %vm1677, %v4850, %v4854
  %v4857 = vshrl.u32 %v4503, 16
  %v4859 = vshll.u32 %v4503, 16
  %v4861 = vrot.slane %v4859, 1
  %v4862 = vor.u32 %v4857, %v4861
  %v4864 = vshll.u32 %v4611, 16
  %v4866 = vrot.slane %v4864, 1
  %v4867 = vsel %vm1677, %v4862, %v4866
  %v4869 = vshrl.u32 %v4504, 16
  %v4871 = vshll.u32 %v4504, 16
  %v4873 = vrot.slane %v4871, 1
  %v4874 = vor.u32 %v4869, %v4873
  %v4876 = vshll.u32 %v4612, 16
  %v4878 = vrot.slane %v4876, 1
  %v4879 = vsel %vm1677, %v4874, %v4878
  %v4881 = vshrl.u32 %v4505, 16
  %v4883 = vshll.u32 %v4505, 16
  %v4885 = vrot.slane %v4883, 1
  %v4886 = vor.u32 %v4881, %v4885
  %v4888 = vshll.u32 %v4613, 16
  %v4890 = vrot.slane %v4888, 1
  %v4891 = vsel %vm1677, %v4886, %v4890
  %v4893 = vshrl.u32 %v4506, 16
  %v4895 = vshll.u32 %v4506, 16
  %v4897 = vrot.slane %v4895, 1
  %v4898 = vor.u32 %v4893, %v4897
  %v4900 = vshll.u32 %v4614, 16
  %v4902 = vrot.slane %v4900, 1
  %v4903 = vsel %vm1677, %v4898, %v4902
  %v4905 = vshrl.u32 %v4507, 16
  %v4907 = vshll.u32 %v4507, 16
  %v4909 = vrot.slane %v4907, 1
  %v4910 = vor.u32 %v4905, %v4909
  %v4912 = vshll.u32 %v4615, 16
  %v4914 = vrot.slane %v4912, 1
  %v4915 = vsel %vm1677, %v4910, %v4914
  %v4917 = vshrl.u32 %v4508, 16
  %v4919 = vshll.u32 %v4508, 16
  %v4921 = vrot.slane %v4919, 1
  %v4922 = vor.u32 %v4917, %v4921
  %v4924 = vshll.u32 %v4616, 16
  %v4926 = vrot.slane %v4924, 1
  %v4927 = vsel %vm1677, %v4922, %v4926
  %v4929 = vshrl.u32 %v4509, 16
  %v4931 = vshll.u32 %v4509, 16
  %v4933 = vrot.slane %v4931, 1
  %v4934 = vor.u32 %v4929, %v4933
  %v4936 = vshll.u32 %v4617, 16
  %v4938 = vrot.slane %v4936, 1
  %v4939 = vsel %vm1677, %v4934, %v4938
  %v4941 = vshrl.u32 %v4510, 16
  %v4943 = vshll.u32 %v4510, 16
  %v4945 = vrot.slane %v4943, 1
  %v4946 = vor.u32 %v4941, %v4945
  %v4948 = vshll.u32 %v4618, 16
  %v4950 = vrot.slane %v4948, 1
  %v4951 = vsel %vm1677, %v4946, %v4950
  %v4953 = vshrl.u32 %v4511, 16
  %v4955 = vshll.u32 %v4511, 16
  %v4957 = vrot.slane %v4955, 1
  %v4958 = vor.u32 %v4953, %v4957
  %v4960 = vshll.u32 %v4619, 16
  %v4962 = vrot.slane %v4960, 1
  %v4963 = vsel %vm1677, %v4958, %v4962
  %v4965 = vshrl.u32 %v4512, 16
  %v4967 = vshll.u32 %v4512, 16
  %v4969 = vrot.slane %v4967, 1
  %v4970 = vor.u32 %v4965, %v4969
  %v4972 = vshll.u32 %v4620, 16
  %v4974 = vrot.slane %v4972, 1
  %v4975 = vsel %vm1677, %v4970, %v4974
  %v4977 = vshrl.u32 %v4513, 16
  %v4979 = vshll.u32 %v4513, 16
  %v4981 = vrot.slane %v4979, 1
  %v4982 = vor.u32 %v4977, %v4981
  %v4984 = vshll.u32 %v4621, 16
  %v4986 = vrot.slane %v4984, 1
  %v4987 = vsel %vm1677, %v4982, %v4986
  %v4989 = vshrl.u32 %v4514, 16
  %v4991 = vshll.u32 %v4514, 16
  %v4993 = vrot.slane %v4991, 1
  %v4994 = vor.u32 %v4989, %v4993
  %v4996 = vshll.u32 %v4622, 16
  %v4998 = vrot.slane %v4996, 1
  %v4999 = vsel %vm1677, %v4994, %v4998
  %v5001 = vshrl.u32 %v4515, 16
  %v5003 = vshll.u32 %v4515, 16
  %v5005 = vrot.slane %v5003, 1
  %v5006 = vor.u32 %v5001, %v5005
  %v5008 = vshll.u32 %v4623, 16
  %v5010 = vrot.slane %v5008, 1
  %v5011 = vsel %vm1677, %v5006, %v5010
  %v5013 = vshrl.u32 %v4516, 16
  %v5015 = vshll.u32 %v4516, 16
  %v5017 = vrot.slane %v5015, 1
  %v5018 = vor.u32 %v5013, %v5017
  %v5020 = vshll.u32 %v4624, 16
  %v5022 = vrot.slane %v5020, 1
  %v5023 = vsel %vm1677, %v5018, %v5022
  %v5025 = vshrl.u32 %v4517, 16
  %v5027 = vshll.u32 %v4517, 16
  %v5029 = vrot.slane %v5027, 1
  %v5030 = vor.u32 %v5025, %v5029
  %v5032 = vshll.u32 %v4625, 16
  %v5034 = vrot.slane %v5032, 1
  %v5035 = vsel %vm1677, %v5030, %v5034
  %v5037 = vshrl.u32 %v4518, 16
  %v5039 = vshll.u32 %v4518, 16
  %v5041 = vrot.slane %v5039, 1
  %v5042 = vor.u32 %v5037, %v5041
  %v5044 = vshll.u32 %v4626, 16
  %v5046 = vrot.slane %v5044, 1
  %v5047 = vsel %vm1677, %v5042, %v5046
  %v5049 = vshrl.u32 %v4519, 16
  %v5051 = vshll.u32 %v4519, 16
  %v5053 = vrot.slane %v5051, 1
  %v5054 = vor.u32 %v5049, %v5053
  %v5056 = vshll.u32 %v4627, 16
  %v5058 = vrot.slane %v5056, 1
  %v5059 = vsel %vm1677, %v5054, %v5058
  %5060 = vrot.lane.b32.xlu0 %v4639, 8
  %v5061 = vpop.permute.xlu0 %5060
  %5062 = vrot.lane.b32.xlu0 %v4651, 8
  %v5063 = vpop.permute.xlu0 %5062
  %5064 = vrot.lane.b32.xlu0 %v4663, 8
  %v5065 = vpop.permute.xlu0 %5064
  %5066 = vrot.lane.b32.xlu0 %v4675, 8
  %v5067 = vpop.permute.xlu0 %5066
  %5068 = vrot.lane.b32.xlu0 %v4687, 8
  %v5069 = vpop.permute.xlu0 %5068
  %5070 = vrot.lane.b32.xlu0 %v4699, 8
  %v5071 = vpop.permute.xlu0 %5070
  %5072 = vrot.lane.b32.xlu0 %v4711, 8
  %v5073 = vpop.permute.xlu0 %5072
  %5074 = vrot.lane.b32.xlu0 %v4723, 8
  %v5075 = vpop.permute.xlu0 %5074
  %5076 = vrot.lane.b32.xlu0 %v4735, 8
  %v5077 = vpop.permute.xlu0 %5076
  %5078 = vrot.lane.b32.xlu0 %v4747, 8
  %v5079 = vpop.permute.xlu0 %5078
  %5080 = vrot.lane.b32.xlu0 %v4759, 8
  %v5081 = vpop.permute.xlu0 %5080
  %5082 = vrot.lane.b32.xlu0 %v4771, 8
  %v5083 = vpop.permute.xlu0 %5082
  %5084 = vrot.lane.b32.xlu0 %v4783, 8
  %v5085 = vpop.permute.xlu0 %5084
  %5086 = vrot.lane.b32.xlu0 %v4795, 8
  %v5087 = vpop.permute.xlu0 %5086
  %5088 = vrot.lane.b32.xlu0 %v4807, 8
  %v5089 = vpop.permute.xlu0 %5088
  %5090 = vrot.lane.b32.xlu0 %v4819, 8
  %v5091 = vpop.permute.xlu0 %5090
  %5092 = vrot.lane.b32.xlu0 %v4831, 8
  %v5093 = vpop.permute.xlu0 %5092
  %5094 = vrot.lane.b32.xlu0 %v4843, 8
  %v5095 = vpop.permute.xlu0 %5094
  %5096 = vrot.lane.b32.xlu0 %v4855, 8
  %v5097 = vpop.permute.xlu0 %5096
  %5098 = vrot.lane.b32.xlu0 %v4867, 8
  %v5099 = vpop.permute.xlu0 %5098
  %5100 = vrot.lane.b32.xlu0 %v4879, 8
  %v5101 = vpop.permute.xlu0 %5100
  %5102 = vrot.lane.b32.xlu0 %v4891, 8
  %v5103 = vpop.permute.xlu0 %5102
  %5104 = vrot.lane.b32.xlu0 %v4903, 8
  %v5105 = vpop.permute.xlu0 %5104
  %5106 = vrot.lane.b32.xlu0 %v4915, 8
  %v5107 = vpop.permute.xlu0 %5106
  %5108 = vrot.lane.b32.xlu0 %v4927, 8
  %v5109 = vpop.permute.xlu0 %5108
  %5110 = vrot.lane.b32.xlu0 %v4939, 8
  %v5111 = vpop.permute.xlu0 %5110
  %5112 = vrot.lane.b32.xlu0 %v4951, 8
  %v5113 = vpop.permute.xlu0 %5112
  %5114 = vrot.lane.b32.xlu0 %v4963, 8
  %v5115 = vpop.permute.xlu0 %5114
  %5116 = vrot.lane.b32.xlu0 %v4975, 8
  %v5117 = vpop.permute.xlu0 %5116
  %5118 = vrot.lane.b32.xlu0 %v4987, 8
  %v5119 = vpop.permute.xlu0 %5118
  %5120 = vrot.lane.b32.xlu0 %v4999, 8
  %v5121 = vpop.permute.xlu0 %5120
  %5122 = vrot.lane.b32.xlu0 %v5011, 8
  %v5123 = vpop.permute.xlu0 %5122
  %5124 = vrot.lane.b32.xlu0 %v5023, 8
  %v5125 = vpop.permute.xlu0 %5124
  %5126 = vrot.lane.b32.xlu0 %v5035, 8
  %v5127 = vpop.permute.xlu0 %5126
  %5128 = vrot.lane.b32.xlu0 %v5047, 8
  %v5129 = vpop.permute.xlu0 %5128
  %5130 = vrot.lane.b32.xlu0 %v5059, 8
  %v5131 = vpop.permute.xlu0 %5130
  %v5168 = vunpack.c.l.b16 %v4304
  %v5169 = vunpack.c.l.b16 %v4305
  %v5170 = vunpack.c.l.b16 %v4306
  %v5171 = vunpack.c.l.b16 %v4307
  %v5172 = vunpack.c.l.b16 %v4308
  %v5173 = vunpack.c.l.b16 %v4309
  %v5174 = vunpack.c.l.b16 %v4310
  %v5175 = vunpack.c.l.b16 %v4311
  %v5176 = vunpack.c.l.b16 %v4312
  %v5177 = vunpack.c.l.b16 %v4313
  %v5178 = vunpack.c.l.b16 %v4314
  %v5179 = vunpack.c.l.b16 %v4315
  %v5180 = vunpack.c.l.b16 %v4316
  %v5181 = vunpack.c.l.b16 %v4317
  %v5182 = vunpack.c.l.b16 %v4318
  %v5183 = vunpack.c.l.b16 %v4319
  %v5184 = vunpack.c.l.b16 %v4320
  %v5185 = vunpack.c.l.b16 %v4321
  %v5186 = vunpack.c.l.b16 %v4322
  %v5187 = vunpack.c.l.b16 %v4323
  %v5188 = vunpack.c.l.b16 %v4324
  %v5189 = vunpack.c.l.b16 %v4325
  %v5190 = vunpack.c.l.b16 %v4326
  %v5191 = vunpack.c.l.b16 %v4327
  %v5192 = vunpack.c.l.b16 %v4328
  %v5193 = vunpack.c.l.b16 %v4329
  %v5194 = vunpack.c.l.b16 %v4330
  %v5195 = vunpack.c.l.b16 %v4331
  %v5196 = vunpack.c.l.b16 %v4332
  %v5197 = vunpack.c.l.b16 %v4333
  %v5198 = vunpack.c.l.b16 %v4334
  %v5199 = vunpack.c.l.b16 %v4335
  %v5200 = vunpack.c.l.b16 %v4336
  %v5201 = vunpack.c.l.b16 %v4337
  %v5202 = vunpack.c.l.b16 %v4338
  %v5203 = vunpack.c.l.b16 %v4339
  %v5204 = vpack.c.b16 %v4413, %v5168
  %v5205 = vpack.c.b16 %v4415, %v5169
  %v5206 = vpack.c.b16 %v4417, %v5170
  %v5207 = vpack.c.b16 %v4419, %v5171
  %v5208 = vpack.c.b16 %v4421, %v5172
  %v5209 = vpack.c.b16 %v4423, %v5173
  %v5210 = vpack.c.b16 %v4425, %v5174
  %v5211 = vpack.c.b16 %v4427, %v5175
  %v5212 = vpack.c.b16 %v4429, %v5176
  %v5213 = vpack.c.b16 %v4431, %v5177
  %v5214 = vpack.c.b16 %v4433, %v5178
  %v5215 = vpack.c.b16 %v4435, %v5179
  %v5216 = vpack.c.b16 %v4437, %v5180
  %v5217 = vpack.c.b16 %v4439, %v5181
  %v5218 = vpack.c.b16 %v4441, %v5182
  %v5219 = vpack.c.b16 %v4443, %v5183
  %v5220 = vpack.c.b16 %v4445, %v5184
  %v5221 = vpack.c.b16 %v4447, %v5185
  %v5222 = vpack.c.b16 %v4449, %v5186
  %v5223 = vpack.c.b16 %v4451, %v5187
  %v5224 = vpack.c.b16 %v4453, %v5188
  %v5225 = vpack.c.b16 %v4455, %v5189
  %v5226 = vpack.c.b16 %v4457, %v5190
  %v5227 = vpack.c.b16 %v4459, %v5191
  %v5228 = vpack.c.b16 %v4461, %v5192
  %v5229 = vpack.c.b16 %v4463, %v5193
  %v5230 = vpack.c.b16 %v4465, %v5194
  %v5231 = vpack.c.b16 %v4467, %v5195
  %v5232 = vpack.c.b16 %v4469, %v5196
  %v5233 = vpack.c.b16 %v4471, %v5197
  %v5234 = vpack.c.b16 %v4473, %v5198
  %v5235 = vpack.c.b16 %v4475, %v5199
  %v5236 = vpack.c.b16 %v4477, %v5200
  %v5237 = vpack.c.b16 %v4479, %v5201
  %v5238 = vpack.c.b16 %v4481, %v5202
  %v5239 = vpack.c.b16 %v4483, %v5203
  %v5240 = vrot.slane %v5204, 1
  %v5241 = vrot.slane %v4592, 1
  %v5242 = vsel %vm2290, %v5240, %v5241
  %v5243 = vrot.slane %v5205, 1
  %v5244 = vrot.slane %v4593, 1
  %v5245 = vsel %vm2290, %v5243, %v5244
  %v5246 = vrot.slane %v5206, 1
  %v5247 = vrot.slane %v4594, 1
  %v5248 = vsel %vm2290, %v5246, %v5247
  %v5249 = vrot.slane %v5207, 1
  %v5250 = vrot.slane %v4595, 1
  %v5251 = vsel %vm2290, %v5249, %v5250
  %v5252 = vrot.slane %v5208, 1
  %v5253 = vrot.slane %v4596, 1
  %v5254 = vsel %vm2290, %v5252, %v5253
  %v5255 = vrot.slane %v5209, 1
  %v5256 = vrot.slane %v4597, 1
  %v5257 = vsel %vm2290, %v5255, %v5256
  %v5258 = vrot.slane %v5210, 1
  %v5259 = vrot.slane %v4598, 1
  %v5260 = vsel %vm2290, %v5258, %v5259
  %v5261 = vrot.slane %v5211, 1
  %v5262 = vrot.slane %v4599, 1
  %v5263 = vsel %vm2290, %v5261, %v5262
  %v5264 = vrot.slane %v5212, 1
  %v5265 = vrot.slane %v4600, 1
  %v5266 = vsel %vm2290, %v5264, %v5265
  %v5267 = vrot.slane %v5213, 1
  %v5268 = vrot.slane %v4601, 1
  %v5269 = vsel %vm2290, %v5267, %v5268
  %v5270 = vrot.slane %v5214, 1
  %v5271 = vrot.slane %v4602, 1
  %v5272 = vsel %vm2290, %v5270, %v5271
  %v5273 = vrot.slane %v5215, 1
  %v5274 = vrot.slane %v4603, 1
  %v5275 = vsel %vm2290, %v5273, %v5274
  %v5276 = vrot.slane %v5216, 1
  %v5277 = vrot.slane %v4604, 1
  %v5278 = vsel %vm2290, %v5276, %v5277
  %v5279 = vrot.slane %v5217, 1
  %v5280 = vrot.slane %v4605, 1
  %v5281 = vsel %vm2290, %v5279, %v5280
  %v5282 = vrot.slane %v5218, 1
  %v5283 = vrot.slane %v4606, 1
  %v5284 = vsel %vm2290, %v5282, %v5283
  %v5285 = vrot.slane %v5219, 1
  %v5286 = vrot.slane %v4607, 1
  %v5287 = vsel %vm2290, %v5285, %v5286
  %v5288 = vrot.slane %v5220, 1
  %v5289 = vrot.slane %v4608, 1
  %v5290 = vsel %vm2290, %v5288, %v5289
  %v5291 = vrot.slane %v5221, 1
  %v5292 = vrot.slane %v4609, 1
  %v5293 = vsel %vm2290, %v5291, %v5292
  %v5294 = vrot.slane %v5222, 1
  %v5295 = vrot.slane %v4610, 1
  %v5296 = vsel %vm2290, %v5294, %v5295
  %v5297 = vrot.slane %v5223, 1
  %v5298 = vrot.slane %v4611, 1
  %v5299 = vsel %vm2290, %v5297, %v5298
  %v5300 = vrot.slane %v5224, 1
  %v5301 = vrot.slane %v4612, 1
  %v5302 = vsel %vm2290, %v5300, %v5301
  %v5303 = vrot.slane %v5225, 1
  %v5304 = vrot.slane %v4613, 1
  %v5305 = vsel %vm2290, %v5303, %v5304
  %v5306 = vrot.slane %v5226, 1
  %v5307 = vrot.slane %v4614, 1
  %v5308 = vsel %vm2290, %v5306, %v5307
  %v5309 = vrot.slane %v5227, 1
  %v5310 = vrot.slane %v4615, 1
  %v5311 = vsel %vm2290, %v5309, %v5310
  %v5312 = vrot.slane %v5228, 1
  %v5313 = vrot.slane %v4616, 1
  %v5314 = vsel %vm2290, %v5312, %v5313
  %v5315 = vrot.slane %v5229, 1
  %v5316 = vrot.slane %v4617, 1
  %v5317 = vsel %vm2290, %v5315, %v5316
  %v5318 = vrot.slane %v5230, 1
  %v5319 = vrot.slane %v4618, 1
  %v5320 = vsel %vm2290, %v5318, %v5319
  %v5321 = vrot.slane %v5231, 1
  %v5322 = vrot.slane %v4619, 1
  %v5323 = vsel %vm2290, %v5321, %v5322
  %v5324 = vrot.slane %v5232, 1
  %v5325 = vrot.slane %v4620, 1
  %v5326 = vsel %vm2290, %v5324, %v5325
  %v5327 = vrot.slane %v5233, 1
  %v5328 = vrot.slane %v4621, 1
  %v5329 = vsel %vm2290, %v5327, %v5328
  %v5330 = vrot.slane %v5234, 1
  %v5331 = vrot.slane %v4622, 1
  %v5332 = vsel %vm2290, %v5330, %v5331
  %v5333 = vrot.slane %v5235, 1
  %v5334 = vrot.slane %v4623, 1
  %v5335 = vsel %vm2290, %v5333, %v5334
  %v5336 = vrot.slane %v5236, 1
  %v5337 = vrot.slane %v4624, 1
  %v5338 = vsel %vm2290, %v5336, %v5337
  %v5339 = vrot.slane %v5237, 1
  %v5340 = vrot.slane %v4625, 1
  %v5341 = vsel %vm2290, %v5339, %v5340
  %v5342 = vrot.slane %v5238, 1
  %v5343 = vrot.slane %v4626, 1
  %v5344 = vsel %vm2290, %v5342, %v5343
  %v5345 = vrot.slane %v5239, 1
  %v5346 = vrot.slane %v4627, 1
  %v5347 = vsel %vm2290, %v5345, %v5346
  %5348 = vrot.lane.b32.xlu0 %v5242, 16
  %v5349 = vpop.permute.xlu0 %5348
  %5350 = vrot.lane.b32.xlu0 %v5245, 16
  %v5351 = vpop.permute.xlu0 %5350
  %5352 = vrot.lane.b32.xlu0 %v5248, 16
  %v5353 = vpop.permute.xlu0 %5352
  %5354 = vrot.lane.b32.xlu0 %v5251, 16
  %v5355 = vpop.permute.xlu0 %5354
  %5356 = vrot.lane.b32.xlu0 %v5254, 16
  %v5357 = vpop.permute.xlu0 %5356
  %5358 = vrot.lane.b32.xlu0 %v5257, 16
  %v5359 = vpop.permute.xlu0 %5358
  %5360 = vrot.lane.b32.xlu0 %v5260, 16
  %v5361 = vpop.permute.xlu0 %5360
  %5362 = vrot.lane.b32.xlu0 %v5263, 16
  %v5363 = vpop.permute.xlu0 %5362
  %5364 = vrot.lane.b32.xlu0 %v5266, 16
  %v5365 = vpop.permute.xlu0 %5364
  %5366 = vrot.lane.b32.xlu0 %v5269, 16
  %v5367 = vpop.permute.xlu0 %5366
  %5368 = vrot.lane.b32.xlu0 %v5272, 16
  %v5369 = vpop.permute.xlu0 %5368
  %5370 = vrot.lane.b32.xlu0 %v5275, 16
  %v5371 = vpop.permute.xlu0 %5370
  %5372 = vrot.lane.b32.xlu0 %v5278, 16
  %v5373 = vpop.permute.xlu0 %5372
  %5374 = vrot.lane.b32.xlu0 %v5281, 16
  %v5375 = vpop.permute.xlu0 %5374
  %5376 = vrot.lane.b32.xlu0 %v5284, 16
  %v5377 = vpop.permute.xlu0 %5376
  %5378 = vrot.lane.b32.xlu0 %v5287, 16
  %v5379 = vpop.permute.xlu0 %5378
  %5380 = vrot.lane.b32.xlu0 %v5290, 16
  %v5381 = vpop.permute.xlu0 %5380
  %5382 = vrot.lane.b32.xlu0 %v5293, 16
  %v5383 = vpop.permute.xlu0 %5382
  %5384 = vrot.lane.b32.xlu0 %v5296, 16
  %v5385 = vpop.permute.xlu0 %5384
  %5386 = vrot.lane.b32.xlu0 %v5299, 16
  %v5387 = vpop.permute.xlu0 %5386
  %5388 = vrot.lane.b32.xlu0 %v5302, 16
  %v5389 = vpop.permute.xlu0 %5388
  %5390 = vrot.lane.b32.xlu0 %v5305, 16
  %v5391 = vpop.permute.xlu0 %5390
  %5392 = vrot.lane.b32.xlu0 %v5308, 16
  %v5393 = vpop.permute.xlu0 %5392
  %5394 = vrot.lane.b32.xlu0 %v5311, 16
  %v5395 = vpop.permute.xlu0 %5394
  %5396 = vrot.lane.b32.xlu0 %v5314, 16
  %v5397 = vpop.permute.xlu0 %5396
  %5398 = vrot.lane.b32.xlu0 %v5317, 16
  %v5399 = vpop.permute.xlu0 %5398
  %5400 = vrot.lane.b32.xlu0 %v5320, 16
  %v5401 = vpop.permute.xlu0 %5400
  %5402 = vrot.lane.b32.xlu0 %v5323, 16
  %v5403 = vpop.permute.xlu0 %5402
  %5404 = vrot.lane.b32.xlu0 %v5326, 16
  %v5405 = vpop.permute.xlu0 %5404
  %5406 = vrot.lane.b32.xlu0 %v5329, 16
  %v5407 = vpop.permute.xlu0 %5406
  %5408 = vrot.lane.b32.xlu0 %v5332, 16
  %v5409 = vpop.permute.xlu0 %5408
  %5410 = vrot.lane.b32.xlu0 %v5335, 16
  %v5411 = vpop.permute.xlu0 %5410
  %5412 = vrot.lane.b32.xlu0 %v5338, 16
  %v5413 = vpop.permute.xlu0 %5412
  %5414 = vrot.lane.b32.xlu0 %v5341, 16
  %v5415 = vpop.permute.xlu0 %5414
  %5416 = vrot.lane.b32.xlu0 %v5344, 16
  %v5417 = vpop.permute.xlu0 %5416
  %5418 = vrot.lane.b32.xlu0 %v5347, 16
  %v5419 = vpop.permute.xlu0 %5418
  %v5421 = vsel %vm2544, %v4484, %v5061
  %v5423 = vsel %vm2544, %v4485, %v5063
  %v5425 = vsel %vm2544, %v4486, %v5065
  %v5427 = vsel %vm2544, %v4487, %v5067
  %v5429 = vsel %vm2544, %v4488, %v5069
  %v5431 = vsel %vm2544, %v4489, %v5071
  %v5433 = vsel %vm2544, %v4490, %v5073
  %v5435 = vsel %vm2544, %v4491, %v5075
  %v5437 = vsel %vm2544, %v4492, %v5077
  %v5439 = vsel %vm2544, %v4493, %v5079
  %v5441 = vsel %vm2544, %v4494, %v5081
  %v5443 = vsel %vm2544, %v4495, %v5083
  %v5445 = vsel %vm2544, %v4496, %v5085
  %v5447 = vsel %vm2544, %v4497, %v5087
  %v5449 = vsel %vm2544, %v4498, %v5089
  %v5451 = vsel %vm2544, %v4499, %v5091
  %v5453 = vsel %vm2544, %v4500, %v5093
  %v5455 = vsel %vm2544, %v4501, %v5095
  %v5457 = vsel %vm2544, %v4502, %v5097
  %v5459 = vsel %vm2544, %v4503, %v5099
  %v5461 = vsel %vm2544, %v4504, %v5101
  %v5463 = vsel %vm2544, %v4505, %v5103
  %v5465 = vsel %vm2544, %v4506, %v5105
  %v5467 = vsel %vm2544, %v4507, %v5107
  %v5469 = vsel %vm2544, %v4508, %v5109
  %v5471 = vsel %vm2544, %v4509, %v5111
  %v5473 = vsel %vm2544, %v4510, %v5113
  %v5475 = vsel %vm2544, %v4511, %v5115
  %v5477 = vsel %vm2544, %v4512, %v5117
  %v5479 = vsel %vm2544, %v4513, %v5119
  %v5481 = vsel %vm2544, %v4514, %v5121
  %v5483 = vsel %vm2544, %v4515, %v5123
  %v5485 = vsel %vm2544, %v4516, %v5125
  %v5487 = vsel %vm2544, %v4517, %v5127
  %v5489 = vsel %vm2544, %v4518, %v5129
  %v5491 = vsel %vm2544, %v4519, %v5131
  %vm5492 = vcmask 130048
  %v5494 = vsel %vm5492, %v5421, %v5349
  %v5496 = vsel %vm5492, %v5423, %v5351
  %v5498 = vsel %vm5492, %v5425, %v5353
  %v5500 = vsel %vm5492, %v5427, %v5355
  %v5502 = vsel %vm5492, %v5429, %v5357
  %v5504 = vsel %vm5492, %v5431, %v5359
  %v5506 = vsel %vm5492, %v5433, %v5361
  %v5508 = vsel %vm5492, %v5435, %v5363
  %v5510 = vsel %vm5492, %v5437, %v5365
  %v5512 = vsel %vm5492, %v5439, %v5367
  %v5514 = vsel %vm5492, %v5441, %v5369
  %v5516 = vsel %vm5492, %v5443, %v5371
  %v5518 = vsel %vm5492, %v5445, %v5373
  %v5520 = vsel %vm5492, %v5447, %v5375
  %v5522 = vsel %vm5492, %v5449, %v5377
  %v5524 = vsel %vm5492, %v5451, %v5379
  %v5526 = vsel %vm5492, %v5453, %v5381
  %v5528 = vsel %vm5492, %v5455, %v5383
  %v5530 = vsel %vm5492, %v5457, %v5385
  %v5532 = vsel %vm5492, %v5459, %v5387
  %v5534 = vsel %vm5492, %v5461, %v5389
  %v5536 = vsel %vm5492, %v5463, %v5391
  %v5538 = vsel %vm5492, %v5465, %v5393
  %v5540 = vsel %vm5492, %v5467, %v5395
  %v5542 = vsel %vm5492, %v5469, %v5397
  %v5544 = vsel %vm5492, %v5471, %v5399
  %v5546 = vsel %vm5492, %v5473, %v5401
  %v5548 = vsel %vm5492, %v5475, %v5403
  %v5550 = vsel %vm5492, %v5477, %v5405
  %v5552 = vsel %vm5492, %v5479, %v5407
  %v5554 = vsel %vm5492, %v5481, %v5409
  %v5556 = vsel %vm5492, %v5483, %v5411
  %v5558 = vsel %vm5492, %v5485, %v5413
  %v5560 = vsel %vm5492, %v5487, %v5415
  %v5562 = vsel %vm5492, %v5489, %v5417
  %v5564 = vsel %vm5492, %v5491, %v5419
  %v5565 = vld [vmem:[%s4] sm:$0xf]
  %s5566 = scalar_lea.vmem %s4, 4
  %v5567 = vld [vmem:[%s5566] sm:$0xf]
  %vm5568 = vcmask 195584
  %v5570 = vsel %vm5568, %v5567, 0
  %v5572 = vsel %vm5568, %v5496, 0
  %v5574 = vsel %vm5568, %v5498, 0
  %v5576 = vsel %vm5568, %v5500, 0
  %v5578 = vsel %vm5568, %v5502, 0
  %v5580 = vsel %vm5568, %v5504, 0
  %v5582 = vsel %vm5568, %v5506, 0
  %v5584 = vsel %vm5568, %v5508, 0
  %v5586 = vsel %vm5568, %v5510, 0
  %v5588 = vsel %vm5568, %v5512, 0
  %v5590 = vsel %vm5568, %v5514, 0
  %v5592 = vsel %vm5568, %v5516, 0
  %v5594 = vsel %vm5568, %v5518, 0
  %v5596 = vsel %vm5568, %v5520, 0
  %v5598 = vsel %vm5568, %v5522, 0
  %v5600 = vsel %vm5568, %v5524, 0
  %v5602 = vsel %vm5568, %v5526, 0
  %v5604 = vsel %vm5568, %v5532, 0
  %v5606 = vsel %vm5568, %v5534, 0
  %v5608 = vsel %vm5568, %v5536, 0
  %v5610 = vsel %vm5568, %v5538, 0
  %v5612 = vsel %vm5568, %v5540, 0
  %v5614 = vsel %vm5568, %v5542, 0
  %v5616 = vsel %vm5568, %v5544, 0
  %v5618 = vsel %vm5568, %v5546, 0
  %v5620 = vsel %vm5568, %v5548, 0
  %v5622 = vsel %vm5568, %v5550, 0
  %v5624 = vsel %vm5568, %v5552, 0
  %v5626 = vsel %vm5568, %v5554, 0
  %v5628 = vsel %vm5568, %v5556, 0
  %v5630 = vsel %vm5568, %v5558, 0
  %v5632 = vsel %vm5568, %v5560, 0
  %v5634 = vsel %vm5568, %v5562, 0
  %5636 = vmatpush.bf16.xpose.msra.mxu0 %v5586
  %5637 = vmatpush.bf16.xpose.msra.mxu0 %v5584
  %5638 = vmatpush.bf16.xpose.msra.mxu0 %v5582
  %5639 = vmatpush.bf16.xpose.msra.mxu0 %v5580
  %5640 = vmatpush.bf16.xpose.msra.mxu0 %v5578
  %5641 = vmatpush.bf16.xpose.msra.mxu0 %v5576
  %5642 = vmatpush.bf16.xpose.msra.mxu0 %v5574
  %5643 = vmatpush.bf16.xpose.msra.mxu0 %v5572
  %5644 = vmatmul.bf16.gmra.mxu0 %v5570
  %v5645 = vpop.f32.mrf.mxu0
  %v5646 = vadd.f32 0.0, %v5645
  %v5647 = vpop.f32.mrf.mxu0
  %5648 = vdwg.mxu0
  %5649 = vmatpush.bf16.xpose.msra.mxu0 %v5602
  %5650 = vmatpush.bf16.xpose.msra.mxu0 %v5600
  %5651 = vmatpush.bf16.xpose.msra.mxu0 %v5598
  %5652 = vmatpush.bf16.xpose.msra.mxu0 %v5596
  %5653 = vmatpush.bf16.xpose.msra.mxu0 %v5594
  %5654 = vmatpush.bf16.xpose.msra.mxu0 %v5592
  %5655 = vmatpush.bf16.xpose.msra.mxu0 %v5590
  %5656 = vmatpush.bf16.xpose.msra.mxu0 %v5588
  %5657 = vmatmul.bf16.gmra.mxu0 %v5570
  %v5658 = vpop.f32.mrf.mxu0
  %v5659 = vadd.f32 0.0, %v5658
  %v5660 = vpop.f32.mrf.mxu0
  %5661 = vdwg.mxu0
  %5662 = vmatpush.bf16.xpose.msra.mxu0 %v5618
  %5663 = vmatpush.bf16.xpose.msra.mxu0 %v5616
  %5664 = vmatpush.bf16.xpose.msra.mxu0 %v5614
  %5665 = vmatpush.bf16.xpose.msra.mxu0 %v5612
  %5666 = vmatpush.bf16.xpose.msra.mxu0 %v5610
  %5667 = vmatpush.bf16.xpose.msra.mxu0 %v5608
  %5668 = vmatpush.bf16.xpose.msra.mxu0 %v5606
  %5669 = vmatpush.bf16.xpose.msra.mxu0 %v5604
  %5670 = vmatmul.bf16.gmra.mxu0 %v5570
  %v5671 = vpop.f32.mrf.mxu0
  %v5672 = vadd.f32 0.0, %v5671
  %v5673 = vpop.f32.mrf.mxu0
  %5674 = vdwg.mxu0
  %5675 = vmatpush.bf16.xpose.msra.mxu0 %v5634
  %5676 = vmatpush.bf16.xpose.msra.mxu0 %v5632
  %5677 = vmatpush.bf16.xpose.msra.mxu0 %v5630
  %5678 = vmatpush.bf16.xpose.msra.mxu0 %v5628
  %5679 = vmatpush.bf16.xpose.msra.mxu0 %v5626
  %5680 = vmatpush.bf16.xpose.msra.mxu0 %v5624
  %5681 = vmatpush.bf16.xpose.msra.mxu0 %v5622
  %5682 = vmatpush.bf16.xpose.msra.mxu0 %v5620
  %5683 = vmatmul.bf16.gmra.mxu0 %v5570
  %v5684 = vpop.f32.mrf.mxu0
  %v5685 = vadd.f32 0.0, %v5684
  %v5686 = vpop.f32.mrf.mxu0
  %5687 = vdwg.mxu0
  %v5689 = vsel %vm5568, %v5565, 0
  %v5691 = vsel %vm5568, %v5494, 0
  %v5693 = vsel %vm5568, %v5530, 0
  %5695 = vmatpush.bf16.xpose.msra.mxu0 %v5584
  %5696 = vmatpush.bf16.xpose.msra.mxu0 %v5582
  %5697 = vmatpush.bf16.xpose.msra.mxu0 %v5580
  %5698 = vmatpush.bf16.xpose.msra.mxu0 %v5578
  %5699 = vmatpush.bf16.xpose.msra.mxu0 %v5576
  %5700 = vmatpush.bf16.xpose.msra.mxu0 %v5574
  %5701 = vmatpush.bf16.xpose.msra.mxu0 %v5572
  %5702 = vmatpush.bf16.xpose.msra.mxu0 %v5691
  %5703 = vmatmul.bf16.gmra.mxu0 %v5689
  %v5704 = vpop.f32.mrf.mxu0
  %v5705 = vadd.f32 %v5646, %v5704
  %v5706 = vpop.f32.mrf.mxu0
  %5707 = vdwg.mxu0
  %5708 = vmatpush.bf16.xpose.msra.mxu0 %v5600
  %5709 = vmatpush.bf16.xpose.msra.mxu0 %v5598
  %5710 = vmatpush.bf16.xpose.msra.mxu0 %v5596
  %5711 = vmatpush.bf16.xpose.msra.mxu0 %v5594
  %5712 = vmatpush.bf16.xpose.msra.mxu0 %v5592
  %5713 = vmatpush.bf16.xpose.msra.mxu0 %v5590
  %5714 = vmatpush.bf16.xpose.msra.mxu0 %v5588
  %5715 = vmatpush.bf16.xpose.msra.mxu0 %v5586
  %5716 = vmatmul.bf16.gmra.mxu0 %v5689
  %v5717 = vpop.f32.mrf.mxu0
  %v5718 = vadd.f32 %v5659, %v5717
  %v5719 = vpop.f32.mrf.mxu0
  %5720 = vdwg.mxu0
  %5721 = vmatpush.bf16.xpose.msra.mxu0 %v5616
  %5722 = vmatpush.bf16.xpose.msra.mxu0 %v5614
  %5723 = vmatpush.bf16.xpose.msra.mxu0 %v5612
  %5724 = vmatpush.bf16.xpose.msra.mxu0 %v5610
  %5725 = vmatpush.bf16.xpose.msra.mxu0 %v5608
  %5726 = vmatpush.bf16.xpose.msra.mxu0 %v5606
  %5727 = vmatpush.bf16.xpose.msra.mxu0 %v5604
  %5728 = vmatpush.bf16.xpose.msra.mxu0 %v5693
  %5729 = vmatmul.bf16.gmra.mxu0 %v5689
  %v5730 = vpop.f32.mrf.mxu0
  %v5731 = vadd.f32 %v5672, %v5730
  %v5732 = vpop.f32.mrf.mxu0
  %5733 = vdwg.mxu0
  %5734 = vmatpush.bf16.xpose.msra.mxu0 %v5632
  %5735 = vmatpush.bf16.xpose.msra.mxu0 %v5630
  %5736 = vmatpush.bf16.xpose.msra.mxu0 %v5628
  %5737 = vmatpush.bf16.xpose.msra.mxu0 %v5626
  %5738 = vmatpush.bf16.xpose.msra.mxu0 %v5624
  %5739 = vmatpush.bf16.xpose.msra.mxu0 %v5622
  %5740 = vmatpush.bf16.xpose.msra.mxu0 %v5620
  %5741 = vmatpush.bf16.xpose.msra.mxu0 %v5618
  %5742 = vmatmul.bf16.gmra.mxu0 %v5689
  %v5743 = vpop.f32.mrf.mxu0
  %v5744 = vadd.f32 %v5685, %v5743
  %v5745 = vpop.f32.mrf.mxu0
  %5746 = vdwg.mxu0
  %s5747 = scalar_lea.vmem %s4, 8
  %v5748 = vld [vmem:[%s5747] sm:$0xf]
  %v5750 = vsel %vm5568, %v5748, 0
  %v5752 = vsel %vm5568, %v5528, 0
  %v5754 = vsel %vm5568, %v5564, 0
  %5756 = vmatpush.bf16.xpose.msra.mxu0 %v5588
  %5757 = vmatpush.bf16.xpose.msra.mxu0 %v5586
  %5758 = vmatpush.bf16.xpose.msra.mxu0 %v5584
  %5759 = vmatpush.bf16.xpose.msra.mxu0 %v5582
  %5760 = vmatpush.bf16.xpose.msra.mxu0 %v5580
  %5761 = vmatpush.bf16.xpose.msra.mxu0 %v5578
  %5762 = vmatpush.bf16.xpose.msra.mxu0 %v5576
  %5763 = vmatpush.bf16.xpose.msra.mxu0 %v5574
  %5764 = vmatmul.bf16.gmra.mxu0 %v5750
  %v5765 = vpop.f32.mrf.mxu0
  %v5766 = vadd.f32 0.0, %v5765
  %v5767 = vpop.f32.mrf.mxu0
  %5768 = vdwg.mxu0
  %5769 = vmatpush.bf16.xpose.msra.mxu0 %v5752
  %5770 = vmatpush.bf16.xpose.msra.mxu0 %v5602
  %5771 = vmatpush.bf16.xpose.msra.mxu0 %v5600
  %5772 = vmatpush.bf16.xpose.msra.mxu0 %v5598
  %5773 = vmatpush.bf16.xpose.msra.mxu0 %v5596
  %5774 = vmatpush.bf16.xpose.msra.mxu0 %v5594
  %5775 = vmatpush.bf16.xpose.msra.mxu0 %v5592
  %5776 = vmatpush.bf16.xpose.msra.mxu0 %v5590
  %5777 = vmatmul.bf16.gmra.mxu0 %v5750
  %v5778 = vpop.f32.mrf.mxu0
  %v5779 = vadd.f32 0.0, %v5778
  %v5780 = vpop.f32.mrf.mxu0
  %5781 = vdwg.mxu0
  %5782 = vmatpush.bf16.xpose.msra.mxu0 %v5620
  %5783 = vmatpush.bf16.xpose.msra.mxu0 %v5618
  %5784 = vmatpush.bf16.xpose.msra.mxu0 %v5616
  %5785 = vmatpush.bf16.xpose.msra.mxu0 %v5614
  %5786 = vmatpush.bf16.xpose.msra.mxu0 %v5612
  %5787 = vmatpush.bf16.xpose.msra.mxu0 %v5610
  %5788 = vmatpush.bf16.xpose.msra.mxu0 %v5608
  %5789 = vmatpush.bf16.xpose.msra.mxu0 %v5606
  %5790 = vmatmul.bf16.gmra.mxu0 %v5750
  %v5791 = vpop.f32.mrf.mxu0
  %v5792 = vadd.f32 0.0, %v5791
  %v5793 = vpop.f32.mrf.mxu0
  %5794 = vdwg.mxu0
  %5795 = vmatpush.bf16.xpose.msra.mxu0 %v5754
  %5796 = vmatpush.bf16.xpose.msra.mxu0 %v5634
  %5797 = vmatpush.bf16.xpose.msra.mxu0 %v5632
  %5798 = vmatpush.bf16.xpose.msra.mxu0 %v5630
  %5799 = vmatpush.bf16.xpose.msra.mxu0 %v5628
  %5800 = vmatpush.bf16.xpose.msra.mxu0 %v5626
  %5801 = vmatpush.bf16.xpose.msra.mxu0 %v5624
  %5802 = vmatpush.bf16.xpose.msra.mxu0 %v5622
  %5803 = vmatmul.bf16.gmra.mxu0 %v5750
  %v5804 = vpop.f32.mrf.mxu0
  %v5805 = vadd.f32 0.0, %v5804
  %v5806 = vpop.f32.mrf.mxu0
  %5807 = vdwg.mxu0
  %v5808 = vadd.f32 %v5705, %v5766
  %v5809 = vadd.f32 %v5718, %v5779
  %v5810 = vadd.f32 %v5731, %v5792
  %v5811 = vadd.f32 %v5744, %v5805
  %v5812 = vld [vmem:[%s5] sm:$0xff]
  %v5813 = vld [vmem:[%s6] sm:$0xff]
  %v5814 = vadd.f32 %v5808, %v5809
  %v5815 = vadd.f32 %v5814, %v5810
  %v5816 = vadd.f32 %v5815, %v5811
  %5817 = vadd.xlane.f32.xlu0 %v5816
  %v5818 = vpop.xlane.xlu0 %5817
  %v5819 = vmul.f32 %v5818, %v2877
  %v5820 = vsub.f32 %v5808, %v5819
  %v5821 = vsub.f32 %v5809, %v5819
  %v5822 = vsub.f32 %v5810, %v5819
  %v5823 = vsub.f32 %v5811, %v5819
  %v5824 = vmul.f32 %v5820, %v5820
  %v5825 = vmul.f32 %v5821, %v5821
  %v5826 = vmul.f32 %v5822, %v5822
  %v5827 = vmul.f32 %v5823, %v5823
  %v5828 = vadd.f32 %v5824, %v5825
  %v5829 = vadd.f32 %v5828, %v5826
  %v5830 = vadd.f32 %v5829, %v5827
  %5831 = vadd.xlane.f32.xlu0 %v5830
  %v5832 = vpop.xlane.xlu0 %5831
  %v5833 = vmul.f32 %v5832, %v2877
  %v5834 = vadd.f32 %v5833, 1e-05
  %v5835 = vrsqrt.pop %v5834
  %v5836 = vmul.f32 %v5835, %v5834
  %v5837 = vmul.f32 %v5836, %v5835
  %v5838 = vmul.f32 0.5, %v5837
  %v5839 = vsub.f32 1.5, %v5838
  %v5840 = vmul.f32 %v5835, %v5839
  %vm5841 = vweird.f32 %v5834
  %vm5842 = vweird.f32 %v5835
  %vm5843 = vmor %vm5841, %vm5842
  %v5844 = vsel %vm5843, %v5835, %v5840
  %v5845 = vmul.f32 %v5812, %v5844
  %5847 = vset.pattern.permute.xlu0 0
  %5848 = vperm.xlu0 %5847, %v5845
  %v5849 = vpop.permute.xlu0 %5848
  %v5851 = vmul.f32 %v5820, %v5849
  %v5852 = vmul.f32 %v5821, %v5849
  %v5853 = vmul.f32 %v5822, %v5849
  %v5854 = vmul.f32 %v5823, %v5849
  %5856 = vset.pattern.permute.xlu0 0
  %5857 = vperm.xlu0 %5856, %v5813
  %v5858 = vpop.permute.xlu0 %5857
  %v5860 = vadd.f32 %v5851, %v5858
  %v5861 = vadd.f32 %v5852, %v5858
  %v5862 = vadd.f32 %v5853, %v5858
  %v5863 = vadd.f32 %v5854, %v5858
  %v5864 = vld [vmem:[%s0] sm:$0xff]
  %v5865 = vld [vmem:[%s0 + $0x8] sm:$0xff]
  %v5866 = vld [vmem:[%s0 + $0x10] sm:$0xff]
  %v5867 = vld [vmem:[%s0 + $0x18] sm:$0xff]
  %v5868 = vld [vmem:[%s0 + $0x20] sm:$0xff]
  %v5869 = vld [vmem:[%s0 + $0x28] sm:$0xff]
  %v5870 = vld [vmem:[%s0 + $0x30] sm:$0xff]
  %v5871 = vld [vmem:[%s0 + $0x38] sm:$0xff]
  %v5872 = vld [vmem:[%s0 + $0x40] sm:$0xff]
  %v5873 = vld [vmem:[%s0 + $0x48] sm:$0xff]
  %v5874 = vld [vmem:[%s0 + $0x50] sm:$0xff]
  %v5875 = vld [vmem:[%s0 + $0x58] sm:$0xff]
  %v5876 = vld [vmem:[%s0 + $0x60] sm:$0xff]
  %v5877 = vld [vmem:[%s0 + $0x68] sm:$0xff]
  %v5878 = vld [vmem:[%s0 + $0x70] sm:$0xff]
  %v5879 = vld [vmem:[%s0 + $0x78] sm:$0xff]
  %v5880 = vld [vmem:[%s0 + $0x80] sm:$0xff]
  %v5881 = vld [vmem:[%s0 + $0x88] sm:$0xff]
  %v5882 = vld [vmem:[%s0 + $0x90] sm:$0xff]
  %v5883 = vld [vmem:[%s0 + $0x98] sm:$0xff]
  %v5884 = vld [vmem:[%s0 + $0xa0] sm:$0xff]
  %v5885 = vld [vmem:[%s0 + $0xa8] sm:$0xff]
  %v5886 = vld [vmem:[%s0 + $0xb0] sm:$0xff]
  %v5887 = vld [vmem:[%s0 + $0xb8] sm:$0xff]
  %v5888 = vld [vmem:[%s0 + $0xc0] sm:$0xff]
  %v5889 = vld [vmem:[%s0 + $0xc8] sm:$0xff]
  %v5890 = vld [vmem:[%s0 + $0xd0] sm:$0xff]
  %v5891 = vld [vmem:[%s0 + $0xd8] sm:$0xff]
  %v5892 = vld [vmem:[%s0 + $0xe0] sm:$0xff]
  %v5893 = vld [vmem:[%s0 + $0xe8] sm:$0xff]
  %v5894 = vld [vmem:[%s0 + $0xf0] sm:$0xff]
  %v5895 = vld [vmem:[%s0 + $0xf8] sm:$0xff]
  %v5896 = vld [vmem:[%s0 + $0x100] sm:$0xff]
  %v5897 = vld [vmem:[%s0 + $0x108] sm:$0xff]
  %v5898 = vld [vmem:[%s0 + $0x110] sm:$0xff]
  %v5899 = vld [vmem:[%s0 + $0x118] sm:$0xff]
  %v5900 = vld [vmem:[%s0 + $0x120] sm:$0xff]
  %v5901 = vld [vmem:[%s0 + $0x128] sm:$0xff]
  %v5902 = vld [vmem:[%s0 + $0x130] sm:$0xff]
  %v5903 = vld [vmem:[%s0 + $0x138] sm:$0xff]
  %v5904 = vld [vmem:[%s0 + $0x140] sm:$0xff]
  %v5905 = vld [vmem:[%s0 + $0x148] sm:$0xff]
  %v5906 = vld [vmem:[%s0 + $0x150] sm:$0xff]
  %v5907 = vld [vmem:[%s0 + $0x158] sm:$0xff]
  %v5908 = vld [vmem:[%s0 + $0x160] sm:$0xff]
  %v5909 = vld [vmem:[%s0 + $0x168] sm:$0xff]
  %v5910 = vld [vmem:[%s0 + $0x170] sm:$0xff]
  %v5911 = vld [vmem:[%s0 + $0x178] sm:$0xff]
  %v5912 = vld [vmem:[%s0 + $0x180] sm:$0xff]
  %v5913 = vld [vmem:[%s0 + $0x188] sm:$0xff]
  %v5914 = vld [vmem:[%s0 + $0x190] sm:$0xff]
  %v5915 = vld [vmem:[%s0 + $0x198] sm:$0xff]
  %v5916 = vld [vmem:[%s0 + $0x1a0] sm:$0xff]
  %v5917 = vld [vmem:[%s0 + $0x1a8] sm:$0xff]
  %v5918 = vld [vmem:[%s0 + $0x1b0] sm:$0xff]
  %v5919 = vld [vmem:[%s0 + $0x1b8] sm:$0xff]
  %v5920 = vld [vmem:[%s0 + $0x1c0] sm:$0xff]
  %v5921 = vld [vmem:[%s0 + $0x1c8] sm:$0xff]
  %v5922 = vld [vmem:[%s0 + $0x1d0] sm:$0xff]
  %v5923 = vld [vmem:[%s0 + $0x1d8] sm:$0xff]
  %v5924 = vld [vmem:[%s0 + $0x1e0] sm:$0xff]
  %v5925 = vld [vmem:[%s0 + $0x1e8] sm:$0xff]
  %v5926 = vld [vmem:[%s0 + $0x1f0] sm:$0xff]
  %v5927 = vld [vmem:[%s0 + $0x1f8] sm:$0xff]
  %v5928 = vpack.c.bf16 %v5865, %v5864
  %v5929 = vpack.c.bf16 %v5867, %v5866
  %v5930 = vpack.c.bf16 %v5869, %v5868
  %v5931 = vpack.c.bf16 %v5871, %v5870
  %v5932 = vpack.c.bf16 %v5873, %v5872
  %v5933 = vpack.c.bf16 %v5875, %v5874
  %v5934 = vpack.c.bf16 %v5877, %v5876
  %v5935 = vpack.c.bf16 %v5879, %v5878
  %v5936 = vpack.c.bf16 %v5881, %v5880
  %v5937 = vpack.c.bf16 %v5883, %v5882
  %v5938 = vpack.c.bf16 %v5885, %v5884
  %v5939 = vpack.c.bf16 %v5887, %v5886
  %v5940 = vpack.c.bf16 %v5889, %v5888
  %v5941 = vpack.c.bf16 %v5891, %v5890
  %v5942 = vpack.c.bf16 %v5893, %v5892
  %v5943 = vpack.c.bf16 %v5895, %v5894
  %v5944 = vpack.c.bf16 %v5897, %v5896
  %v5945 = vpack.c.bf16 %v5899, %v5898
  %v5946 = vpack.c.bf16 %v5901, %v5900
  %v5947 = vpack.c.bf16 %v5903, %v5902
  %v5948 = vpack.c.bf16 %v5905, %v5904
  %v5949 = vpack.c.bf16 %v5907, %v5906
  %v5950 = vpack.c.bf16 %v5909, %v5908
  %v5951 = vpack.c.bf16 %v5911, %v5910
  %v5952 = vpack.c.bf16 %v5913, %v5912
  %v5953 = vpack.c.bf16 %v5915, %v5914
  %v5954 = vpack.c.bf16 %v5917, %v5916
  %v5955 = vpack.c.bf16 %v5919, %v5918
  %v5956 = vpack.c.bf16 %v5921, %v5920
  %v5957 = vpack.c.bf16 %v5923, %v5922
  %v5958 = vpack.c.bf16 %v5925, %v5924
  %v5959 = vpack.c.bf16 %v5927, %v5926
  %v5960 = vld [vmem:[%s7] sm:$0xf]
  %v5962 = vsel %vm2471, %v5960, 0
  %v5965 = vsel %vm2471, %v5928, 0
  %v5968 = vsel %vm2471, %v5929, 0
  %v5971 = vsel %vm2471, %v5930, 0
  %v5974 = vsel %vm2471, %v5931, 0
  %v5977 = vsel %vm2471, %v5932, 0
  %v5980 = vsel %vm2471, %v5933, 0
  %v5983 = vsel %vm2471, %v5934, 0
  %v5986 = vsel %vm2471, %v5935, 0
  %v5989 = vsel %vm2471, %v5936, 0
  %v5992 = vsel %vm2471, %v5937, 0
  %v5995 = vsel %vm2471, %v5938, 0
  %v5998 = vsel %vm2471, %v5939, 0
  %v6001 = vsel %vm2471, %v5940, 0
  %v6004 = vsel %vm2471, %v5941, 0
  %v6007 = vsel %vm2471, %v5942, 0
  %v6010 = vsel %vm2471, %v5943, 0
  %v6013 = vsel %vm2471, %v5944, 0
  %v6016 = vsel %vm2471, %v5945, 0
  %v6019 = vsel %vm2471, %v5946, 0
  %v6022 = vsel %vm2471, %v5947, 0
  %v6025 = vsel %vm2471, %v5948, 0
  %v6028 = vsel %vm2471, %v5949, 0
  %v6031 = vsel %vm2471, %v5950, 0
  %v6034 = vsel %vm2471, %v5951, 0
  %v6037 = vsel %vm2471, %v5952, 0
  %v6040 = vsel %vm2471, %v5953, 0
  %v6043 = vsel %vm2471, %v5954, 0
  %v6046 = vsel %vm2471, %v5955, 0
  %v6049 = vsel %vm2471, %v5956, 0
  %v6052 = vsel %vm2471, %v5957, 0
  %v6055 = vsel %vm2471, %v5958, 0
  %v6058 = vsel %vm2471, %v5959, 0
  %6060 = vmatpush.bf16.xpose.msra.mxu0 %v5986
  %6061 = vmatpush.bf16.xpose.msra.mxu0 %v5983
  %6062 = vmatpush.bf16.xpose.msra.mxu0 %v5980
  %6063 = vmatpush.bf16.xpose.msra.mxu0 %v5977
  %6064 = vmatpush.bf16.xpose.msra.mxu0 %v5974
  %6065 = vmatpush.bf16.xpose.msra.mxu0 %v5971
  %6066 = vmatpush.bf16.xpose.msra.mxu0 %v5968
  %6067 = vmatpush.bf16.xpose.msra.mxu0 %v5965
  %6068 = vmatmul.bf16.gmra.mxu0 %v5962
  %v6069 = vpop.f32.mrf.mxu0
  %v6070 = vadd.f32 0.0, %v6069
  %v6071 = vpop.f32.mrf.mxu0
  %6072 = vdwg.mxu0
  %6073 = vmatpush.bf16.xpose.msra.mxu0 %v6010
  %6074 = vmatpush.bf16.xpose.msra.mxu0 %v6007
  %6075 = vmatpush.bf16.xpose.msra.mxu0 %v6004
  %6076 = vmatpush.bf16.xpose.msra.mxu0 %v6001
  %6077 = vmatpush.bf16.xpose.msra.mxu0 %v5998
  %6078 = vmatpush.bf16.xpose.msra.mxu0 %v5995
  %6079 = vmatpush.bf16.xpose.msra.mxu0 %v5992
  %6080 = vmatpush.bf16.xpose.msra.mxu0 %v5989
  %6081 = vmatmul.bf16.gmra.mxu0 %v5962
  %v6082 = vpop.f32.mrf.mxu0
  %v6083 = vadd.f32 0.0, %v6082
  %v6084 = vpop.f32.mrf.mxu0
  %6085 = vdwg.mxu0
  %6086 = vmatpush.bf16.xpose.msra.mxu0 %v6034
  %6087 = vmatpush.bf16.xpose.msra.mxu0 %v6031
  %6088 = vmatpush.bf16.xpose.msra.mxu0 %v6028
  %6089 = vmatpush.bf16.xpose.msra.mxu0 %v6025
  %6090 = vmatpush.bf16.xpose.msra.mxu0 %v6022
  %6091 = vmatpush.bf16.xpose.msra.mxu0 %v6019
  %6092 = vmatpush.bf16.xpose.msra.mxu0 %v6016
  %6093 = vmatpush.bf16.xpose.msra.mxu0 %v6013
  %6094 = vmatmul.bf16.gmra.mxu0 %v5962
  %v6095 = vpop.f32.mrf.mxu0
  %v6096 = vadd.f32 0.0, %v6095
  %v6097 = vpop.f32.mrf.mxu0
  %6098 = vdwg.mxu0
  %6099 = vmatpush.bf16.xpose.msra.mxu0 %v6058
  %6100 = vmatpush.bf16.xpose.msra.mxu0 %v6055
  %6101 = vmatpush.bf16.xpose.msra.mxu0 %v6052
  %6102 = vmatpush.bf16.xpose.msra.mxu0 %v6049
  %6103 = vmatpush.bf16.xpose.msra.mxu0 %v6046
  %6104 = vmatpush.bf16.xpose.msra.mxu0 %v6043
  %6105 = vmatpush.bf16.xpose.msra.mxu0 %v6040
  %6106 = vmatpush.bf16.xpose.msra.mxu0 %v6037
  %6107 = vmatmul.bf16.gmra.mxu0 %v5962
  %v6108 = vpop.f32.mrf.mxu0
  %v6109 = vadd.f32 0.0, %v6108
  %v6110 = vpop.f32.mrf.mxu0
  %6111 = vdwg.mxu0
  %v6112 = vld [vmem:[%s8] sm:$0xff]
  %v6113 = vld [vmem:[%s9] sm:$0xff]
  %v6114 = vadd.f32 %v6070, %v6083
  %v6115 = vadd.f32 %v6114, %v6096
  %v6116 = vadd.f32 %v6115, %v6109
  %6117 = vadd.xlane.f32.xlu0 %v6116
  %v6118 = vpop.xlane.xlu0 %6117
  %v6119 = vmul.f32 %v6118, %v2877
  %v6120 = vsub.f32 %v6070, %v6119
  %v6121 = vsub.f32 %v6083, %v6119
  %v6122 = vsub.f32 %v6096, %v6119
  %v6123 = vsub.f32 %v6109, %v6119
  %v6124 = vmul.f32 %v6120, %v6120
  %v6125 = vmul.f32 %v6121, %v6121
  %v6126 = vmul.f32 %v6122, %v6122
  %v6127 = vmul.f32 %v6123, %v6123
  %v6128 = vadd.f32 %v6124, %v6125
  %v6129 = vadd.f32 %v6128, %v6126
  %v6130 = vadd.f32 %v6129, %v6127
  %6131 = vadd.xlane.f32.xlu0 %v6130
  %v6132 = vpop.xlane.xlu0 %6131
  %v6133 = vmul.f32 %v6132, %v2877
  %v6134 = vadd.f32 %v6133, 1e-05
  %v6135 = vrsqrt.pop %v6134
  %v6136 = vmul.f32 %v6135, %v6134
  %v6137 = vmul.f32 %v6136, %v6135
  %v6138 = vmul.f32 0.5, %v6137
  %v6139 = vsub.f32 1.5, %v6138
  %v6140 = vmul.f32 %v6135, %v6139
  %vm6141 = vweird.f32 %v6134
  %vm6142 = vweird.f32 %v6135
  %vm6143 = vmor %vm6141, %vm6142
  %v6144 = vsel %vm6143, %v6135, %v6140
  %v6145 = vmul.f32 %v6112, %v6144
  %6147 = vset.pattern.permute.xlu0 0
  %6148 = vperm.xlu0 %6147, %v6145
  %v6149 = vpop.permute.xlu0 %6148
  %v6151 = vmul.f32 %v6120, %v6149
  %v6152 = vmul.f32 %v6121, %v6149
  %v6153 = vmul.f32 %v6122, %v6149
  %v6154 = vmul.f32 %v6123, %v6149
  %6156 = vset.pattern.permute.xlu0 0
  %6157 = vperm.xlu0 %6156, %v6113
  %v6158 = vpop.permute.xlu0 %6157
  %v6160 = vadd.f32 %v6151, %v6158
  %v6161 = vadd.f32 %v6152, %v6158
  %v6162 = vadd.f32 %v6153, %v6158
  %v6163 = vadd.f32 %v6154, %v6158
  %v6164 = vadd.f32 %v5860, %v6160
  %v6165 = vadd.f32 %v5861, %v6161
  %v6166 = vadd.f32 %v5862, %v6162
  %v6167 = vadd.f32 %v5863, %v6163
  %v6168 = vmax.f32 %v6164, 0.0
  %v6169 = vmax.f32 %v6165, 0.0
  %v6170 = vmax.f32 %v6166, 0.0
  %v6171 = vmax.f32 %v6167, 0.0
  %6172 = vst [vmem:[%s10] sm:$0xff] %v6168
  %6173 = vst [vmem:[%s10 + $0x8] sm:$0xff] %v6169
  %6174 = vst [vmem:[%s10 + $0x10] sm:$0xff] %v6170
  %6175 = vst [vmem:[%s10 + $0x18] sm:$0xff] %v6171
  // Predicated region
  $region42: #{basic_block_forward.1} parent=0 // pred_check
    _
  $region43: #{basic_block_forward.1} parent=0 // pred_check_branch
    %6177 = sbr.rel (0) target = $region45
  $region44: #{basic_block_forward.1} parent=0 // pred_region
    _
  $region45: #{basic_block_forward.1} parent=0 // pred_fallthru
    _
  // Predicated region
  $region46: #{basic_block_forward.1} parent=0 // pred_check
    _
  $region47: #{basic_block_forward.1} parent=0 // pred_check_branch
    %6179 = sbr.rel (0) target = $region49
  $region48: #{basic_block_forward.1} parent=0 // pred_region
    _
  $region49: #{basic_block_forward.1} parent=0 // pred_fallthru
    _

</llo_original>
